<compile_context>
chip_gen: v5e
topology: v5e:2x2
jax: 0.10.0
libtpu: 0.0.40
codegen_flags: <defaults>
</compile_context>

<pallas_src>
import functools

import jax
import jax.numpy as jnp
from jax.experimental import pallas as pl
from jax.experimental.pallas import tpu as pltpu

# Module hyper-parameters (hidden sizes fixed by Discriminator.__init__).
INPUT_SIZE = 784      # flattened 28x28 image
OUTPUT_SIZE = 1
H1, H2, H3 = 1024, 512, 256
LEAK = 0.2
DROP_P = 0.3

LANE = 128
BATCH_ALIGN = 16      # bf16 sublane packing -> keep batch tiles 16-aligned
OUT_PAD = LANE        # lane-dense output block; sliced back to 1 in the wrapper


def _round_up(x, m):
    return ((x + m - 1) // m) * m


def _i32_const(v):
    """Python int -> wrapped int32 constant (two's complement)."""
    v &= 0xFFFFFFFF
    if v >= (1 << 31):
        v -= 1 << 32
    return jnp.int32(v)


def _on_tpu():
    try:
        return jax.devices()[0].platform == "tpu"
    except Exception:
        return False


def _default_act_dtype():
    """bf16 element math on chips with a bf16 VPU (v6e/v7x); f32 otherwise."""
    try:
        kind = jax.devices()[0].device_kind.lower()
    except Exception:
        return jnp.float32
    if any(t in kind for t in ("v2", "v3", "v4", "v5")):
        return jnp.float32
    return jnp.bfloat16


def _hash_bits(shape, row_salt):
    """Counter-based uniform uint32 bits (off-TPU / interpret-mode fallback)."""
    rows = (jax.lax.broadcasted_iota(jnp.int32, shape, 0) + row_salt).astype(jnp.uint32)
    cols = jax.lax.broadcasted_iota(jnp.int32, shape, 1).astype(jnp.uint32)
    x = rows * jnp.uint32(0x9E3779B1)
    x = x ^ (cols * jnp.uint32(0x85EBCA77))
    # lowbias32 finalizer
    x = x ^ (x >> jnp.uint32(16))
    x = x * jnp.uint32(0x7FEB352D)
    x = x ^ (x >> jnp.uint32(15))
    x = x * jnp.uint32(0x846CA68B)
    x = x ^ (x >> jnp.uint32(16))
    return x


def _dropout(h, p, row_salt, use_hw_prng):
    """Inverted dropout (F.dropout semantics): keep prob 1-p, scale by 1/(1-p)."""
    if use_hw_prng:
        bits = pltpu.bitcast(pltpu.prng_random_bits(h.shape), jnp.uint32)
    else:
        bits = _hash_bits(h.shape, row_salt)
    thresh = jnp.int32(int(round(p * (1 << 24))))
    keep = (bits >> jnp.uint32(8)).astype(jnp.int32) >= thresh
    return jnp.where(keep, h * (1.0 / (1.0 - p)), jnp.zeros_like(h))


def discriminator_kernel(seed_ref,
                         x_ref,
                         w1_ref, b1_ref,
                         w2_ref, b2_ref,
                         w3_ref, b3_ref,
                         w4_ref, b4_ref,
                         o_ref,
                         *, apply_dropout, use_hw_prng, act_dtype):
    bm = x_ref.shape[0]

    if apply_dropout and use_hw_prng:
        # Per-tile seed: mask independent of grid iteration order ("parallel"
        # safe) and of batch-tile count.
        pltpu.prng_seed(seed_ref[0] + pl.program_id(0))
    # Salt for the fallback hash path: global row offset + seed, wrapping i32.
    base_salt = pl.program_id(0) * bm + seed_ref[0] * _i32_const(0x9E377969)

    def linear(h, w_ref, b_ref):
        # bf16 MXU matmul, f32 accumulation, f32 bias add.
        return jnp.dot(h.astype(jnp.bfloat16), w_ref[...],
                       preferred_element_type=jnp.float32) + b_ref[...]

    def act(h_f32, layer):
        # Post-bias element math in act_dtype (bf16 on v6e/v7x, f32 on v5e).
        h = h_f32.astype(act_dtype)
        h = jnp.maximum(h, h * LEAK)            # leaky_relu, slope in (0,1)
        if apply_dropout:
            h = _dropout(h, DROP_P,
                         base_salt + _i32_const(layer * 0x3C6EF372),
                         use_hw_prng)
        return h

    h = act(linear(x_ref[...], w1_ref, b1_ref), 1)
    h = act(linear(h, w2_ref, b2_ref), 2)
    h = act(linear(h, w3_ref, b3_ref), 3)
    o_ref[...] = linear(h, w4_ref, b4_ref).astype(o_ref.dtype)


def prepare_params(raw_params):
    """Cast weights to bf16 and pad fc4 to a lane-dense 128-wide output block.

    Do this once outside the training step (not per forward call)."""
    w1, b1, w2, b2, w3, b3, w4, b4 = raw_params
    w4p = jnp.zeros((H3, OUT_PAD), jnp.float32).at[:, :OUTPUT_SIZE].set(w4)
    b4p = jnp.zeros((1, OUT_PAD), jnp.float32).at[:, :OUTPUT_SIZE].set(b4)
    return (w1.astype(jnp.bfloat16), b1.astype(jnp.float32),
            w2.astype(jnp.bfloat16), b2.astype(jnp.float32),
            w3.astype(jnp.bfloat16), b3.astype(jnp.float32),
            w4p.astype(jnp.bfloat16), b4p)


def discriminator_forward(x, prepared_params, *, seed=0, apply_dropout=True,
                          bm=512, use_hw_prng=None, act_dtype=None):
    """x: (B, INPUT_SIZE) float. Returns (B, OUTPUT_SIZE) f32 raw logits."""
    B, in_dim = x.shape
    assert in_dim == INPUT_SIZE
    if use_hw_prng is None:
        use_hw_prng = _on_tpu()
    if act_dtype is None:
        act_dtype = _default_act_dtype()
    w1, b1, w2, b2, w3, b3, w4, b4 = prepared_params

    # Large MXU-filling batch tile by default; shrink for small batches so a
    # tiny batch stays a single tile. Ragged batches are row-padded only.
    bm_eff = min(bm, _round_up(B, BATCH_ALIGN))
    B_pad = _round_up(B, bm_eff)

    x_bf16 = x.astype(jnp.bfloat16)            # bf16 straight to the MXU
    if B_pad != B:
        x_bf16 = jnp.pad(x_bf16, ((0, B_pad - B), (0, 0)))
    seed_arr = jnp.asarray([seed], dtype=jnp.int32)

    grid = (B_pad // bm_eff,)
    full = lambda i: (0, 0)   # weights / biases: same (resident) block each tile

    kernel = functools.partial(discriminator_kernel,
                               apply_dropout=apply_dropout,
                               use_hw_prng=use_hw_prng,
                               act_dtype=act_dtype)

    out = pl.pallas_call(
        kernel,
        out_shape=jax.ShapeDtypeStruct((B_pad, OUT_PAD), jnp.bfloat16),
        grid=grid,
        in_specs=[
            pl.BlockSpec(memory_space=pltpu.MemorySpace.SMEM),        # seed
            pl.BlockSpec((bm_eff, INPUT_SIZE), lambda i: (i, 0)),     # x tile (bf16)
            pl.BlockSpec((INPUT_SIZE, H1), full),                     # w1 bf16
            pl.BlockSpec((1, H1), full),                              # b1 f32
            pl.BlockSpec((H1, H2), full),                             # w2 bf16
            pl.BlockSpec((1, H2), full),                              # b2 f32
            pl.BlockSpec((H2, H3), full),                             # w3 bf16
            pl.BlockSpec((1, H3), full),                              # b3 f32
            pl.BlockSpec((H3, OUT_PAD), full),                        # w4 bf16 (col-padded)
            pl.BlockSpec((1, OUT_PAD), full),                         # b4 f32 (col-padded)
        ],
        out_specs=pl.BlockSpec((bm_eff, OUT_PAD), lambda i: (i, 0)),
        compiler_params=pltpu.CompilerParams(
            # Batch tiles are independent (dropout stream is per-tile seeded),
            # so the batch grid axis can be sharded across TensorCores.
            dimension_semantics=("parallel",),
            vmem_limit_bytes=48 << 20,   # below v7x's 64 MiB physical VMEM
        ),
    )(seed_arr, x_bf16, w1, b1, w2, b2, w3, b3, w4, b4)

    return out[:B, :OUTPUT_SIZE].astype(jnp.float32)


def init_params(key):
    """Deterministic init mirroring nn.Linear's U(-1/sqrt(fan_in), 1/sqrt(fan_in))."""
    dims = [(INPUT_SIZE, H1), (H1, H2), (H2, H3), (H3, OUTPUT_SIZE)]
    params = []
    keys = jax.random.split(key, 2 * len(dims))
    for li, (fan_in, fan_out) in enumerate(dims):
        bound = 1.0 / (fan_in ** 0.5)
        w = jax.random.uniform(keys[2 * li], (fan_in, fan_out),
                               minval=-bound, maxval=bound, dtype=jnp.float32)
        b = jax.random.uniform(keys[2 * li + 1], (1, fan_out),
                               minval=-bound, maxval=bound, dtype=jnp.float32)
        params += [w, b]
    return tuple(params)


if __name__ == "__main__":
    key = jax.random.PRNGKey(0)
    pkey, xkey = jax.random.split(key)

    raw_params = init_params(pkey)
    params = prepare_params(raw_params)

    B = 8
    x = jax.random.normal(xkey, (B, INPUT_SIZE), dtype=jnp.float32)

    # Training-mode forward (dropout on, hardware PRNG on TPU).
    out = jax.block_until_ready(
        discriminator_forward(x, params, seed=0, apply_dropout=True))
    assert out.shape == (B, OUTPUT_SIZE)
    assert bool(jnp.all(jnp.isfinite(out)))

    # Pure-JAX reference: same bf16-matmul / f32-accumulate recipe, no dropout.
    w1, b1, w2, b2, w3, b3, w4, b4 = raw_params

    def lin(h, w, b):
        return jnp.dot(h.astype(jnp.bfloat16), w.astype(jnp.bfloat16),
                       preferred_element_type=jnp.float32) + b

    def ref_fwd(xr):
        h = jax.nn.leaky_relu(lin(xr, w1, b1), LEAK)
        h = jax.nn.leaky_relu(lin(h, w2, b2), LEAK)
        h = jax.nn.leaky_relu(lin(h, w3, b3), LEAK)
        return lin(h, w4, b4)

    ref = ref_fwd(x)

    # Eval mode, f32 activation path (tight numerical check).
    out_f32act = jax.block_until_ready(
        discriminator_forward(x, params, apply_dropout=False,
                              act_dtype=jnp.float32))
    assert jnp.allclose(out_f32act, ref, atol=2.5e-2, rtol=2.5e-2), \
        float(jnp.max(jnp.abs(out_f32act - ref)))

    # Eval mode, default activation path (bf16 on v6e/v7x) — slightly looser.
    out_eval = jax.block_until_ready(
        discriminator_forward(x, params, apply_dropout=False))
    assert jnp.allclose(out_eval, ref, atol=5e-2, rtol=5e-2), \
        float(jnp.max(jnp.abs(out_eval - ref)))

    # Ragged multi-tile batch exercises batch padding + the parallel grid.
    B2 = 37
    x2 = jax.random.normal(jax.random.PRNGKey(1), (B2, INPUT_SIZE),
                           dtype=jnp.float32)
    out2 = jax.block_until_ready(
        discriminator_forward(x2, params, apply_dropout=False, bm=16,
                              act_dtype=jnp.float32))
    ref2 = ref_fwd(x2)
    assert out2.shape == (B2, OUTPUT_SIZE)
    assert jnp.allclose(out2, ref2, atol=2.5e-2, rtol=2.5e-2), \
        float(jnp.max(jnp.abs(out2 - ref2)))

    print("KERNEL_OK")
</pallas_src>

<mosaic_0001>
module attributes {stable_mosaic.version = 11 : i64} {
  func.func @discriminator_kernel(%arg0: i32, %arg1: memref<1xi32, #tpu.memory_space<smem>>, %arg2: memref<16x784xbf16, #tpu.memory_space<vmem>>, %arg3: memref<784x1024xbf16, #tpu.memory_space<vmem>>, %arg4: memref<1x1024xf32, #tpu.memory_space<vmem>>, %arg5: memref<1024x512xbf16, #tpu.memory_space<vmem>>, %arg6: memref<1x512xf32, #tpu.memory_space<vmem>>, %arg7: memref<512x256xbf16, #tpu.memory_space<vmem>>, %arg8: memref<1x256xf32, #tpu.memory_space<vmem>>, %arg9: memref<256x128xbf16, #tpu.memory_space<vmem>>, %arg10: memref<1x128xf32, #tpu.memory_space<vmem>>, %arg11: memref<16x128xbf16, #tpu.memory_space<vmem>>) attributes {dimension_semantics = [#tpu.dimension_semantics<parallel>], iteration_bounds = array<i64: 1>, scalar_prefetch = 0 : i64, scratch_operands = 0 : i64, tpu.core_type = #tpu.core_type<tc>, window_params = [{transform_indices = @transform_0, window_bounds = array<i64: 1>}, {transform_indices = @transform_1, window_bounds = array<i64: 16, 784>}, {pipeline_mode = #tpu.pipeline_mode<synchronous>, transform_indices = @transform_2, window_bounds = array<i64: 784, 1024>}, {pipeline_mode = #tpu.pipeline_mode<synchronous>, transform_indices = @transform_3, window_bounds = array<i64: 1, 1024>}, {pipeline_mode = #tpu.pipeline_mode<synchronous>, transform_indices = @transform_4, window_bounds = array<i64: 1024, 512>}, {pipeline_mode = #tpu.pipeline_mode<synchronous>, transform_indices = @transform_5, window_bounds = array<i64: 1, 512>}, {pipeline_mode = #tpu.pipeline_mode<synchronous>, transform_indices = @transform_6, window_bounds = array<i64: 512, 256>}, {pipeline_mode = #tpu.pipeline_mode<synchronous>, transform_indices = @transform_7, window_bounds = array<i64: 1, 256>}, {pipeline_mode = #tpu.pipeline_mode<synchronous>, transform_indices = @transform_8, window_bounds = array<i64: 256, 128>}, {pipeline_mode = #tpu.pipeline_mode<synchronous>, transform_indices = @transform_9, window_bounds = array<i64: 1, 128>}, {transform_indices = @transform_10, window_bounds = array<i64: 16, 128>}]} {
    %c16_i32 = arith.constant 16 : i32
    %0 = arith.muli %arg0, %c16_i32 : i32
    %c0 = arith.constant 0 : index
    %1 = memref.load %arg1[%c0] : memref<1xi32, #tpu.memory_space<smem>>
    %c-1640531607_i32 = arith.constant -1640531607 : i32
    %2 = arith.muli %1, %c-1640531607_i32 : i32
    %3 = arith.addi %0, %2 : i32
    %c0_0 = arith.constant 0 : index
    %c0_1 = arith.constant 0 : index
    %4 = vector.load %arg2[%c0_0, %c0_1] : memref<16x784xbf16, #tpu.memory_space<vmem>>, vector<16x784xbf16>
    %c0_2 = arith.constant 0 : index
    %c0_3 = arith.constant 0 : index
    %5 = vector.load %arg3[%c0_2, %c0_3] : memref<784x1024xbf16, #tpu.memory_space<vmem>>, vector<784x1024xbf16>
    %cst = arith.constant dense<0.000000e+00> : vector<16x1024xf32>
    %6 = tpu.matmul %4, %5, %cst {dimension_numbers = #tpu.dot_dimension_numbers<[1], [0], [0], [1], [0, 0, 1, 1], [], []>} : vector<16x784xbf16>, vector<784x1024xbf16>, vector<16x1024xf32> -> vector<16x1024xf32>
    %c0_4 = arith.constant 0 : index
    %c0_5 = arith.constant 0 : index
    %7 = vector.load %arg4[%c0_4, %c0_5] : memref<1x1024xf32, #tpu.memory_space<vmem>>, vector<1x1024xf32>
    %8 = vector.broadcast %7 : vector<1x1024xf32> to vector<16x1024xf32>
    %9 = arith.addf %6, %8 : vector<16x1024xf32>
    %10 = arith.truncf %9 : vector<16x1024xf32> to vector<16x1024xbf16>
    %cst_6 = arith.constant 2.001950e-01 : bf16
    %11 = vector.broadcast %cst_6 : bf16 to vector<16x1024xbf16>
    %12 = arith.mulf %10, %11 : vector<16x1024xbf16>
    %13 = arith.maximumf %10, %12 : vector<16x1024xbf16>
    %c1013904242_i32 = arith.constant 1013904242 : i32
    %14 = arith.addi %3, %c1013904242_i32 : i32
    %15 = tpu.iota {dimensions = array<i32: 0>} : vector<16x1024xi32>
    %16 = vector.broadcast %14 : i32 to vector<16x1024xi32>
    %17 = arith.addi %15, %16 : vector<16x1024xi32>
    %18 = tpu.iota {dimensions = array<i32: 1>} : vector<16x1024xi32>
    %c-1640531535_i32 = arith.constant -1640531535 : i32
    %19 = vector.broadcast %c-1640531535_i32 : i32 to vector<16x1024xi32>
    %20 = arith.muli %17, %19 : vector<16x1024xi32>
    %c-2048144777_i32 = arith.constant -2048144777 : i32
    %21 = vector.broadcast %c-2048144777_i32 : i32 to vector<16x1024xi32>
    %22 = arith.muli %18, %21 : vector<16x1024xi32>
    %23 = arith.xori %20, %22 : vector<16x1024xi32>
    %c16_i32_7 = arith.constant 16 : i32
    %24 = vector.broadcast %c16_i32_7 : i32 to vector<16x1024xi32>
    %25 = arith.shrui %23, %24 : vector<16x1024xi32>
    %26 = arith.xori %23, %25 : vector<16x1024xi32>
    %c2146121005_i32 = arith.constant 2146121005 : i32
    %27 = vector.broadcast %c2146121005_i32 : i32 to vector<16x1024xi32>
    %28 = arith.muli %26, %27 : vector<16x1024xi32>
    %c15_i32 = arith.constant 15 : i32
    %29 = vector.broadcast %c15_i32 : i32 to vector<16x1024xi32>
    %30 = arith.shrui %28, %29 : vector<16x1024xi32>
    %31 = arith.xori %28, %30 : vector<16x1024xi32>
    %c-2073254261_i32 = arith.constant -2073254261 : i32
    %32 = vector.broadcast %c-2073254261_i32 : i32 to vector<16x1024xi32>
    %33 = arith.muli %31, %32 : vector<16x1024xi32>
    %c16_i32_8 = arith.constant 16 : i32
    %34 = vector.broadcast %c16_i32_8 : i32 to vector<16x1024xi32>
    %35 = arith.shrui %33, %34 : vector<16x1024xi32>
    %36 = arith.xori %33, %35 : vector<16x1024xi32>
    %c8_i32 = arith.constant 8 : i32
    %37 = vector.broadcast %c8_i32 : i32 to vector<16x1024xi32>
    %38 = arith.shrui %36, %37 : vector<16x1024xi32>
    %c5033165_i32 = arith.constant 5033165 : i32
    %39 = vector.broadcast %c5033165_i32 : i32 to vector<16x1024xi32>
    %40 = arith.cmpi sge, %38, %39 : vector<16x1024xi32>
    %cst_9 = arith.constant 1.429690e+00 : bf16
    %41 = vector.broadcast %cst_9 : bf16 to vector<16x1024xbf16>
    %42 = arith.mulf %13, %41 : vector<16x1024xbf16>
    %cst_10 = arith.constant 0.000000e+00 : bf16
    %43 = vector.broadcast %cst_10 : bf16 to vector<16x1024xbf16>
    %44 = arith.select %40, %42, %43 : vector<16x1024xi1>, vector<16x1024xbf16>
    %c0_11 = arith.constant 0 : index
    %c0_12 = arith.constant 0 : index
    %45 = vector.load %arg5[%c0_11, %c0_12] : memref<1024x512xbf16, #tpu.memory_space<vmem>>, vector<1024x512xbf16>
    %cst_13 = arith.constant dense<0.000000e+00> : vector<16x512xf32>
    %46 = tpu.matmul %44, %45, %cst_13 {dimension_numbers = #tpu.dot_dimension_numbers<[1], [0], [0], [1], [0, 0, 1, 1], [], []>} : vector<16x1024xbf16>, vector<1024x512xbf16>, vector<16x512xf32> -> vector<16x512xf32>
    %c0_14 = arith.constant 0 : index
    %c0_15 = arith.constant 0 : index
    %47 = vector.load %arg6[%c0_14, %c0_15] : memref<1x512xf32, #tpu.memory_space<vmem>>, vector<1x512xf32>
    %48 = vector.broadcast %47 : vector<1x512xf32> to vector<16x512xf32>
    %49 = arith.addf %46, %48 : vector<16x512xf32>
    %50 = arith.truncf %49 : vector<16x512xf32> to vector<16x512xbf16>
    %cst_16 = arith.constant 2.001950e-01 : bf16
    %51 = vector.broadcast %cst_16 : bf16 to vector<16x512xbf16>
    %52 = arith.mulf %50, %51 : vector<16x512xbf16>
    %53 = arith.maximumf %50, %52 : vector<16x512xbf16>
    %c2027808484_i32 = arith.constant 2027808484 : i32
    %54 = arith.addi %3, %c2027808484_i32 : i32
    %55 = tpu.iota {dimensions = array<i32: 0>} : vector<16x512xi32>
    %56 = vector.broadcast %54 : i32 to vector<16x512xi32>
    %57 = arith.addi %55, %56 : vector<16x512xi32>
    %58 = tpu.iota {dimensions = array<i32: 1>} : vector<16x512xi32>
    %c-1640531535_i32_17 = arith.constant -1640531535 : i32
    %59 = vector.broadcast %c-1640531535_i32_17 : i32 to vector<16x512xi32>
    %60 = arith.muli %57, %59 : vector<16x512xi32>
    %c-2048144777_i32_18 = arith.constant -2048144777 : i32
    %61 = vector.broadcast %c-2048144777_i32_18 : i32 to vector<16x512xi32>
    %62 = arith.muli %58, %61 : vector<16x512xi32>
    %63 = arith.xori %60, %62 : vector<16x512xi32>
    %c16_i32_19 = arith.constant 16 : i32
    %64 = vector.broadcast %c16_i32_19 : i32 to vector<16x512xi32>
    %65 = arith.shrui %63, %64 : vector<16x512xi32>
    %66 = arith.xori %63, %65 : vector<16x512xi32>
    %c2146121005_i32_20 = arith.constant 2146121005 : i32
    %67 = vector.broadcast %c2146121005_i32_20 : i32 to vector<16x512xi32>
    %68 = arith.muli %66, %67 : vector<16x512xi32>
    %c15_i32_21 = arith.constant 15 : i32
    %69 = vector.broadcast %c15_i32_21 : i32 to vector<16x512xi32>
    %70 = arith.shrui %68, %69 : vector<16x512xi32>
    %71 = arith.xori %68, %70 : vector<16x512xi32>
    %c-2073254261_i32_22 = arith.constant -2073254261 : i32
    %72 = vector.broadcast %c-2073254261_i32_22 : i32 to vector<16x512xi32>
    %73 = arith.muli %71, %72 : vector<16x512xi32>
    %c16_i32_23 = arith.constant 16 : i32
    %74 = vector.broadcast %c16_i32_23 : i32 to vector<16x512xi32>
    %75 = arith.shrui %73, %74 : vector<16x512xi32>
    %76 = arith.xori %73, %75 : vector<16x512xi32>
    %c8_i32_24 = arith.constant 8 : i32
    %77 = vector.broadcast %c8_i32_24 : i32 to vector<16x512xi32>
    %78 = arith.shrui %76, %77 : vector<16x512xi32>
    %c5033165_i32_25 = arith.constant 5033165 : i32
    %79 = vector.broadcast %c5033165_i32_25 : i32 to vector<16x512xi32>
    %80 = arith.cmpi sge, %78, %79 : vector<16x512xi32>
    %cst_26 = arith.constant 1.429690e+00 : bf16
    %81 = vector.broadcast %cst_26 : bf16 to vector<16x512xbf16>
    %82 = arith.mulf %53, %81 : vector<16x512xbf16>
    %cst_27 = arith.constant 0.000000e+00 : bf16
    %83 = vector.broadcast %cst_27 : bf16 to vector<16x512xbf16>
    %84 = arith.select %80, %82, %83 : vector<16x512xi1>, vector<16x512xbf16>
    %c0_28 = arith.constant 0 : index
    %c0_29 = arith.constant 0 : index
    %85 = vector.load %arg7[%c0_28, %c0_29] : memref<512x256xbf16, #tpu.memory_space<vmem>>, vector<512x256xbf16>
    %cst_30 = arith.constant dense<0.000000e+00> : vector<16x256xf32>
    %86 = tpu.matmul %84, %85, %cst_30 {dimension_numbers = #tpu.dot_dimension_numbers<[1], [0], [0], [1], [0, 0, 1, 1], [], []>} : vector<16x512xbf16>, vector<512x256xbf16>, vector<16x256xf32> -> vector<16x256xf32>
    %c0_31 = arith.constant 0 : index
    %c0_32 = arith.constant 0 : index
    %87 = vector.load %arg8[%c0_31, %c0_32] : memref<1x256xf32, #tpu.memory_space<vmem>>, vector<1x256xf32>
    %88 = vector.broadcast %87 : vector<1x256xf32> to vector<16x256xf32>
    %89 = arith.addf %86, %88 : vector<16x256xf32>
    %90 = arith.truncf %89 : vector<16x256xf32> to vector<16x256xbf16>
    %cst_33 = arith.constant 2.001950e-01 : bf16
    %91 = vector.broadcast %cst_33 : bf16 to vector<16x256xbf16>
    %92 = arith.mulf %90, %91 : vector<16x256xbf16>
    %93 = arith.maximumf %90, %92 : vector<16x256xbf16>
    %c-1253254570_i32 = arith.constant -1253254570 : i32
    %94 = arith.addi %3, %c-1253254570_i32 : i32
    %95 = tpu.iota {dimensions = array<i32: 0>} : vector<16x256xi32>
    %96 = vector.broadcast %94 : i32 to vector<16x256xi32>
    %97 = arith.addi %95, %96 : vector<16x256xi32>
    %98 = tpu.iota {dimensions = array<i32: 1>} : vector<16x256xi32>
    %c-1640531535_i32_34 = arith.constant -1640531535 : i32
    %99 = vector.broadcast %c-1640531535_i32_34 : i32 to vector<16x256xi32>
    %100 = arith.muli %97, %99 : vector<16x256xi32>
    %c-2048144777_i32_35 = arith.constant -2048144777 : i32
    %101 = vector.broadcast %c-2048144777_i32_35 : i32 to vector<16x256xi32>
    %102 = arith.muli %98, %101 : vector<16x256xi32>
    %103 = arith.xori %100, %102 : vector<16x256xi32>
    %c16_i32_36 = arith.constant 16 : i32
    %104 = vector.broadcast %c16_i32_36 : i32 to vector<16x256xi32>
    %105 = arith.shrui %103, %104 : vector<16x256xi32>
    %106 = arith.xori %103, %105 : vector<16x256xi32>
    %c2146121005_i32_37 = arith.constant 2146121005 : i32
    %107 = vector.broadcast %c2146121005_i32_37 : i32 to vector<16x256xi32>
    %108 = arith.muli %106, %107 : vector<16x256xi32>
    %c15_i32_38 = arith.constant 15 : i32
    %109 = vector.broadcast %c15_i32_38 : i32 to vector<16x256xi32>
    %110 = arith.shrui %108, %109 : vector<16x256xi32>
    %111 = arith.xori %108, %110 : vector<16x256xi32>
    %c-2073254261_i32_39 = arith.constant -2073254261 : i32
    %112 = vector.broadcast %c-2073254261_i32_39 : i32 to vector<16x256xi32>
    %113 = arith.muli %111, %112 : vector<16x256xi32>
    %c16_i32_40 = arith.constant 16 : i32
    %114 = vector.broadcast %c16_i32_40 : i32 to vector<16x256xi32>
    %115 = arith.shrui %113, %114 : vector<16x256xi32>
    %116 = arith.xori %113, %115 : vector<16x256xi32>
    %c8_i32_41 = arith.constant 8 : i32
    %117 = vector.broadcast %c8_i32_41 : i32 to vector<16x256xi32>
    %118 = arith.shrui %116, %117 : vector<16x256xi32>
    %c5033165_i32_42 = arith.constant 5033165 : i32
    %119 = vector.broadcast %c5033165_i32_42 : i32 to vector<16x256xi32>
    %120 = arith.cmpi sge, %118, %119 : vector<16x256xi32>
    %cst_43 = arith.constant 1.429690e+00 : bf16
    %121 = vector.broadcast %cst_43 : bf16 to vector<16x256xbf16>
    %122 = arith.mulf %93, %121 : vector<16x256xbf16>
    %cst_44 = arith.constant 0.000000e+00 : bf16
    %123 = vector.broadcast %cst_44 : bf16 to vector<16x256xbf16>
    %124 = arith.select %120, %122, %123 : vector<16x256xi1>, vector<16x256xbf16>
    %c0_45 = arith.constant 0 : index
    %c0_46 = arith.constant 0 : index
    %125 = vector.load %arg9[%c0_45, %c0_46] : memref<256x128xbf16, #tpu.memory_space<vmem>>, vector<256x128xbf16>
    %cst_47 = arith.constant dense<0.000000e+00> : vector<16x128xf32>
    %126 = tpu.matmul %124, %125, %cst_47 {dimension_numbers = #tpu.dot_dimension_numbers<[1], [0], [0], [1], [0, 0, 1, 1], [], []>} : vector<16x256xbf16>, vector<256x128xbf16>, vector<16x128xf32> -> vector<16x128xf32>
    %c0_48 = arith.constant 0 : index
    %c0_49 = arith.constant 0 : index
    %127 = vector.load %arg10[%c0_48, %c0_49] : memref<1x128xf32, #tpu.memory_space<vmem>>, vector<1x128xf32>
    %128 = vector.broadcast %127 : vector<1x128xf32> to vector<16x128xf32>
    %129 = arith.addf %126, %128 : vector<16x128xf32>
    %130 = arith.truncf %129 : vector<16x128xf32> to vector<16x128xbf16>
    %c0_50 = arith.constant 0 : index
    %c0_51 = arith.constant 0 : index
    %131 = vector.load %arg11[%c0_50, %c0_51] : memref<16x128xbf16, #tpu.memory_space<vmem>>, vector<16x128xbf16>
    tpu.vector_store %arg11[%c0_50, %c0_51], %130 {strides = array<i32>} : memref<16x128xbf16, #tpu.memory_space<vmem>>, vector<16x128xbf16>,
    return
  }
  func.func @transform_0(%arg0: i32) -> i32 {
    %c0_i32 = arith.constant 0 : i32
    %c0_i32_0 = arith.constant 0 : i32
    return %c0_i32 : i32
  }
  func.func @transform_1(%arg0: i32) -> (i32, i32) {
    %c0_i32 = arith.constant 0 : i32
    %c0_i32_0 = arith.constant 0 : i32
    return %arg0, %c0_i32 : i32, i32
  }
  func.func @transform_2(%arg0: i32) -> (i32, i32) {
    %c0_i32 = arith.constant 0 : i32
    %c0_i32_0 = arith.constant 0 : i32
    %c0_i32_1 = arith.constant 0 : i32
    return %c0_i32, %c0_i32_0 : i32, i32
  }
  func.func @transform_3(%arg0: i32) -> (i32, i32) {
    %c0_i32 = arith.constant 0 : i32
    %c0_i32_0 = arith.constant 0 : i32
    %c0_i32_1 = arith.constant 0 : i32
    return %c0_i32, %c0_i32_0 : i32, i32
  }
  func.func @transform_4(%arg0: i32) -> (i32, i32) {
    %c0_i32 = arith.constant 0 : i32
    %c0_i32_0 = arith.constant 0 : i32
    %c0_i32_1 = arith.constant 0 : i32
    return %c0_i32, %c0_i32_0 : i32, i32
  }
  func.func @transform_5(%arg0: i32) -> (i32, i32) {
    %c0_i32 = arith.constant 0 : i32
    %c0_i32_0 = arith.constant 0 : i32
    %c0_i32_1 = arith.constant 0 : i32
    return %c0_i32, %c0_i32_0 : i32, i32
  }
  func.func @transform_6(%arg0: i32) -> (i32, i32) {
    %c0_i32 = arith.constant 0 : i32
    %c0_i32_0 = arith.constant 0 : i32
    %c0_i32_1 = arith.constant 0 : i32
    return %c0_i32, %c0_i32_0 : i32, i32
  }
  func.func @transform_7(%arg0: i32) -> (i32, i32) {
    %c0_i32 = arith.constant 0 : i32
    %c0_i32_0 = arith.constant 0 : i32
    %c0_i32_1 = arith.constant 0 : i32
    return %c0_i32, %c0_i32_0 : i32, i32
  }
  func.func @transform_8(%arg0: i32) -> (i32, i32) {
    %c0_i32 = arith.constant 0 : i32
    %c0_i32_0 = arith.constant 0 : i32
    %c0_i32_1 = arith.constant 0 : i32
    return %c0_i32, %c0_i32_0 : i32, i32
  }
  func.func @transform_9(%arg0: i32) -> (i32, i32) {
    %c0_i32 = arith.constant 0 : i32
    %c0_i32_0 = arith.constant 0 : i32
    %c0_i32_1 = arith.constant 0 : i32
    return %c0_i32, %c0_i32_0 : i32, i32
  }
  func.func @transform_10(%arg0: i32) -> (i32, i32) {
    %c0_i32 = arith.constant 0 : i32
    %c0_i32_0 = arith.constant 0 : i32
    return %arg0, %c0_i32 : i32, i32
  }
}

</mosaic_0001>

<llo_original>
// kernel: tpu_custom_call.1
$region0: #{tpu_custom_call.1}
  #allocation0 [shape = 'u32[]', space=smem, size = 0x4, offset = 0x4, fixed_abs, tag = 'smem constant byte address 0x4 - core index']
  #allocation1 [shape = 'u32[72,128]{1,0:T(1,128)}', space=vmem, size = 0x9000, scoped, tag = 'internal scratch']
  #allocation2 [shape = 's32[1]{0:T(128)S(6)}', space=smem, size = 0x200, scoped, tag = 'scoped memory for tpu_custom_call.1']
  %s0 = inlined_call_operand.<no memory space> [shape: s32[1], index: 0, kind: input, shape index: {}]
  %s1 = inlined_call_operand.hbm [shape: bf16[16,784], index: 1, kind: input, shape index: {}]
  %s2 = inlined_call_operand.hbm [shape: bf16[784,1024], index: 2, kind: input, shape index: {}]
  %s3 = inlined_call_operand.hbm [shape: f32[1,1024], index: 3, kind: input, shape index: {}]
  %s4 = inlined_call_operand.hbm [shape: bf16[1024,512], index: 4, kind: input, shape index: {}]
  %s5 = inlined_call_operand.hbm [shape: f32[1,512], index: 5, kind: input, shape index: {}]
  %s6 = inlined_call_operand.hbm [shape: bf16[512,256], index: 6, kind: input, shape index: {}]
  %s7 = inlined_call_operand.hbm [shape: f32[1,256], index: 7, kind: input, shape index: {}]
  %s8 = inlined_call_operand.hbm [shape: bf16[256,128], index: 8, kind: input, shape index: {}]
  %s9 = inlined_call_operand.hbm [shape: f32[1,128], index: 9, kind: input, shape index: {}]
  %s10 = inlined_call_operand.hbm [shape: bf16[16,128], index: 10, kind: output, shape index: {}]
  %s11 = sld [smem:[#allocation0]]
  $region86: #{tpu_custom_call.1} parent=0
    _
  %s13 = ssub.s32 1, %s11
  %s14 = scalar_select 0, %s13, %s11
  %15 = sst [smem:[#allocation2]] %s0
  $region1: #{tpu_custom_call.1} parent=0
    #allocation3 [shape = 'u8[28672]{0}', space=vmem, size = 0x7000, scoped, tag = 'input window, operand 1, single buffered']
    #allocation4 [shape = 's32[1]{0}', space=sflag, size = 0x4, scoped, tag = 'scoped memory for tpu_custom_call.1']
    #allocation5 [shape = 's32[1]{0}', space=sflag, size = 0x4, scoped, tag = 'scoped memory for tpu_custom_call.1']
    #allocation6 [shape = 'u8[1605632]{0}', space=vmem, size = 0x188000, scoped, tag = 'input window, operand 2, single buffered']
    #allocation7 [shape = 's32[1]{0}', space=sflag, size = 0x4, scoped, tag = 'scoped memory for tpu_custom_call.1']
    #allocation8 [shape = 'u8[4096]{0}', space=vmem, size = 0x1000, scoped, tag = 'input window, operand 3, single buffered']
    #allocation9 [shape = 'u8[1048576]{0}', space=vmem, size = 0x100000, scoped, tag = 'input window, operand 4, single buffered']
    #allocation10 [shape = 's32[1]{0}', space=sflag, size = 0x4, scoped, tag = 'scoped memory for tpu_custom_call.1']
    #allocation11 [shape = 'u8[2048]{0}', space=vmem, size = 0x800, scoped, tag = 'input window, operand 5, single buffered']
    #allocation12 [shape = 'u8[262144]{0}', space=vmem, size = 0x40000, scoped, tag = 'input window, operand 6, single buffered']
    #allocation13 [shape = 's32[1]{0}', space=sflag, size = 0x4, scoped, tag = 'scoped memory for tpu_custom_call.1']
    #allocation14 [shape = 'u8[1024]{0}', space=vmem, size = 0x400, scoped, tag = 'input window, operand 7, single buffered']
    #allocation15 [shape = 'u8[65536]{0}', space=vmem, size = 0x10000, scoped, tag = 'input window, operand 8, single buffered']
    #allocation16 [shape = 's32[1]{0}', space=sflag, size = 0x4, scoped, tag = 'scoped memory for tpu_custom_call.1']
    #allocation17 [shape = 'u8[512]{0}', space=vmem, size = 0x400, scoped, tag = 'input window, operand 9, single buffered']
    #allocation18 [shape = 'u8[4096]{0}', space=vmem, size = 0x1000, scoped, tag = 'output window, operand 0, single buffered']
    %16 = vsyncpa [#allocation4], 0
    %17 = vsyncpa [#allocation7], 0
    %18 = vsyncpa [#allocation10], 0
    %19 = vsyncpa [#allocation13], 0
    %20 = vsyncpa [#allocation16], 0
    %21 = vsyncpa [#allocation5], 0
    // Predicated region
    $region2: #{tpu_custom_call.1} parent=1 // pred_check
      _
    $region3: #{tpu_custom_call.1} parent=1 // pred_check_branch
      %23 = sbr.rel (0) target = $region5
    $region4: #{tpu_custom_call.1} parent=1 // pred_region
      _
    $region5: #{tpu_custom_call.1} parent=1 // pred_fallthru
      _
    // Predicated region
    $region6: #{tpu_custom_call.1} parent=1 // pred_check
      _
    $region7: #{tpu_custom_call.1} parent=1 // pred_check_branch
      %25 = sbr.rel (0) target = $region9
    $region8: #{tpu_custom_call.1} parent=1 // pred_region
      %27 = vsyncadd [#allocation4], 0
      %s28 = sshll.u32 %s1, 4
      %s29 = int_to_ptr.hbm [resolvable:$true] %s28
      %s30 = sshll.u32 [#allocation3], 4
      %s31 = int_to_ptr.vmem [resolvable:$true] %s30
      %36 = dma.hbm_to_vmem [thread:$0]  %s29, 896, %s31, [#allocation4], 448, 448, 28
    $region9: #{tpu_custom_call.1} parent=1 // pred_fallthru
      _
    // Predicated region
    $region10: #{tpu_custom_call.1} parent=1 // pred_check
      _
    $region11: #{tpu_custom_call.1} parent=1 // pred_check_branch
      %38 = sbr.rel (0) target = $region13
    $region12: #{tpu_custom_call.1} parent=1 // pred_region
      %40 = vsyncadd [#allocation7], 0
      %s41 = sshll.u32 %s2, 4
      %s42 = int_to_ptr.hbm [resolvable:$true] %s41
      %s43 = sshll.u32 [#allocation6], 4
      %s44 = int_to_ptr.vmem [resolvable:$true] %s43
      %49 = dma.hbm_to_vmem [thread:$0]  %s42, 50176, %s44, [#allocation7], 512, 512, 32
    $region13: #{tpu_custom_call.1} parent=1 // pred_fallthru
      _
    // Predicated region
    $region14: #{tpu_custom_call.1} parent=1 // pred_check
      _
    $region15: #{tpu_custom_call.1} parent=1 // pred_check_branch
      %51 = sbr.rel (0) target = $region17
    $region16: #{tpu_custom_call.1} parent=1 // pred_region
      %53 = vsyncadd [#allocation7], 0
      %s55 = sshll.u32 %s3, 4
      %s56 = int_to_ptr.hbm [resolvable:$true] %s55
      %s57 = sshll.u32 [#allocation8], 4
      %s58 = int_to_ptr.vmem [resolvable:$true] %s57
      %60 = dma.hbm_to_vmem [thread:$0]  %s56, 128, %s58, [#allocation7]
    $region17: #{tpu_custom_call.1} parent=1 // pred_fallthru
      _
    // Predicated region
    $region18: #{tpu_custom_call.1} parent=1 // pred_check
      _
    $region19: #{tpu_custom_call.1} parent=1 // pred_check_branch
      %62 = sbr.rel (0) target = $region21
    $region20: #{tpu_custom_call.1} parent=1 // pred_region
      %64 = vsyncadd [#allocation10], 0
      %s65 = sshll.u32 %s4, 4
      %s66 = int_to_ptr.hbm [resolvable:$true] %s65
      %s67 = sshll.u32 [#allocation9], 4
      %s68 = int_to_ptr.vmem [resolvable:$true] %s67
      %73 = dma.hbm_to_vmem [thread:$0]  %s66, 32768, %s68, [#allocation10], 256, 256, 16
    $region21: #{tpu_custom_call.1} parent=1 // pred_fallthru
      _
    // Predicated region
    $region22: #{tpu_custom_call.1} parent=1 // pred_check
      _
    $region23: #{tpu_custom_call.1} parent=1 // pred_check_branch
      %75 = sbr.rel (0) target = $region25
    $region24: #{tpu_custom_call.1} parent=1 // pred_region
      %77 = vsyncadd [#allocation10], 0
      %s79 = sshll.u32 %s5, 4
      %s80 = int_to_ptr.hbm [resolvable:$true] %s79
      %s81 = sshll.u32 [#allocation11], 4
      %s82 = int_to_ptr.vmem [resolvable:$true] %s81
      %84 = dma.hbm_to_vmem [thread:$0]  %s80, 64, %s82, [#allocation10]
    $region25: #{tpu_custom_call.1} parent=1 // pred_fallthru
      _
    // Predicated region
    $region26: #{tpu_custom_call.1} parent=1 // pred_check
      _
    $region27: #{tpu_custom_call.1} parent=1 // pred_check_branch
      %86 = sbr.rel (0) target = $region29
    $region28: #{tpu_custom_call.1} parent=1 // pred_region
      %88 = vsyncadd [#allocation13], 0
      %s89 = sshll.u32 %s6, 4
      %s90 = int_to_ptr.hbm [resolvable:$true] %s89
      %s91 = sshll.u32 [#allocation12], 4
      %s92 = int_to_ptr.vmem [resolvable:$true] %s91
      %97 = dma.hbm_to_vmem [thread:$0]  %s90, 8192, %s92, [#allocation13], 128, 128, 8
    $region29: #{tpu_custom_call.1} parent=1 // pred_fallthru
      _
    // Predicated region
    $region30: #{tpu_custom_call.1} parent=1 // pred_check
      _
    $region31: #{tpu_custom_call.1} parent=1 // pred_check_branch
      %99 = sbr.rel (0) target = $region33
    $region32: #{tpu_custom_call.1} parent=1 // pred_region
      %101 = vsyncadd [#allocation13], 0
      %s103 = sshll.u32 %s7, 4
      %s104 = int_to_ptr.hbm [resolvable:$true] %s103
      %s105 = sshll.u32 [#allocation14], 4
      %s106 = int_to_ptr.vmem [resolvable:$true] %s105
      %108 = dma.hbm_to_vmem [thread:$0]  %s104, 32, %s106, [#allocation13]
    $region33: #{tpu_custom_call.1} parent=1 // pred_fallthru
      _
    // Predicated region
    $region34: #{tpu_custom_call.1} parent=1 // pred_check
      _
    $region35: #{tpu_custom_call.1} parent=1 // pred_check_branch
      %110 = sbr.rel (0) target = $region37
    $region36: #{tpu_custom_call.1} parent=1 // pred_region
      %112 = vsyncadd [#allocation16], 0
      %s113 = sshll.u32 %s8, 4
      %s114 = int_to_ptr.hbm [resolvable:$true] %s113
      %s115 = sshll.u32 [#allocation15], 4
      %s116 = int_to_ptr.vmem [resolvable:$true] %s115
      %121 = dma.hbm_to_vmem [thread:$0]  %s114, 2048, %s116, [#allocation16], 64, 64, 4
    $region37: #{tpu_custom_call.1} parent=1 // pred_fallthru
      _
    // Predicated region
    $region38: #{tpu_custom_call.1} parent=1 // pred_check
      _
    $region39: #{tpu_custom_call.1} parent=1 // pred_check_branch
      %123 = sbr.rel (0) target = $region41
    $region40: #{tpu_custom_call.1} parent=1 // pred_region
      %125 = vsyncadd [#allocation16], 0
      %s127 = sshll.u32 %s9, 4
      %s128 = int_to_ptr.hbm [resolvable:$true] %s127
      %s129 = sshll.u32 [#allocation17], 4
      %s130 = int_to_ptr.vmem [resolvable:$true] %s129
      %132 = dma.hbm_to_vmem [thread:$0]  %s128, 16, %s130, [#allocation16]
    $region41: #{tpu_custom_call.1} parent=1 // pred_fallthru
      _
    // Predicated region
    $region42: #{tpu_custom_call.1} parent=1 // pred_check
      _
    $region43: #{tpu_custom_call.1} parent=1 // pred_check_branch
      %134 = sbr.rel (0) target = $region45
    $region44: #{tpu_custom_call.1} parent=1 // pred_region
      %136 = dma.done [#allocation4], 896
    $region45: #{tpu_custom_call.1} parent=1 // pred_fallthru
      _
    // Predicated region
    $region46: #{tpu_custom_call.1} parent=1 // pred_check
      _
    $region47: #{tpu_custom_call.1} parent=1 // pred_check_branch
      %138 = sbr.rel (0) target = $region49
    $region48: #{tpu_custom_call.1} parent=1 // pred_region
      %140 = dma.done [#allocation7], 50176
    $region49: #{tpu_custom_call.1} parent=1 // pred_fallthru
      _
    // Predicated region
    $region50: #{tpu_custom_call.1} parent=1 // pred_check
      _
    $region51: #{tpu_custom_call.1} parent=1 // pred_check_branch
      %142 = sbr.rel (0) target = $region53
    $region52: #{tpu_custom_call.1} parent=1 // pred_region
      %144 = dma.done [#allocation7], 128
    $region53: #{tpu_custom_call.1} parent=1 // pred_fallthru
      _
    // Predicated region
    $region54: #{tpu_custom_call.1} parent=1 // pred_check
      _
    $region55: #{tpu_custom_call.1} parent=1 // pred_check_branch
      %146 = sbr.rel (0) target = $region57
    $region56: #{tpu_custom_call.1} parent=1 // pred_region
      %148 = dma.done [#allocation10], 32768
    $region57: #{tpu_custom_call.1} parent=1 // pred_fallthru
      _
    // Predicated region
    $region58: #{tpu_custom_call.1} parent=1 // pred_check
      _
    $region59: #{tpu_custom_call.1} parent=1 // pred_check_branch
      %150 = sbr.rel (0) target = $region61
    $region60: #{tpu_custom_call.1} parent=1 // pred_region
      %152 = dma.done [#allocation10], 64
    $region61: #{tpu_custom_call.1} parent=1 // pred_fallthru
      _
    // Predicated region
    $region62: #{tpu_custom_call.1} parent=1 // pred_check
      _
    $region63: #{tpu_custom_call.1} parent=1 // pred_check_branch
      %154 = sbr.rel (0) target = $region65
    $region64: #{tpu_custom_call.1} parent=1 // pred_region
      %156 = dma.done [#allocation13], 8192
    $region65: #{tpu_custom_call.1} parent=1 // pred_fallthru
      _
    // Predicated region
    $region66: #{tpu_custom_call.1} parent=1 // pred_check
      _
    $region67: #{tpu_custom_call.1} parent=1 // pred_check_branch
      %158 = sbr.rel (0) target = $region69
    $region68: #{tpu_custom_call.1} parent=1 // pred_region
      %160 = dma.done [#allocation13], 32
    $region69: #{tpu_custom_call.1} parent=1 // pred_fallthru
      _
    // Predicated region
    $region70: #{tpu_custom_call.1} parent=1 // pred_check
      _
    $region71: #{tpu_custom_call.1} parent=1 // pred_check_branch
      %162 = sbr.rel (0) target = $region73
    $region72: #{tpu_custom_call.1} parent=1 // pred_region
      %164 = dma.done [#allocation16], 2048
    $region73: #{tpu_custom_call.1} parent=1 // pred_fallthru
      _
    // Predicated region
    $region74: #{tpu_custom_call.1} parent=1 // pred_check
      _
    $region75: #{tpu_custom_call.1} parent=1 // pred_check_branch
      %166 = sbr.rel (0) target = $region77
    $region76: #{tpu_custom_call.1} parent=1 // pred_region
      %168 = dma.done [#allocation16], 16
    $region77: #{tpu_custom_call.1} parent=1 // pred_fallthru
      _
    %s170 = smul.u32 0, 16
    %s171 = sld [smem:[#allocation2]]
    %s172 = smul.u32 %s171, 2654435689
    %s173 = sadd.s32 %s170, %s172
    %v174 = vld [vmem:[#allocation3] sm:$0xff]
    %v175 = vld [vmem:[#allocation3 + $0x8] sm:$0xff]
    %v176 = vld [vmem:[#allocation3 + $0x10] sm:$0xff]
    %v177 = vld [vmem:[#allocation3 + $0x18] sm:$0xf]
    %v178 = vld [vmem:[#allocation3 + $0x1c] sm:$0xff]
    %v179 = vld [vmem:[#allocation3 + $0x24] sm:$0xff]
    %v180 = vld [vmem:[#allocation3 + $0x2c] sm:$0xff]
    %v181 = vld [vmem:[#allocation3 + $0x34] sm:$0xf]
    %v182 = vld [vmem:[#allocation6] sm:$0xff]
    %v183 = vld [vmem:[#allocation6 + $0x8] sm:$0xff]
    %v184 = vld [vmem:[#allocation6 + $0x10] sm:$0xff]
    %v185 = vld [vmem:[#allocation6 + $0x18] sm:$0xff]
    %v186 = vld [vmem:[#allocation6 + $0x20] sm:$0xff]
    %v187 = vld [vmem:[#allocation6 + $0x28] sm:$0xff]
    %v188 = vld [vmem:[#allocation6 + $0x30] sm:$0xff]
    %v189 = vld [vmem:[#allocation6 + $0x38] sm:$0xff]
    %v190 = vld [vmem:[#allocation6 + $0x40] sm:$0xff]
    %v191 = vld [vmem:[#allocation6 + $0x48] sm:$0xff]
    %v192 = vld [vmem:[#allocation6 + $0x50] sm:$0xff]
    %v193 = vld [vmem:[#allocation6 + $0x58] sm:$0xff]
    %v194 = vld [vmem:[#allocation6 + $0x60] sm:$0xff]
    %v195 = vld [vmem:[#allocation6 + $0x68] sm:$0xff]
    %v196 = vld [vmem:[#allocation6 + $0x70] sm:$0xff]
    %v197 = vld [vmem:[#allocation6 + $0x78] sm:$0xff]
    %v198 = vld [vmem:[#allocation6 + $0x80] sm:$0xff]
    %v199 = vld [vmem:[#allocation6 + $0x88] sm:$0xff]
    %v200 = vld [vmem:[#allocation6 + $0x90] sm:$0xff]
    %v201 = vld [vmem:[#allocation6 + $0x98] sm:$0xff]
    %v202 = vld [vmem:[#allocation6 + $0xa0] sm:$0xff]
    %v203 = vld [vmem:[#allocation6 + $0xa8] sm:$0xff]
    %v204 = vld [vmem:[#allocation6 + $0xb0] sm:$0xff]
    %v205 = vld [vmem:[#allocation6 + $0xb8] sm:$0xff]
    %v206 = vld [vmem:[#allocation6 + $0xc0] sm:$0xff]
    %v207 = vld [vmem:[#allocation6 + $0xc8] sm:$0xff]
    %v208 = vld [vmem:[#allocation6 + $0xd0] sm:$0xff]
    %v209 = vld [vmem:[#allocation6 + $0xd8] sm:$0xff]
    %v210 = vld [vmem:[#allocation6 + $0xe0] sm:$0xff]
    %v211 = vld [vmem:[#allocation6 + $0xe8] sm:$0xff]
    %v212 = vld [vmem:[#allocation6 + $0xf0] sm:$0xff]
    %v213 = vld [vmem:[#allocation6 + $0xf8] sm:$0xff]
    %v214 = vld [vmem:[#allocation6 + $0x100] sm:$0xff]
    %v215 = vld [vmem:[#allocation6 + $0x108] sm:$0xff]
    %v216 = vld [vmem:[#allocation6 + $0x110] sm:$0xff]
    %v217 = vld [vmem:[#allocation6 + $0x118] sm:$0xff]
    %v218 = vld [vmem:[#allocation6 + $0x120] sm:$0xff]
    %v219 = vld [vmem:[#allocation6 + $0x128] sm:$0xff]
    %v220 = vld [vmem:[#allocation6 + $0x130] sm:$0xff]
    %v221 = vld [vmem:[#allocation6 + $0x138] sm:$0xff]
    %v222 = vld [vmem:[#allocation6 + $0x140] sm:$0xff]
    %v223 = vld [vmem:[#allocation6 + $0x148] sm:$0xff]
    %v224 = vld [vmem:[#allocation6 + $0x150] sm:$0xff]
    %v225 = vld [vmem:[#allocation6 + $0x158] sm:$0xff]
    %v226 = vld [vmem:[#allocation6 + $0x160] sm:$0xff]
    %v227 = vld [vmem:[#allocation6 + $0x168] sm:$0xff]
    %v228 = vld [vmem:[#allocation6 + $0x170] sm:$0xff]
    %v229 = vld [vmem:[#allocation6 + $0x178] sm:$0xff]
    %v230 = vld [vmem:[#allocation6 + $0x180] sm:$0xff]
    %v231 = vld [vmem:[#allocation6 + $0x188] sm:$0xff]
    %v232 = vld [vmem:[#allocation6 + $0x190] sm:$0xff]
    %v233 = vld [vmem:[#allocation6 + $0x198] sm:$0xff]
    %v234 = vld [vmem:[#allocation6 + $0x1a0] sm:$0xff]
    %v235 = vld [vmem:[#allocation6 + $0x1a8] sm:$0xff]
    %v236 = vld [vmem:[#allocation6 + $0x1b0] sm:$0xff]
    %v237 = vld [vmem:[#allocation6 + $0x1b8] sm:$0xff]
    %v238 = vld [vmem:[#allocation6 + $0x1c0] sm:$0xff]
    %v239 = vld [vmem:[#allocation6 + $0x1c8] sm:$0xff]
    %v240 = vld [vmem:[#allocation6 + $0x1d0] sm:$0xff]
    %v241 = vld [vmem:[#allocation6 + $0x1d8] sm:$0xff]
    %v242 = vld [vmem:[#allocation6 + $0x1e0] sm:$0xff]
    %v243 = vld [vmem:[#allocation6 + $0x1e8] sm:$0xff]
    %v244 = vld [vmem:[#allocation6 + $0x1f0] sm:$0xff]
    %v245 = vld [vmem:[#allocation6 + $0x1f8] sm:$0xff]
    %v246 = vld [vmem:[#allocation6 + $0x200] sm:$0xff]
    %v247 = vld [vmem:[#allocation6 + $0x208] sm:$0xff]
    %v248 = vld [vmem:[#allocation6 + $0x210] sm:$0xff]
    %v249 = vld [vmem:[#allocation6 + $0x218] sm:$0xff]
    %v250 = vld [vmem:[#allocation6 + $0x220] sm:$0xff]
    %v251 = vld [vmem:[#allocation6 + $0x228] sm:$0xff]
    %v252 = vld [vmem:[#allocation6 + $0x230] sm:$0xff]
    %v253 = vld [vmem:[#allocation6 + $0x238] sm:$0xff]
    %v254 = vld [vmem:[#allocation6 + $0x240] sm:$0xff]
    %v255 = vld [vmem:[#allocation6 + $0x248] sm:$0xff]
    %v256 = vld [vmem:[#allocation6 + $0x250] sm:$0xff]
    %v257 = vld [vmem:[#allocation6 + $0x258] sm:$0xff]
    %v258 = vld [vmem:[#allocation6 + $0x260] sm:$0xff]
    %v259 = vld [vmem:[#allocation6 + $0x268] sm:$0xff]
    %v260 = vld [vmem:[#allocation6 + $0x270] sm:$0xff]
    %v261 = vld [vmem:[#allocation6 + $0x278] sm:$0xff]
    %v262 = vld [vmem:[#allocation6 + $0x280] sm:$0xff]
    %v263 = vld [vmem:[#allocation6 + $0x288] sm:$0xff]
    %v264 = vld [vmem:[#allocation6 + $0x290] sm:$0xff]
    %v265 = vld [vmem:[#allocation6 + $0x298] sm:$0xff]
    %v266 = vld [vmem:[#allocation6 + $0x2a0] sm:$0xff]
    %v267 = vld [vmem:[#allocation6 + $0x2a8] sm:$0xff]
    %v268 = vld [vmem:[#allocation6 + $0x2b0] sm:$0xff]
    %v269 = vld [vmem:[#allocation6 + $0x2b8] sm:$0xff]
    %v270 = vld [vmem:[#allocation6 + $0x2c0] sm:$0xff]
    %v271 = vld [vmem:[#allocation6 + $0x2c8] sm:$0xff]
    %v272 = vld [vmem:[#allocation6 + $0x2d0] sm:$0xff]
    %v273 = vld [vmem:[#allocation6 + $0x2d8] sm:$0xff]
    %v274 = vld [vmem:[#allocation6 + $0x2e0] sm:$0xff]
    %v275 = vld [vmem:[#allocation6 + $0x2e8] sm:$0xff]
    %v276 = vld [vmem:[#allocation6 + $0x2f0] sm:$0xff]
    %v277 = vld [vmem:[#allocation6 + $0x2f8] sm:$0xff]
    %v278 = vld [vmem:[#allocation6 + $0x300] sm:$0xff]
    %v279 = vld [vmem:[#allocation6 + $0x308] sm:$0xff]
    %v280 = vld [vmem:[#allocation6 + $0x310] sm:$0xff]
    %v281 = vld [vmem:[#allocation6 + $0x318] sm:$0xff]
    %v282 = vld [vmem:[#allocation6 + $0x320] sm:$0xff]
    %v283 = vld [vmem:[#allocation6 + $0x328] sm:$0xff]
    %v284 = vld [vmem:[#allocation6 + $0x330] sm:$0xff]
    %v285 = vld [vmem:[#allocation6 + $0x338] sm:$0xff]
    %v286 = vld [vmem:[#allocation6 + $0x340] sm:$0xff]
    %v287 = vld [vmem:[#allocation6 + $0x348] sm:$0xff]
    %v288 = vld [vmem:[#allocation6 + $0x350] sm:$0xff]
    %v289 = vld [vmem:[#allocation6 + $0x358] sm:$0xff]
    %v290 = vld [vmem:[#allocation6 + $0x360] sm:$0xff]
    %v291 = vld [vmem:[#allocation6 + $0x368] sm:$0xff]
    %v292 = vld [vmem:[#allocation6 + $0x370] sm:$0xff]
    %v293 = vld [vmem:[#allocation6 + $0x378] sm:$0xff]
    %v294 = vld [vmem:[#allocation6 + $0x380] sm:$0xff]
    %v295 = vld [vmem:[#allocation6 + $0x388] sm:$0xff]
    %v296 = vld [vmem:[#allocation6 + $0x390] sm:$0xff]
    %v297 = vld [vmem:[#allocation6 + $0x398] sm:$0xff]
    %v298 = vld [vmem:[#allocation6 + $0x3a0] sm:$0xff]
    %v299 = vld [vmem:[#allocation6 + $0x3a8] sm:$0xff]
    %v300 = vld [vmem:[#allocation6 + $0x3b0] sm:$0xff]
    %v301 = vld [vmem:[#allocation6 + $0x3b8] sm:$0xff]
    %v302 = vld [vmem:[#allocation6 + $0x3c0] sm:$0xff]
    %v303 = vld [vmem:[#allocation6 + $0x3c8] sm:$0xff]
    %v304 = vld [vmem:[#allocation6 + $0x3d0] sm:$0xff]
    %v305 = vld [vmem:[#allocation6 + $0x3d8] sm:$0xff]
    %v306 = vld [vmem:[#allocation6 + $0x3e0] sm:$0xff]
    %v307 = vld [vmem:[#allocation6 + $0x3e8] sm:$0xff]
    %v308 = vld [vmem:[#allocation6 + $0x3f0] sm:$0xff]
    %v309 = vld [vmem:[#allocation6 + $0x3f8] sm:$0xff]
    %v310 = vld [vmem:[#allocation6 + $0x400] sm:$0xff]
    %v311 = vld [vmem:[#allocation6 + $0x408] sm:$0xff]
    %v312 = vld [vmem:[#allocation6 + $0x410] sm:$0xff]
    %v313 = vld [vmem:[#allocation6 + $0x418] sm:$0xff]
    %v314 = vld [vmem:[#allocation6 + $0x420] sm:$0xff]
    %v315 = vld [vmem:[#allocation6 + $0x428] sm:$0xff]
    %v316 = vld [vmem:[#allocation6 + $0x430] sm:$0xff]
    %v317 = vld [vmem:[#allocation6 + $0x438] sm:$0xff]
    %v318 = vld [vmem:[#allocation6 + $0x440] sm:$0xff]
    %v319 = vld [vmem:[#allocation6 + $0x448] sm:$0xff]
    %v320 = vld [vmem:[#allocation6 + $0x450] sm:$0xff]
    %v321 = vld [vmem:[#allocation6 + $0x458] sm:$0xff]
    %v322 = vld [vmem:[#allocation6 + $0x460] sm:$0xff]
    %v323 = vld [vmem:[#allocation6 + $0x468] sm:$0xff]
    %v324 = vld [vmem:[#allocation6 + $0x470] sm:$0xff]
    %v325 = vld [vmem:[#allocation6 + $0x478] sm:$0xff]
    %v326 = vld [vmem:[#allocation6 + $0x480] sm:$0xff]
    %v327 = vld [vmem:[#allocation6 + $0x488] sm:$0xff]
    %v328 = vld [vmem:[#allocation6 + $0x490] sm:$0xff]
    %v329 = vld [vmem:[#allocation6 + $0x498] sm:$0xff]
    %v330 = vld [vmem:[#allocation6 + $0x4a0] sm:$0xff]
    %v331 = vld [vmem:[#allocation6 + $0x4a8] sm:$0xff]
    %v332 = vld [vmem:[#allocation6 + $0x4b0] sm:$0xff]
    %v333 = vld [vmem:[#allocation6 + $0x4b8] sm:$0xff]
    %v334 = vld [vmem:[#allocation6 + $0x4c0] sm:$0xff]
    %v335 = vld [vmem:[#allocation6 + $0x4c8] sm:$0xff]
    %v336 = vld [vmem:[#allocation6 + $0x4d0] sm:$0xff]
    %v337 = vld [vmem:[#allocation6 + $0x4d8] sm:$0xff]
    %v338 = vld [vmem:[#allocation6 + $0x4e0] sm:$0xff]
    %v339 = vld [vmem:[#allocation6 + $0x4e8] sm:$0xff]
    %v340 = vld [vmem:[#allocation6 + $0x4f0] sm:$0xff]
    %v341 = vld [vmem:[#allocation6 + $0x4f8] sm:$0xff]
    %v342 = vld [vmem:[#allocation6 + $0x500] sm:$0xff]
    %v343 = vld [vmem:[#allocation6 + $0x508] sm:$0xff]
    %v344 = vld [vmem:[#allocation6 + $0x510] sm:$0xff]
    %v345 = vld [vmem:[#allocation6 + $0x518] sm:$0xff]
    %v346 = vld [vmem:[#allocation6 + $0x520] sm:$0xff]
    %v347 = vld [vmem:[#allocation6 + $0x528] sm:$0xff]
    %v348 = vld [vmem:[#allocation6 + $0x530] sm:$0xff]
    %v349 = vld [vmem:[#allocation6 + $0x538] sm:$0xff]
    %v350 = vld [vmem:[#allocation6 + $0x540] sm:$0xff]
    %v351 = vld [vmem:[#allocation6 + $0x548] sm:$0xff]
    %v352 = vld [vmem:[#allocation6 + $0x550] sm:$0xff]
    %v353 = vld [vmem:[#allocation6 + $0x558] sm:$0xff]
    %v354 = vld [vmem:[#allocation6 + $0x560] sm:$0xff]
    %v355 = vld [vmem:[#allocation6 + $0x568] sm:$0xff]
    %v356 = vld [vmem:[#allocation6 + $0x570] sm:$0xff]
    %v357 = vld [vmem:[#allocation6 + $0x578] sm:$0xff]
    %v358 = vld [vmem:[#allocation6 + $0x580] sm:$0xff]
    %v359 = vld [vmem:[#allocation6 + $0x588] sm:$0xff]
    %v360 = vld [vmem:[#allocation6 + $0x590] sm:$0xff]
    %v361 = vld [vmem:[#allocation6 + $0x598] sm:$0xff]
    %v362 = vld [vmem:[#allocation6 + $0x5a0] sm:$0xff]
    %v363 = vld [vmem:[#allocation6 + $0x5a8] sm:$0xff]
    %v364 = vld [vmem:[#allocation6 + $0x5b0] sm:$0xff]
    %v365 = vld [vmem:[#allocation6 + $0x5b8] sm:$0xff]
    %v366 = vld [vmem:[#allocation6 + $0x5c0] sm:$0xff]
    %v367 = vld [vmem:[#allocation6 + $0x5c8] sm:$0xff]
    %v368 = vld [vmem:[#allocation6 + $0x5d0] sm:$0xff]
    %v369 = vld [vmem:[#allocation6 + $0x5d8] sm:$0xff]
    %v370 = vld [vmem:[#allocation6 + $0x5e0] sm:$0xff]
    %v371 = vld [vmem:[#allocation6 + $0x5e8] sm:$0xff]
    %v372 = vld [vmem:[#allocation6 + $0x5f0] sm:$0xff]
    %v373 = vld [vmem:[#allocation6 + $0x5f8] sm:$0xff]
    %v374 = vld [vmem:[#allocation6 + $0x600] sm:$0xff]
    %v375 = vld [vmem:[#allocation6 + $0x608] sm:$0xff]
    %v376 = vld [vmem:[#allocation6 + $0x610] sm:$0xff]
    %v377 = vld [vmem:[#allocation6 + $0x618] sm:$0xff]
    %v378 = vld [vmem:[#allocation6 + $0x620] sm:$0xff]
    %v379 = vld [vmem:[#allocation6 + $0x628] sm:$0xff]
    %v380 = vld [vmem:[#allocation6 + $0x630] sm:$0xff]
    %v381 = vld [vmem:[#allocation6 + $0x638] sm:$0xff]
    %v382 = vld [vmem:[#allocation6 + $0x640] sm:$0xff]
    %v383 = vld [vmem:[#allocation6 + $0x648] sm:$0xff]
    %v384 = vld [vmem:[#allocation6 + $0x650] sm:$0xff]
    %v385 = vld [vmem:[#allocation6 + $0x658] sm:$0xff]
    %v386 = vld [vmem:[#allocation6 + $0x660] sm:$0xff]
    %v387 = vld [vmem:[#allocation6 + $0x668] sm:$0xff]
    %v388 = vld [vmem:[#allocation6 + $0x670] sm:$0xff]
    %v389 = vld [vmem:[#allocation6 + $0x678] sm:$0xff]
    %v390 = vld [vmem:[#allocation6 + $0x680] sm:$0xff]
    %v391 = vld [vmem:[#allocation6 + $0x688] sm:$0xff]
    %v392 = vld [vmem:[#allocation6 + $0x690] sm:$0xff]
    %v393 = vld [vmem:[#allocation6 + $0x698] sm:$0xff]
    %v394 = vld [vmem:[#allocation6 + $0x6a0] sm:$0xff]
    %v395 = vld [vmem:[#allocation6 + $0x6a8] sm:$0xff]
    %v396 = vld [vmem:[#allocation6 + $0x6b0] sm:$0xff]
    %v397 = vld [vmem:[#allocation6 + $0x6b8] sm:$0xff]
    %v398 = vld [vmem:[#allocation6 + $0x6c0] sm:$0xff]
    %v399 = vld [vmem:[#allocation6 + $0x6c8] sm:$0xff]
    %v400 = vld [vmem:[#allocation6 + $0x6d0] sm:$0xff]
    %v401 = vld [vmem:[#allocation6 + $0x6d8] sm:$0xff]
    %v402 = vld [vmem:[#allocation6 + $0x6e0] sm:$0xff]
    %v403 = vld [vmem:[#allocation6 + $0x6e8] sm:$0xff]
    %v404 = vld [vmem:[#allocation6 + $0x6f0] sm:$0xff]
    %v405 = vld [vmem:[#allocation6 + $0x6f8] sm:$0xff]
    %v406 = vld [vmem:[#allocation6 + $0x700] sm:$0xff]
    %v407 = vld [vmem:[#allocation6 + $0x708] sm:$0xff]
    %v408 = vld [vmem:[#allocation6 + $0x710] sm:$0xff]
    %v409 = vld [vmem:[#allocation6 + $0x718] sm:$0xff]
    %v410 = vld [vmem:[#allocation6 + $0x720] sm:$0xff]
    %v411 = vld [vmem:[#allocation6 + $0x728] sm:$0xff]
    %v412 = vld [vmem:[#allocation6 + $0x730] sm:$0xff]
    %v413 = vld [vmem:[#allocation6 + $0x738] sm:$0xff]
    %v414 = vld [vmem:[#allocation6 + $0x740] sm:$0xff]
    %v415 = vld [vmem:[#allocation6 + $0x748] sm:$0xff]
    %v416 = vld [vmem:[#allocation6 + $0x750] sm:$0xff]
    %v417 = vld [vmem:[#allocation6 + $0x758] sm:$0xff]
    %v418 = vld [vmem:[#allocation6 + $0x760] sm:$0xff]
    %v419 = vld [vmem:[#allocation6 + $0x768] sm:$0xff]
    %v420 = vld [vmem:[#allocation6 + $0x770] sm:$0xff]
    %v421 = vld [vmem:[#allocation6 + $0x778] sm:$0xff]
    %v422 = vld [vmem:[#allocation6 + $0x780] sm:$0xff]
    %v423 = vld [vmem:[#allocation6 + $0x788] sm:$0xff]
    %v424 = vld [vmem:[#allocation6 + $0x790] sm:$0xff]
    %v425 = vld [vmem:[#allocation6 + $0x798] sm:$0xff]
    %v426 = vld [vmem:[#allocation6 + $0x7a0] sm:$0xff]
    %v427 = vld [vmem:[#allocation6 + $0x7a8] sm:$0xff]
    %v428 = vld [vmem:[#allocation6 + $0x7b0] sm:$0xff]
    %v429 = vld [vmem:[#allocation6 + $0x7b8] sm:$0xff]
    %v430 = vld [vmem:[#allocation6 + $0x7c0] sm:$0xff]
    %v431 = vld [vmem:[#allocation6 + $0x7c8] sm:$0xff]
    %v432 = vld [vmem:[#allocation6 + $0x7d0] sm:$0xff]
    %v433 = vld [vmem:[#allocation6 + $0x7d8] sm:$0xff]
    %v434 = vld [vmem:[#allocation6 + $0x7e0] sm:$0xff]
    %v435 = vld [vmem:[#allocation6 + $0x7e8] sm:$0xff]
    %v436 = vld [vmem:[#allocation6 + $0x7f0] sm:$0xff]
    %v437 = vld [vmem:[#allocation6 + $0x7f8] sm:$0xff]
    %v438 = vld [vmem:[#allocation6 + $0x800] sm:$0xff]
    %v439 = vld [vmem:[#allocation6 + $0x808] sm:$0xff]
    %v440 = vld [vmem:[#allocation6 + $0x810] sm:$0xff]
    %v441 = vld [vmem:[#allocation6 + $0x818] sm:$0xff]
    %v442 = vld [vmem:[#allocation6 + $0x820] sm:$0xff]
    %v443 = vld [vmem:[#allocation6 + $0x828] sm:$0xff]
    %v444 = vld [vmem:[#allocation6 + $0x830] sm:$0xff]
    %v445 = vld [vmem:[#allocation6 + $0x838] sm:$0xff]
    %v446 = vld [vmem:[#allocation6 + $0x840] sm:$0xff]
    %v447 = vld [vmem:[#allocation6 + $0x848] sm:$0xff]
    %v448 = vld [vmem:[#allocation6 + $0x850] sm:$0xff]
    %v449 = vld [vmem:[#allocation6 + $0x858] sm:$0xff]
    %v450 = vld [vmem:[#allocation6 + $0x860] sm:$0xff]
    %v451 = vld [vmem:[#allocation6 + $0x868] sm:$0xff]
    %v452 = vld [vmem:[#allocation6 + $0x870] sm:$0xff]
    %v453 = vld [vmem:[#allocation6 + $0x878] sm:$0xff]
    %v454 = vld [vmem:[#allocation6 + $0x880] sm:$0xff]
    %v455 = vld [vmem:[#allocation6 + $0x888] sm:$0xff]
    %v456 = vld [vmem:[#allocation6 + $0x890] sm:$0xff]
    %v457 = vld [vmem:[#allocation6 + $0x898] sm:$0xff]
    %v458 = vld [vmem:[#allocation6 + $0x8a0] sm:$0xff]
    %v459 = vld [vmem:[#allocation6 + $0x8a8] sm:$0xff]
    %v460 = vld [vmem:[#allocation6 + $0x8b0] sm:$0xff]
    %v461 = vld [vmem:[#allocation6 + $0x8b8] sm:$0xff]
    %v462 = vld [vmem:[#allocation6 + $0x8c0] sm:$0xff]
    %v463 = vld [vmem:[#allocation6 + $0x8c8] sm:$0xff]
    %v464 = vld [vmem:[#allocation6 + $0x8d0] sm:$0xff]
    %v465 = vld [vmem:[#allocation6 + $0x8d8] sm:$0xff]
    %v466 = vld [vmem:[#allocation6 + $0x8e0] sm:$0xff]
    %v467 = vld [vmem:[#allocation6 + $0x8e8] sm:$0xff]
    %v468 = vld [vmem:[#allocation6 + $0x8f0] sm:$0xff]
    %v469 = vld [vmem:[#allocation6 + $0x8f8] sm:$0xff]
    %v470 = vld [vmem:[#allocation6 + $0x900] sm:$0xff]
    %v471 = vld [vmem:[#allocation6 + $0x908] sm:$0xff]
    %v472 = vld [vmem:[#allocation6 + $0x910] sm:$0xff]
    %v473 = vld [vmem:[#allocation6 + $0x918] sm:$0xff]
    %v474 = vld [vmem:[#allocation6 + $0x920] sm:$0xff]
    %v475 = vld [vmem:[#allocation6 + $0x928] sm:$0xff]
    %v476 = vld [vmem:[#allocation6 + $0x930] sm:$0xff]
    %v477 = vld [vmem:[#allocation6 + $0x938] sm:$0xff]
    %v478 = vld [vmem:[#allocation6 + $0x940] sm:$0xff]
    %v479 = vld [vmem:[#allocation6 + $0x948] sm:$0xff]
    %v480 = vld [vmem:[#allocation6 + $0x950] sm:$0xff]
    %v481 = vld [vmem:[#allocation6 + $0x958] sm:$0xff]
    %v482 = vld [vmem:[#allocation6 + $0x960] sm:$0xff]
    %v483 = vld [vmem:[#allocation6 + $0x968] sm:$0xff]
    %v484 = vld [vmem:[#allocation6 + $0x970] sm:$0xff]
    %v485 = vld [vmem:[#allocation6 + $0x978] sm:$0xff]
    %v486 = vld [vmem:[#allocation6 + $0x980] sm:$0xff]
    %v487 = vld [vmem:[#allocation6 + $0x988] sm:$0xff]
    %v488 = vld [vmem:[#allocation6 + $0x990] sm:$0xff]
    %v489 = vld [vmem:[#allocation6 + $0x998] sm:$0xff]
    %v490 = vld [vmem:[#allocation6 + $0x9a0] sm:$0xff]
    %v491 = vld [vmem:[#allocation6 + $0x9a8] sm:$0xff]
    %v492 = vld [vmem:[#allocation6 + $0x9b0] sm:$0xff]
    %v493 = vld [vmem:[#allocation6 + $0x9b8] sm:$0xff]
    %v494 = vld [vmem:[#allocation6 + $0x9c0] sm:$0xff]
    %v495 = vld [vmem:[#allocation6 + $0x9c8] sm:$0xff]
    %v496 = vld [vmem:[#allocation6 + $0x9d0] sm:$0xff]
    %v497 = vld [vmem:[#allocation6 + $0x9d8] sm:$0xff]
    %v498 = vld [vmem:[#allocation6 + $0x9e0] sm:$0xff]
    %v499 = vld [vmem:[#allocation6 + $0x9e8] sm:$0xff]
    %v500 = vld [vmem:[#allocation6 + $0x9f0] sm:$0xff]
    %v501 = vld [vmem:[#allocation6 + $0x9f8] sm:$0xff]
    %v502 = vld [vmem:[#allocation6 + $0xa00] sm:$0xff]
    %v503 = vld [vmem:[#allocation6 + $0xa08] sm:$0xff]
    %v504 = vld [vmem:[#allocation6 + $0xa10] sm:$0xff]
    %v505 = vld [vmem:[#allocation6 + $0xa18] sm:$0xff]
    %v506 = vld [vmem:[#allocation6 + $0xa20] sm:$0xff]
    %v507 = vld [vmem:[#allocation6 + $0xa28] sm:$0xff]
    %v508 = vld [vmem:[#allocation6 + $0xa30] sm:$0xff]
    %v509 = vld [vmem:[#allocation6 + $0xa38] sm:$0xff]
    %v510 = vld [vmem:[#allocation6 + $0xa40] sm:$0xff]
    %v511 = vld [vmem:[#allocation6 + $0xa48] sm:$0xff]
    %v512 = vld [vmem:[#allocation6 + $0xa50] sm:$0xff]
    %v513 = vld [vmem:[#allocation6 + $0xa58] sm:$0xff]
    %v514 = vld [vmem:[#allocation6 + $0xa60] sm:$0xff]
    %v515 = vld [vmem:[#allocation6 + $0xa68] sm:$0xff]
    %v516 = vld [vmem:[#allocation6 + $0xa70] sm:$0xff]
    %v517 = vld [vmem:[#allocation6 + $0xa78] sm:$0xff]
    %v518 = vld [vmem:[#allocation6 + $0xa80] sm:$0xff]
    %v519 = vld [vmem:[#allocation6 + $0xa88] sm:$0xff]
    %v520 = vld [vmem:[#allocation6 + $0xa90] sm:$0xff]
    %v521 = vld [vmem:[#allocation6 + $0xa98] sm:$0xff]
    %v522 = vld [vmem:[#allocation6 + $0xaa0] sm:$0xff]
    %v523 = vld [vmem:[#allocation6 + $0xaa8] sm:$0xff]
    %v524 = vld [vmem:[#allocation6 + $0xab0] sm:$0xff]
    %v525 = vld [vmem:[#allocation6 + $0xab8] sm:$0xff]
    %v526 = vld [vmem:[#allocation6 + $0xac0] sm:$0xff]
    %v527 = vld [vmem:[#allocation6 + $0xac8] sm:$0xff]
    %v528 = vld [vmem:[#allocation6 + $0xad0] sm:$0xff]
    %v529 = vld [vmem:[#allocation6 + $0xad8] sm:$0xff]
    %v530 = vld [vmem:[#allocation6 + $0xae0] sm:$0xff]
    %v531 = vld [vmem:[#allocation6 + $0xae8] sm:$0xff]
    %v532 = vld [vmem:[#allocation6 + $0xaf0] sm:$0xff]
    %v533 = vld [vmem:[#allocation6 + $0xaf8] sm:$0xff]
    %v534 = vld [vmem:[#allocation6 + $0xb00] sm:$0xff]
    %v535 = vld [vmem:[#allocation6 + $0xb08] sm:$0xff]
    %v536 = vld [vmem:[#allocation6 + $0xb10] sm:$0xff]
    %v537 = vld [vmem:[#allocation6 + $0xb18] sm:$0xff]
    %v538 = vld [vmem:[#allocation6 + $0xb20] sm:$0xff]
    %v539 = vld [vmem:[#allocation6 + $0xb28] sm:$0xff]
    %v540 = vld [vmem:[#allocation6 + $0xb30] sm:$0xff]
    %v541 = vld [vmem:[#allocation6 + $0xb38] sm:$0xff]
    %v542 = vld [vmem:[#allocation6 + $0xb40] sm:$0xff]
    %v543 = vld [vmem:[#allocation6 + $0xb48] sm:$0xff]
    %v544 = vld [vmem:[#allocation6 + $0xb50] sm:$0xff]
    %v545 = vld [vmem:[#allocation6 + $0xb58] sm:$0xff]
    %v546 = vld [vmem:[#allocation6 + $0xb60] sm:$0xff]
    %v547 = vld [vmem:[#allocation6 + $0xb68] sm:$0xff]
    %v548 = vld [vmem:[#allocation6 + $0xb70] sm:$0xff]
    %v549 = vld [vmem:[#allocation6 + $0xb78] sm:$0xff]
    %v550 = vld [vmem:[#allocation6 + $0xb80] sm:$0xff]
    %v551 = vld [vmem:[#allocation6 + $0xb88] sm:$0xff]
    %v552 = vld [vmem:[#allocation6 + $0xb90] sm:$0xff]
    %v553 = vld [vmem:[#allocation6 + $0xb98] sm:$0xff]
    %v554 = vld [vmem:[#allocation6 + $0xba0] sm:$0xff]
    %v555 = vld [vmem:[#allocation6 + $0xba8] sm:$0xff]
    %v556 = vld [vmem:[#allocation6 + $0xbb0] sm:$0xff]
    %v557 = vld [vmem:[#allocation6 + $0xbb8] sm:$0xff]
    %v558 = vld [vmem:[#allocation6 + $0xbc0] sm:$0xff]
    %v559 = vld [vmem:[#allocation6 + $0xbc8] sm:$0xff]
    %v560 = vld [vmem:[#allocation6 + $0xbd0] sm:$0xff]
    %v561 = vld [vmem:[#allocation6 + $0xbd8] sm:$0xff]
    %v562 = vld [vmem:[#allocation6 + $0xbe0] sm:$0xff]
    %v563 = vld [vmem:[#allocation6 + $0xbe8] sm:$0xff]
    %v564 = vld [vmem:[#allocation6 + $0xbf0] sm:$0xff]
    %v565 = vld [vmem:[#allocation6 + $0xbf8] sm:$0xff]
    %v566 = vld [vmem:[#allocation6 + $0xc00] sm:$0xff]
    %v567 = vld [vmem:[#allocation6 + $0xc08] sm:$0xff]
    %v568 = vld [vmem:[#allocation6 + $0xc10] sm:$0xff]
    %v569 = vld [vmem:[#allocation6 + $0xc18] sm:$0xff]
    %v570 = vld [vmem:[#allocation6 + $0xc20] sm:$0xff]
    %v571 = vld [vmem:[#allocation6 + $0xc28] sm:$0xff]
    %v572 = vld [vmem:[#allocation6 + $0xc30] sm:$0xff]
    %v573 = vld [vmem:[#allocation6 + $0xc38] sm:$0xff]
    %v574 = vld [vmem:[#allocation8] sm:$0xff]
    %v576 = vperm.slane %v574, 0
    %v577 = vperm.slane %v574, 1
    %v578 = vperm.slane %v574, 2
    %v579 = vperm.slane %v574, 3
    %v580 = vperm.slane %v574, 4
    %v581 = vperm.slane %v574, 5
    %v582 = vperm.slane %v574, 6
    %v583 = vperm.slane %v574, 7
    %v600 = vunpack.c.l.b16 %v174
    %v601 = vunpack.c.h.b16 %v174
    %v602 = vunpack.c.l.b16 %v175
    %v603 = vunpack.c.h.b16 %v175
    %v604 = vunpack.c.l.b16 %v176
    %v605 = vunpack.c.h.b16 %v176
    %v606 = vunpack.c.l.b16 %v177
    %v607 = vunpack.c.l.b16 %v178
    %v608 = vunpack.c.h.b16 %v178
    %v609 = vunpack.c.l.b16 %v179
    %v610 = vunpack.c.h.b16 %v179
    %v611 = vunpack.c.l.b16 %v180
    %v612 = vunpack.c.h.b16 %v180
    %v613 = vunpack.c.l.b16 %v181
    %v614 = vpack.c.b16 %v607, %v600
    %v615 = vpack.c.b16 %v608, %v601
    %v616 = vpack.c.b16 %v609, %v602
    %v617 = vpack.c.b16 %v610, %v603
    %v618 = vpack.c.b16 %v611, %v604
    %v619 = vpack.c.b16 %v612, %v605
    %v620 = vpack.c.b16 %v613, %v606
    %v1019 = vunpack.c.l.b16 %v182
    %v1020 = vunpack.c.h.b16 %v182
    %v1021 = vunpack.c.l.b16 %v183
    %v1022 = vunpack.c.h.b16 %v183
    %v1023 = vunpack.c.l.b16 %v184
    %v1024 = vunpack.c.h.b16 %v184
    %v1025 = vunpack.c.l.b16 %v185
    %v1026 = vunpack.c.h.b16 %v185
    %v1027 = vunpack.c.l.b16 %v186
    %v1028 = vunpack.c.h.b16 %v186
    %v1029 = vunpack.c.l.b16 %v187
    %v1030 = vunpack.c.h.b16 %v187
    %v1031 = vunpack.c.l.b16 %v188
    %v1032 = vunpack.c.h.b16 %v188
    %v1033 = vunpack.c.l.b16 %v189
    %v1034 = vunpack.c.h.b16 %v189
    %v1035 = vunpack.c.l.b16 %v190
    %v1036 = vunpack.c.h.b16 %v190
    %v1037 = vunpack.c.l.b16 %v191
    %v1038 = vunpack.c.h.b16 %v191
    %v1039 = vunpack.c.l.b16 %v192
    %v1040 = vunpack.c.h.b16 %v192
    %v1041 = vunpack.c.l.b16 %v193
    %v1042 = vunpack.c.h.b16 %v193
    %v1043 = vunpack.c.l.b16 %v194
    %v1044 = vunpack.c.h.b16 %v194
    %v1045 = vunpack.c.l.b16 %v195
    %v1046 = vunpack.c.h.b16 %v195
    %v1047 = vunpack.c.l.b16 %v196
    %v1048 = vunpack.c.h.b16 %v196
    %v1049 = vunpack.c.l.b16 %v197
    %v1050 = vunpack.c.h.b16 %v197
    %v1051 = vunpack.c.l.b16 %v198
    %v1052 = vunpack.c.h.b16 %v198
    %v1053 = vunpack.c.l.b16 %v199
    %v1054 = vunpack.c.h.b16 %v199
    %v1055 = vunpack.c.l.b16 %v200
    %v1056 = vunpack.c.h.b16 %v200
    %v1057 = vunpack.c.l.b16 %v201
    %v1058 = vunpack.c.h.b16 %v201
    %v1059 = vunpack.c.l.b16 %v202
    %v1060 = vunpack.c.h.b16 %v202
    %v1061 = vunpack.c.l.b16 %v203
    %v1062 = vunpack.c.h.b16 %v203
    %v1063 = vunpack.c.l.b16 %v204
    %v1064 = vunpack.c.h.b16 %v204
    %v1065 = vunpack.c.l.b16 %v205
    %v1066 = vunpack.c.h.b16 %v205
    %v1067 = vunpack.c.l.b16 %v206
    %v1068 = vunpack.c.h.b16 %v206
    %v1069 = vunpack.c.l.b16 %v207
    %v1070 = vunpack.c.h.b16 %v207
    %v1071 = vunpack.c.l.b16 %v208
    %v1072 = vunpack.c.h.b16 %v208
    %v1073 = vunpack.c.l.b16 %v209
    %v1074 = vunpack.c.h.b16 %v209
    %v1075 = vunpack.c.l.b16 %v210
    %v1076 = vunpack.c.h.b16 %v210
    %v1077 = vunpack.c.l.b16 %v211
    %v1078 = vunpack.c.h.b16 %v211
    %v1079 = vunpack.c.l.b16 %v212
    %v1080 = vunpack.c.h.b16 %v212
    %v1081 = vunpack.c.l.b16 %v213
    %v1082 = vunpack.c.h.b16 %v213
    %v1083 = vunpack.c.l.b16 %v214
    %v1084 = vunpack.c.h.b16 %v214
    %v1085 = vunpack.c.l.b16 %v215
    %v1086 = vunpack.c.h.b16 %v215
    %v1087 = vunpack.c.l.b16 %v216
    %v1088 = vunpack.c.h.b16 %v216
    %v1089 = vunpack.c.l.b16 %v217
    %v1090 = vunpack.c.h.b16 %v217
    %v1091 = vunpack.c.l.b16 %v218
    %v1092 = vunpack.c.h.b16 %v218
    %v1093 = vunpack.c.l.b16 %v219
    %v1094 = vunpack.c.h.b16 %v219
    %v1095 = vunpack.c.l.b16 %v220
    %v1096 = vunpack.c.h.b16 %v220
    %v1097 = vunpack.c.l.b16 %v221
    %v1098 = vunpack.c.h.b16 %v221
    %v1099 = vunpack.c.l.b16 %v222
    %v1100 = vunpack.c.h.b16 %v222
    %v1101 = vunpack.c.l.b16 %v223
    %v1102 = vunpack.c.h.b16 %v223
    %v1103 = vunpack.c.l.b16 %v224
    %v1104 = vunpack.c.h.b16 %v224
    %v1105 = vunpack.c.l.b16 %v225
    %v1106 = vunpack.c.h.b16 %v225
    %v1107 = vunpack.c.l.b16 %v226
    %v1108 = vunpack.c.h.b16 %v226
    %v1109 = vunpack.c.l.b16 %v227
    %v1110 = vunpack.c.h.b16 %v227
    %v1111 = vunpack.c.l.b16 %v228
    %v1112 = vunpack.c.h.b16 %v228
    %v1113 = vunpack.c.l.b16 %v229
    %v1114 = vunpack.c.h.b16 %v229
    %v1115 = vunpack.c.l.b16 %v230
    %v1116 = vunpack.c.h.b16 %v230
    %v1117 = vunpack.c.l.b16 %v231
    %v1118 = vunpack.c.h.b16 %v231
    %v1119 = vunpack.c.l.b16 %v232
    %v1120 = vunpack.c.h.b16 %v232
    %v1121 = vunpack.c.l.b16 %v233
    %v1122 = vunpack.c.h.b16 %v233
    %v1123 = vunpack.c.l.b16 %v234
    %v1124 = vunpack.c.h.b16 %v234
    %v1125 = vunpack.c.l.b16 %v235
    %v1126 = vunpack.c.h.b16 %v235
    %v1127 = vunpack.c.l.b16 %v236
    %v1128 = vunpack.c.h.b16 %v236
    %v1129 = vunpack.c.l.b16 %v237
    %v1130 = vunpack.c.h.b16 %v237
    %v1131 = vunpack.c.l.b16 %v238
    %v1132 = vunpack.c.h.b16 %v238
    %v1133 = vunpack.c.l.b16 %v239
    %v1134 = vunpack.c.h.b16 %v239
    %v1135 = vunpack.c.l.b16 %v240
    %v1136 = vunpack.c.h.b16 %v240
    %v1137 = vunpack.c.l.b16 %v241
    %v1138 = vunpack.c.h.b16 %v241
    %v1139 = vunpack.c.l.b16 %v242
    %v1140 = vunpack.c.h.b16 %v242
    %v1141 = vunpack.c.l.b16 %v243
    %v1142 = vunpack.c.h.b16 %v243
    %v1143 = vunpack.c.l.b16 %v244
    %v1144 = vunpack.c.h.b16 %v244
    %v1145 = vunpack.c.l.b16 %v245
    %v1146 = vunpack.c.h.b16 %v245
    %v1147 = vunpack.c.l.b16 %v246
    %v1148 = vunpack.c.h.b16 %v246
    %v1149 = vunpack.c.l.b16 %v247
    %v1150 = vunpack.c.h.b16 %v247
    %v1151 = vunpack.c.l.b16 %v248
    %v1152 = vunpack.c.h.b16 %v248
    %v1153 = vunpack.c.l.b16 %v249
    %v1154 = vunpack.c.h.b16 %v249
    %v1155 = vunpack.c.l.b16 %v250
    %v1156 = vunpack.c.h.b16 %v250
    %v1157 = vunpack.c.l.b16 %v251
    %v1158 = vunpack.c.h.b16 %v251
    %v1159 = vunpack.c.l.b16 %v252
    %v1160 = vunpack.c.h.b16 %v252
    %v1161 = vunpack.c.l.b16 %v253
    %v1162 = vunpack.c.h.b16 %v253
    %v1163 = vunpack.c.l.b16 %v254
    %v1164 = vunpack.c.h.b16 %v254
    %v1165 = vunpack.c.l.b16 %v255
    %v1166 = vunpack.c.h.b16 %v255
    %v1167 = vunpack.c.l.b16 %v256
    %v1168 = vunpack.c.h.b16 %v256
    %v1169 = vunpack.c.l.b16 %v257
    %v1170 = vunpack.c.h.b16 %v257
    %v1171 = vunpack.c.l.b16 %v258
    %v1172 = vunpack.c.h.b16 %v258
    %v1173 = vunpack.c.l.b16 %v259
    %v1174 = vunpack.c.h.b16 %v259
    %v1175 = vunpack.c.l.b16 %v260
    %v1176 = vunpack.c.h.b16 %v260
    %v1177 = vunpack.c.l.b16 %v261
    %v1178 = vunpack.c.h.b16 %v261
    %v1179 = vunpack.c.l.b16 %v262
    %v1180 = vunpack.c.h.b16 %v262
    %v1181 = vunpack.c.l.b16 %v263
    %v1182 = vunpack.c.h.b16 %v263
    %v1183 = vunpack.c.l.b16 %v264
    %v1184 = vunpack.c.h.b16 %v264
    %v1185 = vunpack.c.l.b16 %v265
    %v1186 = vunpack.c.h.b16 %v265
    %v1187 = vunpack.c.l.b16 %v266
    %v1188 = vunpack.c.h.b16 %v266
    %v1189 = vunpack.c.l.b16 %v267
    %v1190 = vunpack.c.h.b16 %v267
    %v1191 = vunpack.c.l.b16 %v268
    %v1192 = vunpack.c.h.b16 %v268
    %v1193 = vunpack.c.l.b16 %v269
    %v1194 = vunpack.c.h.b16 %v269
    %v1195 = vunpack.c.l.b16 %v270
    %v1196 = vunpack.c.h.b16 %v270
    %v1197 = vunpack.c.l.b16 %v271
    %v1198 = vunpack.c.h.b16 %v271
    %v1199 = vunpack.c.l.b16 %v272
    %v1200 = vunpack.c.h.b16 %v272
    %v1201 = vunpack.c.l.b16 %v273
    %v1202 = vunpack.c.h.b16 %v273
    %v1203 = vunpack.c.l.b16 %v274
    %v1204 = vunpack.c.h.b16 %v274
    %v1205 = vunpack.c.l.b16 %v275
    %v1206 = vunpack.c.h.b16 %v275
    %v1207 = vunpack.c.l.b16 %v276
    %v1208 = vunpack.c.h.b16 %v276
    %v1209 = vunpack.c.l.b16 %v277
    %v1210 = vunpack.c.h.b16 %v277
    %v1211 = vunpack.c.l.b16 %v278
    %v1212 = vunpack.c.h.b16 %v278
    %v1213 = vunpack.c.l.b16 %v279
    %v1214 = vunpack.c.h.b16 %v279
    %v1215 = vunpack.c.l.b16 %v280
    %v1216 = vunpack.c.h.b16 %v280
    %v1217 = vunpack.c.l.b16 %v281
    %v1218 = vunpack.c.h.b16 %v281
    %v1219 = vunpack.c.l.b16 %v282
    %v1220 = vunpack.c.h.b16 %v282
    %v1221 = vunpack.c.l.b16 %v283
    %v1222 = vunpack.c.h.b16 %v283
    %v1223 = vunpack.c.l.b16 %v284
    %v1224 = vunpack.c.h.b16 %v284
    %v1225 = vunpack.c.l.b16 %v285
    %v1226 = vunpack.c.h.b16 %v285
    %v1227 = vunpack.c.l.b16 %v286
    %v1228 = vunpack.c.h.b16 %v286
    %v1229 = vunpack.c.l.b16 %v287
    %v1230 = vunpack.c.h.b16 %v287
    %v1231 = vunpack.c.l.b16 %v288
    %v1232 = vunpack.c.h.b16 %v288
    %v1233 = vunpack.c.l.b16 %v289
    %v1234 = vunpack.c.h.b16 %v289
    %v1235 = vunpack.c.l.b16 %v290
    %v1236 = vunpack.c.h.b16 %v290
    %v1237 = vunpack.c.l.b16 %v291
    %v1238 = vunpack.c.h.b16 %v291
    %v1239 = vunpack.c.l.b16 %v292
    %v1240 = vunpack.c.h.b16 %v292
    %v1241 = vunpack.c.l.b16 %v293
    %v1242 = vunpack.c.h.b16 %v293
    %v1243 = vunpack.c.l.b16 %v294
    %v1244 = vunpack.c.h.b16 %v294
    %v1245 = vunpack.c.l.b16 %v295
    %v1246 = vunpack.c.h.b16 %v295
    %v1247 = vunpack.c.l.b16 %v296
    %v1248 = vunpack.c.h.b16 %v296
    %v1249 = vunpack.c.l.b16 %v297
    %v1250 = vunpack.c.h.b16 %v297
    %v1251 = vunpack.c.l.b16 %v298
    %v1252 = vunpack.c.h.b16 %v298
    %v1253 = vunpack.c.l.b16 %v299
    %v1254 = vunpack.c.h.b16 %v299
    %v1255 = vunpack.c.l.b16 %v300
    %v1256 = vunpack.c.h.b16 %v300
    %v1257 = vunpack.c.l.b16 %v301
    %v1258 = vunpack.c.h.b16 %v301
    %v1259 = vunpack.c.l.b16 %v302
    %v1260 = vunpack.c.h.b16 %v302
    %v1261 = vunpack.c.l.b16 %v303
    %v1262 = vunpack.c.h.b16 %v303
    %v1263 = vunpack.c.l.b16 %v304
    %v1264 = vunpack.c.h.b16 %v304
    %v1265 = vunpack.c.l.b16 %v305
    %v1266 = vunpack.c.h.b16 %v305
    %v1267 = vunpack.c.l.b16 %v306
    %v1268 = vunpack.c.h.b16 %v306
    %v1269 = vunpack.c.l.b16 %v307
    %v1270 = vunpack.c.h.b16 %v307
    %v1271 = vunpack.c.l.b16 %v308
    %v1272 = vunpack.c.h.b16 %v308
    %v1273 = vunpack.c.l.b16 %v309
    %v1274 = vunpack.c.h.b16 %v309
    %v1275 = vunpack.c.l.b16 %v310
    %v1276 = vunpack.c.h.b16 %v310
    %v1277 = vunpack.c.l.b16 %v311
    %v1278 = vunpack.c.h.b16 %v311
    %v1279 = vunpack.c.l.b16 %v312
    %v1280 = vunpack.c.h.b16 %v312
    %v1281 = vunpack.c.l.b16 %v313
    %v1282 = vunpack.c.h.b16 %v313
    %v1283 = vunpack.c.l.b16 %v314
    %v1284 = vunpack.c.h.b16 %v314
    %v1285 = vunpack.c.l.b16 %v315
    %v1286 = vunpack.c.h.b16 %v315
    %v1287 = vunpack.c.l.b16 %v316
    %v1288 = vunpack.c.h.b16 %v316
    %v1289 = vunpack.c.l.b16 %v317
    %v1290 = vunpack.c.h.b16 %v317
    %v1291 = vunpack.c.l.b16 %v318
    %v1292 = vunpack.c.h.b16 %v318
    %v1293 = vunpack.c.l.b16 %v319
    %v1294 = vunpack.c.h.b16 %v319
    %v1295 = vunpack.c.l.b16 %v320
    %v1296 = vunpack.c.h.b16 %v320
    %v1297 = vunpack.c.l.b16 %v321
    %v1298 = vunpack.c.h.b16 %v321
    %v1299 = vunpack.c.l.b16 %v322
    %v1300 = vunpack.c.h.b16 %v322
    %v1301 = vunpack.c.l.b16 %v323
    %v1302 = vunpack.c.h.b16 %v323
    %v1303 = vunpack.c.l.b16 %v324
    %v1304 = vunpack.c.h.b16 %v324
    %v1305 = vunpack.c.l.b16 %v325
    %v1306 = vunpack.c.h.b16 %v325
    %v1307 = vunpack.c.l.b16 %v326
    %v1308 = vunpack.c.h.b16 %v326
    %v1309 = vunpack.c.l.b16 %v327
    %v1310 = vunpack.c.h.b16 %v327
    %v1311 = vunpack.c.l.b16 %v328
    %v1312 = vunpack.c.h.b16 %v328
    %v1313 = vunpack.c.l.b16 %v329
    %v1314 = vunpack.c.h.b16 %v329
    %v1315 = vunpack.c.l.b16 %v330
    %v1316 = vunpack.c.h.b16 %v330
    %v1317 = vunpack.c.l.b16 %v331
    %v1318 = vunpack.c.h.b16 %v331
    %v1319 = vunpack.c.l.b16 %v332
    %v1320 = vunpack.c.h.b16 %v332
    %v1321 = vunpack.c.l.b16 %v333
    %v1322 = vunpack.c.h.b16 %v333
    %v1323 = vunpack.c.l.b16 %v334
    %v1324 = vunpack.c.h.b16 %v334
    %v1325 = vunpack.c.l.b16 %v335
    %v1326 = vunpack.c.h.b16 %v335
    %v1327 = vunpack.c.l.b16 %v336
    %v1328 = vunpack.c.h.b16 %v336
    %v1329 = vunpack.c.l.b16 %v337
    %v1330 = vunpack.c.h.b16 %v337
    %v1331 = vunpack.c.l.b16 %v338
    %v1332 = vunpack.c.h.b16 %v338
    %v1333 = vunpack.c.l.b16 %v339
    %v1334 = vunpack.c.h.b16 %v339
    %v1335 = vunpack.c.l.b16 %v340
    %v1336 = vunpack.c.h.b16 %v340
    %v1337 = vunpack.c.l.b16 %v341
    %v1338 = vunpack.c.h.b16 %v341
    %v1339 = vunpack.c.l.b16 %v342
    %v1340 = vunpack.c.h.b16 %v342
    %v1341 = vunpack.c.l.b16 %v343
    %v1342 = vunpack.c.h.b16 %v343
    %v1343 = vunpack.c.l.b16 %v344
    %v1344 = vunpack.c.h.b16 %v344
    %v1345 = vunpack.c.l.b16 %v345
    %v1346 = vunpack.c.h.b16 %v345
    %v1347 = vunpack.c.l.b16 %v346
    %v1348 = vunpack.c.h.b16 %v346
    %v1349 = vunpack.c.l.b16 %v347
    %v1350 = vunpack.c.h.b16 %v347
    %v1351 = vunpack.c.l.b16 %v348
    %v1352 = vunpack.c.h.b16 %v348
    %v1353 = vunpack.c.l.b16 %v349
    %v1354 = vunpack.c.h.b16 %v349
    %v1355 = vunpack.c.l.b16 %v350
    %v1356 = vunpack.c.h.b16 %v350
    %v1357 = vunpack.c.l.b16 %v351
    %v1358 = vunpack.c.h.b16 %v351
    %v1359 = vunpack.c.l.b16 %v352
    %v1360 = vunpack.c.h.b16 %v352
    %v1361 = vunpack.c.l.b16 %v353
    %v1362 = vunpack.c.h.b16 %v353
    %v1363 = vunpack.c.l.b16 %v354
    %v1364 = vunpack.c.h.b16 %v354
    %v1365 = vunpack.c.l.b16 %v355
    %v1366 = vunpack.c.h.b16 %v355
    %v1367 = vunpack.c.l.b16 %v356
    %v1368 = vunpack.c.h.b16 %v356
    %v1369 = vunpack.c.l.b16 %v357
    %v1370 = vunpack.c.h.b16 %v357
    %v1371 = vunpack.c.l.b16 %v358
    %v1372 = vunpack.c.h.b16 %v358
    %v1373 = vunpack.c.l.b16 %v359
    %v1374 = vunpack.c.h.b16 %v359
    %v1375 = vunpack.c.l.b16 %v360
    %v1376 = vunpack.c.h.b16 %v360
    %v1377 = vunpack.c.l.b16 %v361
    %v1378 = vunpack.c.h.b16 %v361
    %v1379 = vunpack.c.l.b16 %v362
    %v1380 = vunpack.c.h.b16 %v362
    %v1381 = vunpack.c.l.b16 %v363
    %v1382 = vunpack.c.h.b16 %v363
    %v1383 = vunpack.c.l.b16 %v364
    %v1384 = vunpack.c.h.b16 %v364
    %v1385 = vunpack.c.l.b16 %v365
    %v1386 = vunpack.c.h.b16 %v365
    %v1387 = vunpack.c.l.b16 %v366
    %v1388 = vunpack.c.h.b16 %v366
    %v1389 = vunpack.c.l.b16 %v367
    %v1390 = vunpack.c.h.b16 %v367
    %v1391 = vunpack.c.l.b16 %v368
    %v1392 = vunpack.c.h.b16 %v368
    %v1393 = vunpack.c.l.b16 %v369
    %v1394 = vunpack.c.h.b16 %v369
    %v1395 = vunpack.c.l.b16 %v370
    %v1396 = vunpack.c.h.b16 %v370
    %v1397 = vunpack.c.l.b16 %v371
    %v1398 = vunpack.c.h.b16 %v371
    %v1399 = vunpack.c.l.b16 %v372
    %v1400 = vunpack.c.h.b16 %v372
    %v1401 = vunpack.c.l.b16 %v373
    %v1402 = vunpack.c.h.b16 %v373
    %v1403 = vunpack.c.l.b16 %v374
    %v1404 = vunpack.c.h.b16 %v374
    %v1405 = vunpack.c.l.b16 %v375
    %v1406 = vunpack.c.h.b16 %v375
    %v1407 = vunpack.c.l.b16 %v376
    %v1408 = vunpack.c.h.b16 %v376
    %v1409 = vunpack.c.l.b16 %v377
    %v1410 = vunpack.c.h.b16 %v377
    %v1411 = vunpack.c.l.b16 %v378
    %v1412 = vunpack.c.h.b16 %v378
    %v1413 = vunpack.c.l.b16 %v379
    %v1414 = vunpack.c.h.b16 %v379
    %v1415 = vunpack.c.l.b16 %v380
    %v1416 = vunpack.c.h.b16 %v380
    %v1417 = vunpack.c.l.b16 %v381
    %v1418 = vunpack.c.h.b16 %v381
    %v1419 = vunpack.c.l.b16 %v382
    %v1420 = vunpack.c.h.b16 %v382
    %v1421 = vunpack.c.l.b16 %v383
    %v1422 = vunpack.c.h.b16 %v383
    %v1423 = vunpack.c.l.b16 %v384
    %v1424 = vunpack.c.h.b16 %v384
    %v1425 = vunpack.c.l.b16 %v385
    %v1426 = vunpack.c.h.b16 %v385
    %v1427 = vunpack.c.l.b16 %v386
    %v1428 = vunpack.c.h.b16 %v386
    %v1429 = vunpack.c.l.b16 %v387
    %v1430 = vunpack.c.h.b16 %v387
    %v1431 = vunpack.c.l.b16 %v388
    %v1432 = vunpack.c.h.b16 %v388
    %v1433 = vunpack.c.l.b16 %v389
    %v1434 = vunpack.c.h.b16 %v389
    %v1435 = vunpack.c.l.b16 %v390
    %v1436 = vunpack.c.h.b16 %v390
    %v1437 = vunpack.c.l.b16 %v391
    %v1438 = vunpack.c.h.b16 %v391
    %v1439 = vunpack.c.l.b16 %v392
    %v1440 = vunpack.c.h.b16 %v392
    %v1441 = vunpack.c.l.b16 %v393
    %v1442 = vunpack.c.h.b16 %v393
    %v1443 = vunpack.c.l.b16 %v394
    %v1444 = vunpack.c.h.b16 %v394
    %v1445 = vunpack.c.l.b16 %v395
    %v1446 = vunpack.c.h.b16 %v395
    %v1447 = vunpack.c.l.b16 %v396
    %v1448 = vunpack.c.h.b16 %v396
    %v1449 = vunpack.c.l.b16 %v397
    %v1450 = vunpack.c.h.b16 %v397
    %v1451 = vunpack.c.l.b16 %v398
    %v1452 = vunpack.c.h.b16 %v398
    %v1453 = vunpack.c.l.b16 %v399
    %v1454 = vunpack.c.h.b16 %v399
    %v1455 = vunpack.c.l.b16 %v400
    %v1456 = vunpack.c.h.b16 %v400
    %v1457 = vunpack.c.l.b16 %v401
    %v1458 = vunpack.c.h.b16 %v401
    %v1459 = vunpack.c.l.b16 %v402
    %v1460 = vunpack.c.h.b16 %v402
    %v1461 = vunpack.c.l.b16 %v403
    %v1462 = vunpack.c.h.b16 %v403
    %v1463 = vunpack.c.l.b16 %v404
    %v1464 = vunpack.c.h.b16 %v404
    %v1465 = vunpack.c.l.b16 %v405
    %v1466 = vunpack.c.h.b16 %v405
    %v1467 = vunpack.c.l.b16 %v406
    %v1468 = vunpack.c.h.b16 %v406
    %v1469 = vunpack.c.l.b16 %v407
    %v1470 = vunpack.c.h.b16 %v407
    %v1471 = vunpack.c.l.b16 %v408
    %v1472 = vunpack.c.h.b16 %v408
    %v1473 = vunpack.c.l.b16 %v409
    %v1474 = vunpack.c.h.b16 %v409
    %v1475 = vunpack.c.l.b16 %v410
    %v1476 = vunpack.c.h.b16 %v410
    %v1477 = vunpack.c.l.b16 %v411
    %v1478 = vunpack.c.h.b16 %v411
    %v1479 = vunpack.c.l.b16 %v412
    %v1480 = vunpack.c.h.b16 %v412
    %v1481 = vunpack.c.l.b16 %v413
    %v1482 = vunpack.c.h.b16 %v413
    %v1483 = vunpack.c.l.b16 %v414
    %v1484 = vunpack.c.h.b16 %v414
    %v1485 = vunpack.c.l.b16 %v415
    %v1486 = vunpack.c.h.b16 %v415
    %v1487 = vunpack.c.l.b16 %v416
    %v1488 = vunpack.c.h.b16 %v416
    %v1489 = vunpack.c.l.b16 %v417
    %v1490 = vunpack.c.h.b16 %v417
    %v1491 = vunpack.c.l.b16 %v418
    %v1492 = vunpack.c.h.b16 %v418
    %v1493 = vunpack.c.l.b16 %v419
    %v1494 = vunpack.c.h.b16 %v419
    %v1495 = vunpack.c.l.b16 %v420
    %v1496 = vunpack.c.h.b16 %v420
    %v1497 = vunpack.c.l.b16 %v421
    %v1498 = vunpack.c.h.b16 %v421
    %v1499 = vunpack.c.l.b16 %v422
    %v1500 = vunpack.c.h.b16 %v422
    %v1501 = vunpack.c.l.b16 %v423
    %v1502 = vunpack.c.h.b16 %v423
    %v1503 = vunpack.c.l.b16 %v424
    %v1504 = vunpack.c.h.b16 %v424
    %v1505 = vunpack.c.l.b16 %v425
    %v1506 = vunpack.c.h.b16 %v425
    %v1507 = vunpack.c.l.b16 %v426
    %v1508 = vunpack.c.h.b16 %v426
    %v1509 = vunpack.c.l.b16 %v427
    %v1510 = vunpack.c.h.b16 %v427
    %v1511 = vunpack.c.l.b16 %v428
    %v1512 = vunpack.c.h.b16 %v428
    %v1513 = vunpack.c.l.b16 %v429
    %v1514 = vunpack.c.h.b16 %v429
    %v1515 = vunpack.c.l.b16 %v430
    %v1516 = vunpack.c.h.b16 %v430
    %v1517 = vunpack.c.l.b16 %v431
    %v1518 = vunpack.c.h.b16 %v431
    %v1519 = vunpack.c.l.b16 %v432
    %v1520 = vunpack.c.h.b16 %v432
    %v1521 = vunpack.c.l.b16 %v433
    %v1522 = vunpack.c.h.b16 %v433
    %v1523 = vunpack.c.l.b16 %v434
    %v1524 = vunpack.c.h.b16 %v434
    %v1525 = vunpack.c.l.b16 %v435
    %v1526 = vunpack.c.h.b16 %v435
    %v1527 = vunpack.c.l.b16 %v436
    %v1528 = vunpack.c.h.b16 %v436
    %v1529 = vunpack.c.l.b16 %v437
    %v1530 = vunpack.c.h.b16 %v437
    %v1531 = vunpack.c.l.b16 %v438
    %v1532 = vunpack.c.h.b16 %v438
    %v1533 = vunpack.c.l.b16 %v439
    %v1534 = vunpack.c.h.b16 %v439
    %v1535 = vunpack.c.l.b16 %v440
    %v1536 = vunpack.c.h.b16 %v440
    %v1537 = vunpack.c.l.b16 %v441
    %v1538 = vunpack.c.h.b16 %v441
    %v1539 = vunpack.c.l.b16 %v442
    %v1540 = vunpack.c.h.b16 %v442
    %v1541 = vunpack.c.l.b16 %v443
    %v1542 = vunpack.c.h.b16 %v443
    %v1543 = vunpack.c.l.b16 %v444
    %v1544 = vunpack.c.h.b16 %v444
    %v1545 = vunpack.c.l.b16 %v445
    %v1546 = vunpack.c.h.b16 %v445
    %v1547 = vunpack.c.l.b16 %v446
    %v1548 = vunpack.c.h.b16 %v446
    %v1549 = vunpack.c.l.b16 %v447
    %v1550 = vunpack.c.h.b16 %v447
    %v1551 = vunpack.c.l.b16 %v448
    %v1552 = vunpack.c.h.b16 %v448
    %v1553 = vunpack.c.l.b16 %v449
    %v1554 = vunpack.c.h.b16 %v449
    %v1555 = vunpack.c.l.b16 %v450
    %v1556 = vunpack.c.h.b16 %v450
    %v1557 = vunpack.c.l.b16 %v451
    %v1558 = vunpack.c.h.b16 %v451
    %v1559 = vunpack.c.l.b16 %v452
    %v1560 = vunpack.c.h.b16 %v452
    %v1561 = vunpack.c.l.b16 %v453
    %v1562 = vunpack.c.h.b16 %v453
    %v1563 = vunpack.c.l.b16 %v454
    %v1564 = vunpack.c.h.b16 %v454
    %v1565 = vunpack.c.l.b16 %v455
    %v1566 = vunpack.c.h.b16 %v455
    %v1567 = vunpack.c.l.b16 %v456
    %v1568 = vunpack.c.h.b16 %v456
    %v1569 = vunpack.c.l.b16 %v457
    %v1570 = vunpack.c.h.b16 %v457
    %v1571 = vunpack.c.l.b16 %v458
    %v1572 = vunpack.c.h.b16 %v458
    %v1573 = vunpack.c.l.b16 %v459
    %v1574 = vunpack.c.h.b16 %v459
    %v1575 = vunpack.c.l.b16 %v460
    %v1576 = vunpack.c.h.b16 %v460
    %v1577 = vunpack.c.l.b16 %v461
    %v1578 = vunpack.c.h.b16 %v461
    %v1579 = vunpack.c.l.b16 %v462
    %v1580 = vunpack.c.h.b16 %v462
    %v1581 = vunpack.c.l.b16 %v463
    %v1582 = vunpack.c.h.b16 %v463
    %v1583 = vunpack.c.l.b16 %v464
    %v1584 = vunpack.c.h.b16 %v464
    %v1585 = vunpack.c.l.b16 %v465
    %v1586 = vunpack.c.h.b16 %v465
    %v1587 = vunpack.c.l.b16 %v466
    %v1588 = vunpack.c.h.b16 %v466
    %v1589 = vunpack.c.l.b16 %v467
    %v1590 = vunpack.c.h.b16 %v467
    %v1591 = vunpack.c.l.b16 %v468
    %v1592 = vunpack.c.h.b16 %v468
    %v1593 = vunpack.c.l.b16 %v469
    %v1594 = vunpack.c.h.b16 %v469
    %v1595 = vunpack.c.l.b16 %v470
    %v1596 = vunpack.c.h.b16 %v470
    %v1597 = vunpack.c.l.b16 %v471
    %v1598 = vunpack.c.h.b16 %v471
    %v1599 = vunpack.c.l.b16 %v472
    %v1600 = vunpack.c.h.b16 %v472
    %v1601 = vunpack.c.l.b16 %v473
    %v1602 = vunpack.c.h.b16 %v473
    %v1603 = vunpack.c.l.b16 %v474
    %v1604 = vunpack.c.h.b16 %v474
    %v1605 = vunpack.c.l.b16 %v475
    %v1606 = vunpack.c.h.b16 %v475
    %v1607 = vunpack.c.l.b16 %v476
    %v1608 = vunpack.c.h.b16 %v476
    %v1609 = vunpack.c.l.b16 %v477
    %v1610 = vunpack.c.h.b16 %v477
    %v1611 = vunpack.c.l.b16 %v478
    %v1612 = vunpack.c.h.b16 %v478
    %v1613 = vunpack.c.l.b16 %v479
    %v1614 = vunpack.c.h.b16 %v479
    %v1615 = vunpack.c.l.b16 %v480
    %v1616 = vunpack.c.h.b16 %v480
    %v1617 = vunpack.c.l.b16 %v481
    %v1618 = vunpack.c.h.b16 %v481
    %v1619 = vunpack.c.l.b16 %v482
    %v1620 = vunpack.c.h.b16 %v482
    %v1621 = vunpack.c.l.b16 %v483
    %v1622 = vunpack.c.h.b16 %v483
    %v1623 = vunpack.c.l.b16 %v484
    %v1624 = vunpack.c.h.b16 %v484
    %v1625 = vunpack.c.l.b16 %v485
    %v1626 = vunpack.c.h.b16 %v485
    %v1627 = vunpack.c.l.b16 %v486
    %v1628 = vunpack.c.h.b16 %v486
    %v1629 = vunpack.c.l.b16 %v487
    %v1630 = vunpack.c.h.b16 %v487
    %v1631 = vunpack.c.l.b16 %v488
    %v1632 = vunpack.c.h.b16 %v488
    %v1633 = vunpack.c.l.b16 %v489
    %v1634 = vunpack.c.h.b16 %v489
    %v1635 = vunpack.c.l.b16 %v490
    %v1636 = vunpack.c.h.b16 %v490
    %v1637 = vunpack.c.l.b16 %v491
    %v1638 = vunpack.c.h.b16 %v491
    %v1639 = vunpack.c.l.b16 %v492
    %v1640 = vunpack.c.h.b16 %v492
    %v1641 = vunpack.c.l.b16 %v493
    %v1642 = vunpack.c.h.b16 %v493
    %v1643 = vunpack.c.l.b16 %v494
    %v1644 = vunpack.c.h.b16 %v494
    %v1645 = vunpack.c.l.b16 %v495
    %v1646 = vunpack.c.h.b16 %v495
    %v1647 = vunpack.c.l.b16 %v496
    %v1648 = vunpack.c.h.b16 %v496
    %v1649 = vunpack.c.l.b16 %v497
    %v1650 = vunpack.c.h.b16 %v497
    %v1651 = vunpack.c.l.b16 %v498
    %v1652 = vunpack.c.h.b16 %v498
    %v1653 = vunpack.c.l.b16 %v499
    %v1654 = vunpack.c.h.b16 %v499
    %v1655 = vunpack.c.l.b16 %v500
    %v1656 = vunpack.c.h.b16 %v500
    %v1657 = vunpack.c.l.b16 %v501
    %v1658 = vunpack.c.h.b16 %v501
    %v1659 = vunpack.c.l.b16 %v502
    %v1660 = vunpack.c.h.b16 %v502
    %v1661 = vunpack.c.l.b16 %v503
    %v1662 = vunpack.c.h.b16 %v503
    %v1663 = vunpack.c.l.b16 %v504
    %v1664 = vunpack.c.h.b16 %v504
    %v1665 = vunpack.c.l.b16 %v505
    %v1666 = vunpack.c.h.b16 %v505
    %v1667 = vunpack.c.l.b16 %v506
    %v1668 = vunpack.c.h.b16 %v506
    %v1669 = vunpack.c.l.b16 %v507
    %v1670 = vunpack.c.h.b16 %v507
    %v1671 = vunpack.c.l.b16 %v508
    %v1672 = vunpack.c.h.b16 %v508
    %v1673 = vunpack.c.l.b16 %v509
    %v1674 = vunpack.c.h.b16 %v509
    %v1675 = vunpack.c.l.b16 %v510
    %v1676 = vunpack.c.h.b16 %v510
    %v1677 = vunpack.c.l.b16 %v511
    %v1678 = vunpack.c.h.b16 %v511
    %v1679 = vunpack.c.l.b16 %v512
    %v1680 = vunpack.c.h.b16 %v512
    %v1681 = vunpack.c.l.b16 %v513
    %v1682 = vunpack.c.h.b16 %v513
    %v1683 = vunpack.c.l.b16 %v514
    %v1684 = vunpack.c.h.b16 %v514
    %v1685 = vunpack.c.l.b16 %v515
    %v1686 = vunpack.c.h.b16 %v515
    %v1687 = vunpack.c.l.b16 %v516
    %v1688 = vunpack.c.h.b16 %v516
    %v1689 = vunpack.c.l.b16 %v517
    %v1690 = vunpack.c.h.b16 %v517
    %v1691 = vunpack.c.l.b16 %v518
    %v1692 = vunpack.c.h.b16 %v518
    %v1693 = vunpack.c.l.b16 %v519
    %v1694 = vunpack.c.h.b16 %v519
    %v1695 = vunpack.c.l.b16 %v520
    %v1696 = vunpack.c.h.b16 %v520
    %v1697 = vunpack.c.l.b16 %v521
    %v1698 = vunpack.c.h.b16 %v521
    %v1699 = vunpack.c.l.b16 %v522
    %v1700 = vunpack.c.h.b16 %v522
    %v1701 = vunpack.c.l.b16 %v523
    %v1702 = vunpack.c.h.b16 %v523
    %v1703 = vunpack.c.l.b16 %v524
    %v1704 = vunpack.c.h.b16 %v524
    %v1705 = vunpack.c.l.b16 %v525
    %v1706 = vunpack.c.h.b16 %v525
    %v1707 = vunpack.c.l.b16 %v526
    %v1708 = vunpack.c.h.b16 %v526
    %v1709 = vunpack.c.l.b16 %v527
    %v1710 = vunpack.c.h.b16 %v527
    %v1711 = vunpack.c.l.b16 %v528
    %v1712 = vunpack.c.h.b16 %v528
    %v1713 = vunpack.c.l.b16 %v529
    %v1714 = vunpack.c.h.b16 %v529
    %v1715 = vunpack.c.l.b16 %v530
    %v1716 = vunpack.c.h.b16 %v530
    %v1717 = vunpack.c.l.b16 %v531
    %v1718 = vunpack.c.h.b16 %v531
    %v1719 = vunpack.c.l.b16 %v532
    %v1720 = vunpack.c.h.b16 %v532
    %v1721 = vunpack.c.l.b16 %v533
    %v1722 = vunpack.c.h.b16 %v533
    %v1723 = vunpack.c.l.b16 %v534
    %v1724 = vunpack.c.h.b16 %v534
    %v1725 = vunpack.c.l.b16 %v535
    %v1726 = vunpack.c.h.b16 %v535
    %v1727 = vunpack.c.l.b16 %v536
    %v1728 = vunpack.c.h.b16 %v536
    %v1729 = vunpack.c.l.b16 %v537
    %v1730 = vunpack.c.h.b16 %v537
    %v1731 = vunpack.c.l.b16 %v538
    %v1732 = vunpack.c.h.b16 %v538
    %v1733 = vunpack.c.l.b16 %v539
    %v1734 = vunpack.c.h.b16 %v539
    %v1735 = vunpack.c.l.b16 %v540
    %v1736 = vunpack.c.h.b16 %v540
    %v1737 = vunpack.c.l.b16 %v541
    %v1738 = vunpack.c.h.b16 %v541
    %v1739 = vunpack.c.l.b16 %v542
    %v1740 = vunpack.c.h.b16 %v542
    %v1741 = vunpack.c.l.b16 %v543
    %v1742 = vunpack.c.h.b16 %v543
    %v1743 = vunpack.c.l.b16 %v544
    %v1744 = vunpack.c.h.b16 %v544
    %v1745 = vunpack.c.l.b16 %v545
    %v1746 = vunpack.c.h.b16 %v545
    %v1747 = vunpack.c.l.b16 %v546
    %v1748 = vunpack.c.h.b16 %v546
    %v1749 = vunpack.c.l.b16 %v547
    %v1750 = vunpack.c.h.b16 %v547
    %v1751 = vunpack.c.l.b16 %v548
    %v1752 = vunpack.c.h.b16 %v548
    %v1753 = vunpack.c.l.b16 %v549
    %v1754 = vunpack.c.h.b16 %v549
    %v1755 = vunpack.c.l.b16 %v550
    %v1756 = vunpack.c.h.b16 %v550
    %v1757 = vunpack.c.l.b16 %v551
    %v1758 = vunpack.c.h.b16 %v551
    %v1759 = vunpack.c.l.b16 %v552
    %v1760 = vunpack.c.h.b16 %v552
    %v1761 = vunpack.c.l.b16 %v553
    %v1762 = vunpack.c.h.b16 %v553
    %v1763 = vunpack.c.l.b16 %v554
    %v1764 = vunpack.c.h.b16 %v554
    %v1765 = vunpack.c.l.b16 %v555
    %v1766 = vunpack.c.h.b16 %v555
    %v1767 = vunpack.c.l.b16 %v556
    %v1768 = vunpack.c.h.b16 %v556
    %v1769 = vunpack.c.l.b16 %v557
    %v1770 = vunpack.c.h.b16 %v557
    %v1771 = vunpack.c.l.b16 %v558
    %v1772 = vunpack.c.h.b16 %v558
    %v1773 = vunpack.c.l.b16 %v559
    %v1774 = vunpack.c.h.b16 %v559
    %v1775 = vunpack.c.l.b16 %v560
    %v1776 = vunpack.c.h.b16 %v560
    %v1777 = vunpack.c.l.b16 %v561
    %v1778 = vunpack.c.h.b16 %v561
    %v1779 = vunpack.c.l.b16 %v562
    %v1780 = vunpack.c.h.b16 %v562
    %v1781 = vunpack.c.l.b16 %v563
    %v1782 = vunpack.c.h.b16 %v563
    %v1783 = vunpack.c.l.b16 %v564
    %v1784 = vunpack.c.h.b16 %v564
    %v1785 = vunpack.c.l.b16 %v565
    %v1786 = vunpack.c.h.b16 %v565
    %v1787 = vunpack.c.l.b16 %v566
    %v1788 = vunpack.c.h.b16 %v566
    %v1789 = vunpack.c.l.b16 %v567
    %v1790 = vunpack.c.h.b16 %v567
    %v1791 = vunpack.c.l.b16 %v568
    %v1792 = vunpack.c.h.b16 %v568
    %v1793 = vunpack.c.l.b16 %v569
    %v1794 = vunpack.c.h.b16 %v569
    %v1795 = vunpack.c.l.b16 %v570
    %v1796 = vunpack.c.h.b16 %v570
    %v1797 = vunpack.c.l.b16 %v571
    %v1798 = vunpack.c.h.b16 %v571
    %v1799 = vunpack.c.l.b16 %v572
    %v1800 = vunpack.c.h.b16 %v572
    %v1801 = vunpack.c.l.b16 %v573
    %v1802 = vunpack.c.h.b16 %v573
    %v1803 = vpack.c.b16 %v1027, %v1019
    %v1804 = vpack.c.b16 %v1028, %v1020
    %v1805 = vpack.c.b16 %v1029, %v1021
    %v1806 = vpack.c.b16 %v1030, %v1022
    %v1807 = vpack.c.b16 %v1031, %v1023
    %v1808 = vpack.c.b16 %v1032, %v1024
    %v1809 = vpack.c.b16 %v1033, %v1025
    %v1810 = vpack.c.b16 %v1034, %v1026
    %v1811 = vpack.c.b16 %v1043, %v1035
    %v1812 = vpack.c.b16 %v1044, %v1036
    %v1813 = vpack.c.b16 %v1045, %v1037
    %v1814 = vpack.c.b16 %v1046, %v1038
    %v1815 = vpack.c.b16 %v1047, %v1039
    %v1816 = vpack.c.b16 %v1048, %v1040
    %v1817 = vpack.c.b16 %v1049, %v1041
    %v1818 = vpack.c.b16 %v1050, %v1042
    %v1819 = vpack.c.b16 %v1059, %v1051
    %v1820 = vpack.c.b16 %v1060, %v1052
    %v1821 = vpack.c.b16 %v1061, %v1053
    %v1822 = vpack.c.b16 %v1062, %v1054
    %v1823 = vpack.c.b16 %v1063, %v1055
    %v1824 = vpack.c.b16 %v1064, %v1056
    %v1825 = vpack.c.b16 %v1065, %v1057
    %v1826 = vpack.c.b16 %v1066, %v1058
    %v1827 = vpack.c.b16 %v1075, %v1067
    %v1828 = vpack.c.b16 %v1076, %v1068
    %v1829 = vpack.c.b16 %v1077, %v1069
    %v1830 = vpack.c.b16 %v1078, %v1070
    %v1831 = vpack.c.b16 %v1079, %v1071
    %v1832 = vpack.c.b16 %v1080, %v1072
    %v1833 = vpack.c.b16 %v1081, %v1073
    %v1834 = vpack.c.b16 %v1082, %v1074
    %v1835 = vpack.c.b16 %v1091, %v1083
    %v1836 = vpack.c.b16 %v1092, %v1084
    %v1837 = vpack.c.b16 %v1093, %v1085
    %v1838 = vpack.c.b16 %v1094, %v1086
    %v1839 = vpack.c.b16 %v1095, %v1087
    %v1840 = vpack.c.b16 %v1096, %v1088
    %v1841 = vpack.c.b16 %v1097, %v1089
    %v1842 = vpack.c.b16 %v1098, %v1090
    %v1843 = vpack.c.b16 %v1107, %v1099
    %v1844 = vpack.c.b16 %v1108, %v1100
    %v1845 = vpack.c.b16 %v1109, %v1101
    %v1846 = vpack.c.b16 %v1110, %v1102
    %v1847 = vpack.c.b16 %v1111, %v1103
    %v1848 = vpack.c.b16 %v1112, %v1104
    %v1849 = vpack.c.b16 %v1113, %v1105
    %v1850 = vpack.c.b16 %v1114, %v1106
    %v1851 = vpack.c.b16 %v1123, %v1115
    %v1852 = vpack.c.b16 %v1124, %v1116
    %v1853 = vpack.c.b16 %v1125, %v1117
    %v1854 = vpack.c.b16 %v1126, %v1118
    %v1855 = vpack.c.b16 %v1127, %v1119
    %v1856 = vpack.c.b16 %v1128, %v1120
    %v1857 = vpack.c.b16 %v1129, %v1121
    %v1858 = vpack.c.b16 %v1130, %v1122
    %v1859 = vpack.c.b16 %v1139, %v1131
    %v1860 = vpack.c.b16 %v1140, %v1132
    %v1861 = vpack.c.b16 %v1141, %v1133
    %v1862 = vpack.c.b16 %v1142, %v1134
    %v1863 = vpack.c.b16 %v1143, %v1135
    %v1864 = vpack.c.b16 %v1144, %v1136
    %v1865 = vpack.c.b16 %v1145, %v1137
    %v1866 = vpack.c.b16 %v1146, %v1138
    %v1867 = vpack.c.b16 %v1155, %v1147
    %v1868 = vpack.c.b16 %v1156, %v1148
    %v1869 = vpack.c.b16 %v1157, %v1149
    %v1870 = vpack.c.b16 %v1158, %v1150
    %v1871 = vpack.c.b16 %v1159, %v1151
    %v1872 = vpack.c.b16 %v1160, %v1152
    %v1873 = vpack.c.b16 %v1161, %v1153
    %v1874 = vpack.c.b16 %v1162, %v1154
    %v1875 = vpack.c.b16 %v1171, %v1163
    %v1876 = vpack.c.b16 %v1172, %v1164
    %v1877 = vpack.c.b16 %v1173, %v1165
    %v1878 = vpack.c.b16 %v1174, %v1166
    %v1879 = vpack.c.b16 %v1175, %v1167
    %v1880 = vpack.c.b16 %v1176, %v1168
    %v1881 = vpack.c.b16 %v1177, %v1169
    %v1882 = vpack.c.b16 %v1178, %v1170
    %v1883 = vpack.c.b16 %v1187, %v1179
    %v1884 = vpack.c.b16 %v1188, %v1180
    %v1885 = vpack.c.b16 %v1189, %v1181
    %v1886 = vpack.c.b16 %v1190, %v1182
    %v1887 = vpack.c.b16 %v1191, %v1183
    %v1888 = vpack.c.b16 %v1192, %v1184
    %v1889 = vpack.c.b16 %v1193, %v1185
    %v1890 = vpack.c.b16 %v1194, %v1186
    %v1891 = vpack.c.b16 %v1203, %v1195
    %v1892 = vpack.c.b16 %v1204, %v1196
    %v1893 = vpack.c.b16 %v1205, %v1197
    %v1894 = vpack.c.b16 %v1206, %v1198
    %v1895 = vpack.c.b16 %v1207, %v1199
    %v1896 = vpack.c.b16 %v1208, %v1200
    %v1897 = vpack.c.b16 %v1209, %v1201
    %v1898 = vpack.c.b16 %v1210, %v1202
    %v1899 = vpack.c.b16 %v1219, %v1211
    %v1900 = vpack.c.b16 %v1220, %v1212
    %v1901 = vpack.c.b16 %v1221, %v1213
    %v1902 = vpack.c.b16 %v1222, %v1214
    %v1903 = vpack.c.b16 %v1223, %v1215
    %v1904 = vpack.c.b16 %v1224, %v1216
    %v1905 = vpack.c.b16 %v1225, %v1217
    %v1906 = vpack.c.b16 %v1226, %v1218
    %v1907 = vpack.c.b16 %v1235, %v1227
    %v1908 = vpack.c.b16 %v1236, %v1228
    %v1909 = vpack.c.b16 %v1237, %v1229
    %v1910 = vpack.c.b16 %v1238, %v1230
    %v1911 = vpack.c.b16 %v1239, %v1231
    %v1912 = vpack.c.b16 %v1240, %v1232
    %v1913 = vpack.c.b16 %v1241, %v1233
    %v1914 = vpack.c.b16 %v1242, %v1234
    %v1915 = vpack.c.b16 %v1251, %v1243
    %v1916 = vpack.c.b16 %v1252, %v1244
    %v1917 = vpack.c.b16 %v1253, %v1245
    %v1918 = vpack.c.b16 %v1254, %v1246
    %v1919 = vpack.c.b16 %v1255, %v1247
    %v1920 = vpack.c.b16 %v1256, %v1248
    %v1921 = vpack.c.b16 %v1257, %v1249
    %v1922 = vpack.c.b16 %v1258, %v1250
    %v1923 = vpack.c.b16 %v1267, %v1259
    %v1924 = vpack.c.b16 %v1268, %v1260
    %v1925 = vpack.c.b16 %v1269, %v1261
    %v1926 = vpack.c.b16 %v1270, %v1262
    %v1927 = vpack.c.b16 %v1271, %v1263
    %v1928 = vpack.c.b16 %v1272, %v1264
    %v1929 = vpack.c.b16 %v1273, %v1265
    %v1930 = vpack.c.b16 %v1274, %v1266
    %v1931 = vpack.c.b16 %v1283, %v1275
    %v1932 = vpack.c.b16 %v1284, %v1276
    %v1933 = vpack.c.b16 %v1285, %v1277
    %v1934 = vpack.c.b16 %v1286, %v1278
    %v1935 = vpack.c.b16 %v1287, %v1279
    %v1936 = vpack.c.b16 %v1288, %v1280
    %v1937 = vpack.c.b16 %v1289, %v1281
    %v1938 = vpack.c.b16 %v1290, %v1282
    %v1939 = vpack.c.b16 %v1299, %v1291
    %v1940 = vpack.c.b16 %v1300, %v1292
    %v1941 = vpack.c.b16 %v1301, %v1293
    %v1942 = vpack.c.b16 %v1302, %v1294
    %v1943 = vpack.c.b16 %v1303, %v1295
    %v1944 = vpack.c.b16 %v1304, %v1296
    %v1945 = vpack.c.b16 %v1305, %v1297
    %v1946 = vpack.c.b16 %v1306, %v1298
    %v1947 = vpack.c.b16 %v1315, %v1307
    %v1948 = vpack.c.b16 %v1316, %v1308
    %v1949 = vpack.c.b16 %v1317, %v1309
    %v1950 = vpack.c.b16 %v1318, %v1310
    %v1951 = vpack.c.b16 %v1319, %v1311
    %v1952 = vpack.c.b16 %v1320, %v1312
    %v1953 = vpack.c.b16 %v1321, %v1313
    %v1954 = vpack.c.b16 %v1322, %v1314
    %v1955 = vpack.c.b16 %v1331, %v1323
    %v1956 = vpack.c.b16 %v1332, %v1324
    %v1957 = vpack.c.b16 %v1333, %v1325
    %v1958 = vpack.c.b16 %v1334, %v1326
    %v1959 = vpack.c.b16 %v1335, %v1327
    %v1960 = vpack.c.b16 %v1336, %v1328
    %v1961 = vpack.c.b16 %v1337, %v1329
    %v1962 = vpack.c.b16 %v1338, %v1330
    %v1963 = vpack.c.b16 %v1347, %v1339
    %v1964 = vpack.c.b16 %v1348, %v1340
    %v1965 = vpack.c.b16 %v1349, %v1341
    %v1966 = vpack.c.b16 %v1350, %v1342
    %v1967 = vpack.c.b16 %v1351, %v1343
    %v1968 = vpack.c.b16 %v1352, %v1344
    %v1969 = vpack.c.b16 %v1353, %v1345
    %v1970 = vpack.c.b16 %v1354, %v1346
    %v1971 = vpack.c.b16 %v1363, %v1355
    %v1972 = vpack.c.b16 %v1364, %v1356
    %v1973 = vpack.c.b16 %v1365, %v1357
    %v1974 = vpack.c.b16 %v1366, %v1358
    %v1975 = vpack.c.b16 %v1367, %v1359
    %v1976 = vpack.c.b16 %v1368, %v1360
    %v1977 = vpack.c.b16 %v1369, %v1361
    %v1978 = vpack.c.b16 %v1370, %v1362
    %v1979 = vpack.c.b16 %v1379, %v1371
    %v1980 = vpack.c.b16 %v1380, %v1372
    %v1981 = vpack.c.b16 %v1381, %v1373
    %v1982 = vpack.c.b16 %v1382, %v1374
    %v1983 = vpack.c.b16 %v1383, %v1375
    %v1984 = vpack.c.b16 %v1384, %v1376
    %v1985 = vpack.c.b16 %v1385, %v1377
    %v1986 = vpack.c.b16 %v1386, %v1378
    %v1987 = vpack.c.b16 %v1395, %v1387
    %v1988 = vpack.c.b16 %v1396, %v1388
    %v1989 = vpack.c.b16 %v1397, %v1389
    %v1990 = vpack.c.b16 %v1398, %v1390
    %v1991 = vpack.c.b16 %v1399, %v1391
    %v1992 = vpack.c.b16 %v1400, %v1392
    %v1993 = vpack.c.b16 %v1401, %v1393
    %v1994 = vpack.c.b16 %v1402, %v1394
    %v1995 = vpack.c.b16 %v1411, %v1403
    %v1996 = vpack.c.b16 %v1412, %v1404
    %v1997 = vpack.c.b16 %v1413, %v1405
    %v1998 = vpack.c.b16 %v1414, %v1406
    %v1999 = vpack.c.b16 %v1415, %v1407
    %v2000 = vpack.c.b16 %v1416, %v1408
    %v2001 = vpack.c.b16 %v1417, %v1409
    %v2002 = vpack.c.b16 %v1418, %v1410
    %v2003 = vpack.c.b16 %v1427, %v1419
    %v2004 = vpack.c.b16 %v1428, %v1420
    %v2005 = vpack.c.b16 %v1429, %v1421
    %v2006 = vpack.c.b16 %v1430, %v1422
    %v2007 = vpack.c.b16 %v1431, %v1423
    %v2008 = vpack.c.b16 %v1432, %v1424
    %v2009 = vpack.c.b16 %v1433, %v1425
    %v2010 = vpack.c.b16 %v1434, %v1426
    %v2011 = vpack.c.b16 %v1443, %v1435
    %v2012 = vpack.c.b16 %v1444, %v1436
    %v2013 = vpack.c.b16 %v1445, %v1437
    %v2014 = vpack.c.b16 %v1446, %v1438
    %v2015 = vpack.c.b16 %v1447, %v1439
    %v2016 = vpack.c.b16 %v1448, %v1440
    %v2017 = vpack.c.b16 %v1449, %v1441
    %v2018 = vpack.c.b16 %v1450, %v1442
    %v2019 = vpack.c.b16 %v1459, %v1451
    %v2020 = vpack.c.b16 %v1460, %v1452
    %v2021 = vpack.c.b16 %v1461, %v1453
    %v2022 = vpack.c.b16 %v1462, %v1454
    %v2023 = vpack.c.b16 %v1463, %v1455
    %v2024 = vpack.c.b16 %v1464, %v1456
    %v2025 = vpack.c.b16 %v1465, %v1457
    %v2026 = vpack.c.b16 %v1466, %v1458
    %v2027 = vpack.c.b16 %v1475, %v1467
    %v2028 = vpack.c.b16 %v1476, %v1468
    %v2029 = vpack.c.b16 %v1477, %v1469
    %v2030 = vpack.c.b16 %v1478, %v1470
    %v2031 = vpack.c.b16 %v1479, %v1471
    %v2032 = vpack.c.b16 %v1480, %v1472
    %v2033 = vpack.c.b16 %v1481, %v1473
    %v2034 = vpack.c.b16 %v1482, %v1474
    %v2035 = vpack.c.b16 %v1491, %v1483
    %v2036 = vpack.c.b16 %v1492, %v1484
    %v2037 = vpack.c.b16 %v1493, %v1485
    %v2038 = vpack.c.b16 %v1494, %v1486
    %v2039 = vpack.c.b16 %v1495, %v1487
    %v2040 = vpack.c.b16 %v1496, %v1488
    %v2041 = vpack.c.b16 %v1497, %v1489
    %v2042 = vpack.c.b16 %v1498, %v1490
    %v2043 = vpack.c.b16 %v1507, %v1499
    %v2044 = vpack.c.b16 %v1508, %v1500
    %v2045 = vpack.c.b16 %v1509, %v1501
    %v2046 = vpack.c.b16 %v1510, %v1502
    %v2047 = vpack.c.b16 %v1511, %v1503
    %v2048 = vpack.c.b16 %v1512, %v1504
    %v2049 = vpack.c.b16 %v1513, %v1505
    %v2050 = vpack.c.b16 %v1514, %v1506
    %v2051 = vpack.c.b16 %v1523, %v1515
    %v2052 = vpack.c.b16 %v1524, %v1516
    %v2053 = vpack.c.b16 %v1525, %v1517
    %v2054 = vpack.c.b16 %v1526, %v1518
    %v2055 = vpack.c.b16 %v1527, %v1519
    %v2056 = vpack.c.b16 %v1528, %v1520
    %v2057 = vpack.c.b16 %v1529, %v1521
    %v2058 = vpack.c.b16 %v1530, %v1522
    %v2059 = vpack.c.b16 %v1539, %v1531
    %v2060 = vpack.c.b16 %v1540, %v1532
    %v2061 = vpack.c.b16 %v1541, %v1533
    %v2062 = vpack.c.b16 %v1542, %v1534
    %v2063 = vpack.c.b16 %v1543, %v1535
    %v2064 = vpack.c.b16 %v1544, %v1536
    %v2065 = vpack.c.b16 %v1545, %v1537
    %v2066 = vpack.c.b16 %v1546, %v1538
    %v2067 = vpack.c.b16 %v1555, %v1547
    %v2068 = vpack.c.b16 %v1556, %v1548
    %v2069 = vpack.c.b16 %v1557, %v1549
    %v2070 = vpack.c.b16 %v1558, %v1550
    %v2071 = vpack.c.b16 %v1559, %v1551
    %v2072 = vpack.c.b16 %v1560, %v1552
    %v2073 = vpack.c.b16 %v1561, %v1553
    %v2074 = vpack.c.b16 %v1562, %v1554
    %v2075 = vpack.c.b16 %v1571, %v1563
    %v2076 = vpack.c.b16 %v1572, %v1564
    %v2077 = vpack.c.b16 %v1573, %v1565
    %v2078 = vpack.c.b16 %v1574, %v1566
    %v2079 = vpack.c.b16 %v1575, %v1567
    %v2080 = vpack.c.b16 %v1576, %v1568
    %v2081 = vpack.c.b16 %v1577, %v1569
    %v2082 = vpack.c.b16 %v1578, %v1570
    %v2083 = vpack.c.b16 %v1587, %v1579
    %v2084 = vpack.c.b16 %v1588, %v1580
    %v2085 = vpack.c.b16 %v1589, %v1581
    %v2086 = vpack.c.b16 %v1590, %v1582
    %v2087 = vpack.c.b16 %v1591, %v1583
    %v2088 = vpack.c.b16 %v1592, %v1584
    %v2089 = vpack.c.b16 %v1593, %v1585
    %v2090 = vpack.c.b16 %v1594, %v1586
    %v2091 = vpack.c.b16 %v1603, %v1595
    %v2092 = vpack.c.b16 %v1604, %v1596
    %v2093 = vpack.c.b16 %v1605, %v1597
    %v2094 = vpack.c.b16 %v1606, %v1598
    %v2095 = vpack.c.b16 %v1607, %v1599
    %v2096 = vpack.c.b16 %v1608, %v1600
    %v2097 = vpack.c.b16 %v1609, %v1601
    %v2098 = vpack.c.b16 %v1610, %v1602
    %v2099 = vpack.c.b16 %v1619, %v1611
    %v2100 = vpack.c.b16 %v1620, %v1612
    %v2101 = vpack.c.b16 %v1621, %v1613
    %v2102 = vpack.c.b16 %v1622, %v1614
    %v2103 = vpack.c.b16 %v1623, %v1615
    %v2104 = vpack.c.b16 %v1624, %v1616
    %v2105 = vpack.c.b16 %v1625, %v1617
    %v2106 = vpack.c.b16 %v1626, %v1618
    %v2107 = vpack.c.b16 %v1635, %v1627
    %v2108 = vpack.c.b16 %v1636, %v1628
    %v2109 = vpack.c.b16 %v1637, %v1629
    %v2110 = vpack.c.b16 %v1638, %v1630
    %v2111 = vpack.c.b16 %v1639, %v1631
    %v2112 = vpack.c.b16 %v1640, %v1632
    %v2113 = vpack.c.b16 %v1641, %v1633
    %v2114 = vpack.c.b16 %v1642, %v1634
    %v2115 = vpack.c.b16 %v1651, %v1643
    %v2116 = vpack.c.b16 %v1652, %v1644
    %v2117 = vpack.c.b16 %v1653, %v1645
    %v2118 = vpack.c.b16 %v1654, %v1646
    %v2119 = vpack.c.b16 %v1655, %v1647
    %v2120 = vpack.c.b16 %v1656, %v1648
    %v2121 = vpack.c.b16 %v1657, %v1649
    %v2122 = vpack.c.b16 %v1658, %v1650
    %v2123 = vpack.c.b16 %v1667, %v1659
    %v2124 = vpack.c.b16 %v1668, %v1660
    %v2125 = vpack.c.b16 %v1669, %v1661
    %v2126 = vpack.c.b16 %v1670, %v1662
    %v2127 = vpack.c.b16 %v1671, %v1663
    %v2128 = vpack.c.b16 %v1672, %v1664
    %v2129 = vpack.c.b16 %v1673, %v1665
    %v2130 = vpack.c.b16 %v1674, %v1666
    %v2131 = vpack.c.b16 %v1683, %v1675
    %v2132 = vpack.c.b16 %v1684, %v1676
    %v2133 = vpack.c.b16 %v1685, %v1677
    %v2134 = vpack.c.b16 %v1686, %v1678
    %v2135 = vpack.c.b16 %v1687, %v1679
    %v2136 = vpack.c.b16 %v1688, %v1680
    %v2137 = vpack.c.b16 %v1689, %v1681
    %v2138 = vpack.c.b16 %v1690, %v1682
    %v2139 = vpack.c.b16 %v1699, %v1691
    %v2140 = vpack.c.b16 %v1700, %v1692
    %v2141 = vpack.c.b16 %v1701, %v1693
    %v2142 = vpack.c.b16 %v1702, %v1694
    %v2143 = vpack.c.b16 %v1703, %v1695
    %v2144 = vpack.c.b16 %v1704, %v1696
    %v2145 = vpack.c.b16 %v1705, %v1697
    %v2146 = vpack.c.b16 %v1706, %v1698
    %v2147 = vpack.c.b16 %v1715, %v1707
    %v2148 = vpack.c.b16 %v1716, %v1708
    %v2149 = vpack.c.b16 %v1717, %v1709
    %v2150 = vpack.c.b16 %v1718, %v1710
    %v2151 = vpack.c.b16 %v1719, %v1711
    %v2152 = vpack.c.b16 %v1720, %v1712
    %v2153 = vpack.c.b16 %v1721, %v1713
    %v2154 = vpack.c.b16 %v1722, %v1714
    %v2155 = vpack.c.b16 %v1731, %v1723
    %v2156 = vpack.c.b16 %v1732, %v1724
    %v2157 = vpack.c.b16 %v1733, %v1725
    %v2158 = vpack.c.b16 %v1734, %v1726
    %v2159 = vpack.c.b16 %v1735, %v1727
    %v2160 = vpack.c.b16 %v1736, %v1728
    %v2161 = vpack.c.b16 %v1737, %v1729
    %v2162 = vpack.c.b16 %v1738, %v1730
    %v2163 = vpack.c.b16 %v1747, %v1739
    %v2164 = vpack.c.b16 %v1748, %v1740
    %v2165 = vpack.c.b16 %v1749, %v1741
    %v2166 = vpack.c.b16 %v1750, %v1742
    %v2167 = vpack.c.b16 %v1751, %v1743
    %v2168 = vpack.c.b16 %v1752, %v1744
    %v2169 = vpack.c.b16 %v1753, %v1745
    %v2170 = vpack.c.b16 %v1754, %v1746
    %v2171 = vpack.c.b16 %v1763, %v1755
    %v2172 = vpack.c.b16 %v1764, %v1756
    %v2173 = vpack.c.b16 %v1765, %v1757
    %v2174 = vpack.c.b16 %v1766, %v1758
    %v2175 = vpack.c.b16 %v1767, %v1759
    %v2176 = vpack.c.b16 %v1768, %v1760
    %v2177 = vpack.c.b16 %v1769, %v1761
    %v2178 = vpack.c.b16 %v1770, %v1762
    %v2179 = vpack.c.b16 %v1779, %v1771
    %v2180 = vpack.c.b16 %v1780, %v1772
    %v2181 = vpack.c.b16 %v1781, %v1773
    %v2182 = vpack.c.b16 %v1782, %v1774
    %v2183 = vpack.c.b16 %v1783, %v1775
    %v2184 = vpack.c.b16 %v1784, %v1776
    %v2185 = vpack.c.b16 %v1785, %v1777
    %v2186 = vpack.c.b16 %v1786, %v1778
    %v2187 = vpack.c.b16 %v1795, %v1787
    %v2188 = vpack.c.b16 %v1796, %v1788
    %v2189 = vpack.c.b16 %v1797, %v1789
    %v2190 = vpack.c.b16 %v1798, %v1790
    %v2191 = vpack.c.b16 %v1799, %v1791
    %v2192 = vpack.c.b16 %v1800, %v1792
    %v2193 = vpack.c.b16 %v1801, %v1793
    %v2194 = vpack.c.b16 %v1802, %v1794
    %vm2587 = vcmask 130048
    %v2589 = vsel %vm2587, %v620, 0
    %2591 = vmatpush.bf16.msra.mxu0 %v1859
    %2592 = vmatpush.bf16.msra.mxu0 %v1851
    %2593 = vmatpush.bf16.msra.mxu0 %v1843
    %2594 = vmatpush.bf16.msra.mxu0 %v1835
    %2595 = vmatpush.bf16.msra.mxu0 %v1827
    %2596 = vmatpush.bf16.msra.mxu0 %v1819
    %2597 = vmatpush.bf16.msra.mxu0 %v1811
    %2598 = vmatpush.bf16.msra.mxu0 %v1803
    %2599 = vmatmul.bf16.gmra.mxu0 %v614
    %v2600 = vpop.f32.mrf.mxu0
    %v2601 = vadd.f32 %v576, %v2600
    %v2602 = vpop.f32.mrf.mxu0
    %v2603 = vadd.f32 %v576, %v2602
    %2604 = vdwg.mxu0
    %2605 = vmatpush.bf16.msra.mxu0 %v1923
    %2606 = vmatpush.bf16.msra.mxu0 %v1915
    %2607 = vmatpush.bf16.msra.mxu0 %v1907
    %2608 = vmatpush.bf16.msra.mxu0 %v1899
    %2609 = vmatpush.bf16.msra.mxu0 %v1891
    %2610 = vmatpush.bf16.msra.mxu0 %v1883
    %2611 = vmatpush.bf16.msra.mxu0 %v1875
    %2612 = vmatpush.bf16.msra.mxu0 %v1867
    %2613 = vmatmul.bf16.gmra.mxu0 %v615
    %v2614 = vpop.f32.mrf.mxu0
    %v2615 = vadd.f32 %v2601, %v2614
    %v2616 = vpop.f32.mrf.mxu0
    %v2617 = vadd.f32 %v2603, %v2616
    %2618 = vdwg.mxu0
    %2619 = vmatpush.bf16.msra.mxu0 %v1987
    %2620 = vmatpush.bf16.msra.mxu0 %v1979
    %2621 = vmatpush.bf16.msra.mxu0 %v1971
    %2622 = vmatpush.bf16.msra.mxu0 %v1963
    %2623 = vmatpush.bf16.msra.mxu0 %v1955
    %2624 = vmatpush.bf16.msra.mxu0 %v1947
    %2625 = vmatpush.bf16.msra.mxu0 %v1939
    %2626 = vmatpush.bf16.msra.mxu0 %v1931
    %2627 = vmatmul.bf16.gmra.mxu0 %v616
    %v2628 = vpop.f32.mrf.mxu0
    %v2629 = vadd.f32 %v2615, %v2628
    %v2630 = vpop.f32.mrf.mxu0
    %v2631 = vadd.f32 %v2617, %v2630
    %2632 = vdwg.mxu0
    %2633 = vmatpush.bf16.msra.mxu0 %v2051
    %2634 = vmatpush.bf16.msra.mxu0 %v2043
    %2635 = vmatpush.bf16.msra.mxu0 %v2035
    %2636 = vmatpush.bf16.msra.mxu0 %v2027
    %2637 = vmatpush.bf16.msra.mxu0 %v2019
    %2638 = vmatpush.bf16.msra.mxu0 %v2011
    %2639 = vmatpush.bf16.msra.mxu0 %v2003
    %2640 = vmatpush.bf16.msra.mxu0 %v1995
    %2641 = vmatmul.bf16.gmra.mxu0 %v617
    %v2642 = vpop.f32.mrf.mxu0
    %v2643 = vadd.f32 %v2629, %v2642
    %v2644 = vpop.f32.mrf.mxu0
    %v2645 = vadd.f32 %v2631, %v2644
    %2646 = vdwg.mxu0
    %2647 = vmatpush.bf16.msra.mxu0 %v2115
    %2648 = vmatpush.bf16.msra.mxu0 %v2107
    %2649 = vmatpush.bf16.msra.mxu0 %v2099
    %2650 = vmatpush.bf16.msra.mxu0 %v2091
    %2651 = vmatpush.bf16.msra.mxu0 %v2083
    %2652 = vmatpush.bf16.msra.mxu0 %v2075
    %2653 = vmatpush.bf16.msra.mxu0 %v2067
    %2654 = vmatpush.bf16.msra.mxu0 %v2059
    %2655 = vmatmul.bf16.gmra.mxu0 %v618
    %v2656 = vpop.f32.mrf.mxu0
    %v2657 = vadd.f32 %v2643, %v2656
    %v2658 = vpop.f32.mrf.mxu0
    %v2659 = vadd.f32 %v2645, %v2658
    %2660 = vdwg.mxu0
    %2661 = vmatpush.bf16.msra.mxu0 %v2179
    %2662 = vmatpush.bf16.msra.mxu0 %v2171
    %2663 = vmatpush.bf16.msra.mxu0 %v2163
    %2664 = vmatpush.bf16.msra.mxu0 %v2155
    %2665 = vmatpush.bf16.msra.mxu0 %v2147
    %2666 = vmatpush.bf16.msra.mxu0 %v2139
    %2667 = vmatpush.bf16.msra.mxu0 %v2131
    %2668 = vmatpush.bf16.msra.mxu0 %v2123
    %2669 = vmatmul.bf16.gmra.mxu0 %v619
    %v2670 = vpop.f32.mrf.mxu0
    %v2671 = vadd.f32 %v2657, %v2670
    %v2672 = vpop.f32.mrf.mxu0
    %v2673 = vadd.f32 %v2659, %v2672
    %2674 = vdwg.mxu0
    %2675 = vmatpush.bf16.msra.mxu0 0
    %2676 = vmatpush.bf16.msra.mxu0 0
    %2677 = vmatpush.bf16.msra.mxu0 0
    %2678 = vmatpush.bf16.msra.mxu0 0
    %2679 = vmatpush.bf16.msra.mxu0 0
    %2680 = vmatpush.bf16.msra.mxu0 0
    %2681 = vmatpush.bf16.msra.mxu0 0
    %2682 = vmatpush.bf16.msra.mxu0 %v2187
    %2683 = vmatmul.bf16.gmra.mxu0 %v2589
    %v2684 = vpop.f32.mrf.mxu0
    %v2685 = vadd.f32 %v2671, %v2684
    %v2686 = vpop.f32.mrf.mxu0
    %v2687 = vadd.f32 %v2673, %v2686
    %2688 = vdwg.mxu0
    %2689 = vmatpush.bf16.msra.mxu0 %v1860
    %2690 = vmatpush.bf16.msra.mxu0 %v1852
    %2691 = vmatpush.bf16.msra.mxu0 %v1844
    %2692 = vmatpush.bf16.msra.mxu0 %v1836
    %2693 = vmatpush.bf16.msra.mxu0 %v1828
    %2694 = vmatpush.bf16.msra.mxu0 %v1820
    %2695 = vmatpush.bf16.msra.mxu0 %v1812
    %2696 = vmatpush.bf16.msra.mxu0 %v1804
    %2697 = vmatmul.bf16.gmra.mxu0 %v614
    %v2698 = vpop.f32.mrf.mxu0
    %v2699 = vadd.f32 %v577, %v2698
    %v2700 = vpop.f32.mrf.mxu0
    %v2701 = vadd.f32 %v577, %v2700
    %2702 = vdwg.mxu0
    %2703 = vmatpush.bf16.msra.mxu0 %v1924
    %2704 = vmatpush.bf16.msra.mxu0 %v1916
    %2705 = vmatpush.bf16.msra.mxu0 %v1908
    %2706 = vmatpush.bf16.msra.mxu0 %v1900
    %2707 = vmatpush.bf16.msra.mxu0 %v1892
    %2708 = vmatpush.bf16.msra.mxu0 %v1884
    %2709 = vmatpush.bf16.msra.mxu0 %v1876
    %2710 = vmatpush.bf16.msra.mxu0 %v1868
    %2711 = vmatmul.bf16.gmra.mxu0 %v615
    %v2712 = vpop.f32.mrf.mxu0
    %v2713 = vadd.f32 %v2699, %v2712
    %v2714 = vpop.f32.mrf.mxu0
    %v2715 = vadd.f32 %v2701, %v2714
    %2716 = vdwg.mxu0
    %2717 = vmatpush.bf16.msra.mxu0 %v1988
    %2718 = vmatpush.bf16.msra.mxu0 %v1980
    %2719 = vmatpush.bf16.msra.mxu0 %v1972
    %2720 = vmatpush.bf16.msra.mxu0 %v1964
    %2721 = vmatpush.bf16.msra.mxu0 %v1956
    %2722 = vmatpush.bf16.msra.mxu0 %v1948
    %2723 = vmatpush.bf16.msra.mxu0 %v1940
    %2724 = vmatpush.bf16.msra.mxu0 %v1932
    %2725 = vmatmul.bf16.gmra.mxu0 %v616
    %v2726 = vpop.f32.mrf.mxu0
    %v2727 = vadd.f32 %v2713, %v2726
    %v2728 = vpop.f32.mrf.mxu0
    %v2729 = vadd.f32 %v2715, %v2728
    %2730 = vdwg.mxu0
    %2731 = vmatpush.bf16.msra.mxu0 %v2052
    %2732 = vmatpush.bf16.msra.mxu0 %v2044
    %2733 = vmatpush.bf16.msra.mxu0 %v2036
    %2734 = vmatpush.bf16.msra.mxu0 %v2028
    %2735 = vmatpush.bf16.msra.mxu0 %v2020
    %2736 = vmatpush.bf16.msra.mxu0 %v2012
    %2737 = vmatpush.bf16.msra.mxu0 %v2004
    %2738 = vmatpush.bf16.msra.mxu0 %v1996
    %2739 = vmatmul.bf16.gmra.mxu0 %v617
    %v2740 = vpop.f32.mrf.mxu0
    %v2741 = vadd.f32 %v2727, %v2740
    %v2742 = vpop.f32.mrf.mxu0
    %v2743 = vadd.f32 %v2729, %v2742
    %2744 = vdwg.mxu0
    %2745 = vmatpush.bf16.msra.mxu0 %v2116
    %2746 = vmatpush.bf16.msra.mxu0 %v2108
    %2747 = vmatpush.bf16.msra.mxu0 %v2100
    %2748 = vmatpush.bf16.msra.mxu0 %v2092
    %2749 = vmatpush.bf16.msra.mxu0 %v2084
    %2750 = vmatpush.bf16.msra.mxu0 %v2076
    %2751 = vmatpush.bf16.msra.mxu0 %v2068
    %2752 = vmatpush.bf16.msra.mxu0 %v2060
    %2753 = vmatmul.bf16.gmra.mxu0 %v618
    %v2754 = vpop.f32.mrf.mxu0
    %v2755 = vadd.f32 %v2741, %v2754
    %v2756 = vpop.f32.mrf.mxu0
    %v2757 = vadd.f32 %v2743, %v2756
    %2758 = vdwg.mxu0
    %2759 = vmatpush.bf16.msra.mxu0 %v2180
    %2760 = vmatpush.bf16.msra.mxu0 %v2172
    %2761 = vmatpush.bf16.msra.mxu0 %v2164
    %2762 = vmatpush.bf16.msra.mxu0 %v2156
    %2763 = vmatpush.bf16.msra.mxu0 %v2148
    %2764 = vmatpush.bf16.msra.mxu0 %v2140
    %2765 = vmatpush.bf16.msra.mxu0 %v2132
    %2766 = vmatpush.bf16.msra.mxu0 %v2124
    %2767 = vmatmul.bf16.gmra.mxu0 %v619
    %v2768 = vpop.f32.mrf.mxu0
    %v2769 = vadd.f32 %v2755, %v2768
    %v2770 = vpop.f32.mrf.mxu0
    %v2771 = vadd.f32 %v2757, %v2770
    %2772 = vdwg.mxu0
    %2773 = vmatpush.bf16.msra.mxu0 0
    %2774 = vmatpush.bf16.msra.mxu0 0
    %2775 = vmatpush.bf16.msra.mxu0 0
    %2776 = vmatpush.bf16.msra.mxu0 0
    %2777 = vmatpush.bf16.msra.mxu0 0
    %2778 = vmatpush.bf16.msra.mxu0 0
    %2779 = vmatpush.bf16.msra.mxu0 0
    %2780 = vmatpush.bf16.msra.mxu0 %v2188
    %2781 = vmatmul.bf16.gmra.mxu0 %v2589
    %v2782 = vpop.f32.mrf.mxu0
    %v2783 = vadd.f32 %v2769, %v2782
    %v2784 = vpop.f32.mrf.mxu0
    %v2785 = vadd.f32 %v2771, %v2784
    %2786 = vdwg.mxu0
    %2787 = vmatpush.bf16.msra.mxu0 %v1861
    %2788 = vmatpush.bf16.msra.mxu0 %v1853
    %2789 = vmatpush.bf16.msra.mxu0 %v1845
    %2790 = vmatpush.bf16.msra.mxu0 %v1837
    %2791 = vmatpush.bf16.msra.mxu0 %v1829
    %2792 = vmatpush.bf16.msra.mxu0 %v1821
    %2793 = vmatpush.bf16.msra.mxu0 %v1813
    %2794 = vmatpush.bf16.msra.mxu0 %v1805
    %2795 = vmatmul.bf16.gmra.mxu0 %v614
    %v2796 = vpop.f32.mrf.mxu0
    %v2797 = vadd.f32 %v578, %v2796
    %v2798 = vpop.f32.mrf.mxu0
    %v2799 = vadd.f32 %v578, %v2798
    %2800 = vdwg.mxu0
    %2801 = vmatpush.bf16.msra.mxu0 %v1925
    %2802 = vmatpush.bf16.msra.mxu0 %v1917
    %2803 = vmatpush.bf16.msra.mxu0 %v1909
    %2804 = vmatpush.bf16.msra.mxu0 %v1901
    %2805 = vmatpush.bf16.msra.mxu0 %v1893
    %2806 = vmatpush.bf16.msra.mxu0 %v1885
    %2807 = vmatpush.bf16.msra.mxu0 %v1877
    %2808 = vmatpush.bf16.msra.mxu0 %v1869
    %2809 = vmatmul.bf16.gmra.mxu0 %v615
    %v2810 = vpop.f32.mrf.mxu0
    %v2811 = vadd.f32 %v2797, %v2810
    %v2812 = vpop.f32.mrf.mxu0
    %v2813 = vadd.f32 %v2799, %v2812
    %2814 = vdwg.mxu0
    %2815 = vmatpush.bf16.msra.mxu0 %v1989
    %2816 = vmatpush.bf16.msra.mxu0 %v1981
    %2817 = vmatpush.bf16.msra.mxu0 %v1973
    %2818 = vmatpush.bf16.msra.mxu0 %v1965
    %2819 = vmatpush.bf16.msra.mxu0 %v1957
    %2820 = vmatpush.bf16.msra.mxu0 %v1949
    %2821 = vmatpush.bf16.msra.mxu0 %v1941
    %2822 = vmatpush.bf16.msra.mxu0 %v1933
    %2823 = vmatmul.bf16.gmra.mxu0 %v616
    %v2824 = vpop.f32.mrf.mxu0
    %v2825 = vadd.f32 %v2811, %v2824
    %v2826 = vpop.f32.mrf.mxu0
    %v2827 = vadd.f32 %v2813, %v2826
    %2828 = vdwg.mxu0
    %2829 = vmatpush.bf16.msra.mxu0 %v2053
    %2830 = vmatpush.bf16.msra.mxu0 %v2045
    %2831 = vmatpush.bf16.msra.mxu0 %v2037
    %2832 = vmatpush.bf16.msra.mxu0 %v2029
    %2833 = vmatpush.bf16.msra.mxu0 %v2021
    %2834 = vmatpush.bf16.msra.mxu0 %v2013
    %2835 = vmatpush.bf16.msra.mxu0 %v2005
    %2836 = vmatpush.bf16.msra.mxu0 %v1997
    %2837 = vmatmul.bf16.gmra.mxu0 %v617
    %v2838 = vpop.f32.mrf.mxu0
    %v2839 = vadd.f32 %v2825, %v2838
    %v2840 = vpop.f32.mrf.mxu0
    %v2841 = vadd.f32 %v2827, %v2840
    %2842 = vdwg.mxu0
    %2843 = vmatpush.bf16.msra.mxu0 %v2117
    %2844 = vmatpush.bf16.msra.mxu0 %v2109
    %2845 = vmatpush.bf16.msra.mxu0 %v2101
    %2846 = vmatpush.bf16.msra.mxu0 %v2093
    %2847 = vmatpush.bf16.msra.mxu0 %v2085
    %2848 = vmatpush.bf16.msra.mxu0 %v2077
    %2849 = vmatpush.bf16.msra.mxu0 %v2069
    %2850 = vmatpush.bf16.msra.mxu0 %v2061
    %2851 = vmatmul.bf16.gmra.mxu0 %v618
    %v2852 = vpop.f32.mrf.mxu0
    %v2853 = vadd.f32 %v2839, %v2852
    %v2854 = vpop.f32.mrf.mxu0
    %v2855 = vadd.f32 %v2841, %v2854
    %2856 = vdwg.mxu0
    %2857 = vmatpush.bf16.msra.mxu0 %v2181
    %2858 = vmatpush.bf16.msra.mxu0 %v2173
    %2859 = vmatpush.bf16.msra.mxu0 %v2165
    %2860 = vmatpush.bf16.msra.mxu0 %v2157
    %2861 = vmatpush.bf16.msra.mxu0 %v2149
    %2862 = vmatpush.bf16.msra.mxu0 %v2141
    %2863 = vmatpush.bf16.msra.mxu0 %v2133
    %2864 = vmatpush.bf16.msra.mxu0 %v2125
    %2865 = vmatmul.bf16.gmra.mxu0 %v619
    %v2866 = vpop.f32.mrf.mxu0
    %v2867 = vadd.f32 %v2853, %v2866
    %v2868 = vpop.f32.mrf.mxu0
    %v2869 = vadd.f32 %v2855, %v2868
    %2870 = vdwg.mxu0
    %2871 = vmatpush.bf16.msra.mxu0 0
    %2872 = vmatpush.bf16.msra.mxu0 0
    %2873 = vmatpush.bf16.msra.mxu0 0
    %2874 = vmatpush.bf16.msra.mxu0 0
    %2875 = vmatpush.bf16.msra.mxu0 0
    %2876 = vmatpush.bf16.msra.mxu0 0
    %2877 = vmatpush.bf16.msra.mxu0 0
    %2878 = vmatpush.bf16.msra.mxu0 %v2189
    %2879 = vmatmul.bf16.gmra.mxu0 %v2589
    %v2880 = vpop.f32.mrf.mxu0
    %v2881 = vadd.f32 %v2867, %v2880
    %v2882 = vpop.f32.mrf.mxu0
    %v2883 = vadd.f32 %v2869, %v2882
    %2884 = vdwg.mxu0
    %2885 = vmatpush.bf16.msra.mxu0 %v1862
    %2886 = vmatpush.bf16.msra.mxu0 %v1854
    %2887 = vmatpush.bf16.msra.mxu0 %v1846
    %2888 = vmatpush.bf16.msra.mxu0 %v1838
    %2889 = vmatpush.bf16.msra.mxu0 %v1830
    %2890 = vmatpush.bf16.msra.mxu0 %v1822
    %2891 = vmatpush.bf16.msra.mxu0 %v1814
    %2892 = vmatpush.bf16.msra.mxu0 %v1806
    %2893 = vmatmul.bf16.gmra.mxu0 %v614
    %v2894 = vpop.f32.mrf.mxu0
    %v2895 = vadd.f32 %v579, %v2894
    %v2896 = vpop.f32.mrf.mxu0
    %v2897 = vadd.f32 %v579, %v2896
    %2898 = vdwg.mxu0
    %2899 = vmatpush.bf16.msra.mxu0 %v1926
    %2900 = vmatpush.bf16.msra.mxu0 %v1918
    %2901 = vmatpush.bf16.msra.mxu0 %v1910
    %2902 = vmatpush.bf16.msra.mxu0 %v1902
    %2903 = vmatpush.bf16.msra.mxu0 %v1894
    %2904 = vmatpush.bf16.msra.mxu0 %v1886
    %2905 = vmatpush.bf16.msra.mxu0 %v1878
    %2906 = vmatpush.bf16.msra.mxu0 %v1870
    %2907 = vmatmul.bf16.gmra.mxu0 %v615
    %v2908 = vpop.f32.mrf.mxu0
    %v2909 = vadd.f32 %v2895, %v2908
    %v2910 = vpop.f32.mrf.mxu0
    %v2911 = vadd.f32 %v2897, %v2910
    %2912 = vdwg.mxu0
    %2913 = vmatpush.bf16.msra.mxu0 %v1990
    %2914 = vmatpush.bf16.msra.mxu0 %v1982
    %2915 = vmatpush.bf16.msra.mxu0 %v1974
    %2916 = vmatpush.bf16.msra.mxu0 %v1966
    %2917 = vmatpush.bf16.msra.mxu0 %v1958
    %2918 = vmatpush.bf16.msra.mxu0 %v1950
    %2919 = vmatpush.bf16.msra.mxu0 %v1942
    %2920 = vmatpush.bf16.msra.mxu0 %v1934
    %2921 = vmatmul.bf16.gmra.mxu0 %v616
    %v2922 = vpop.f32.mrf.mxu0
    %v2923 = vadd.f32 %v2909, %v2922
    %v2924 = vpop.f32.mrf.mxu0
    %v2925 = vadd.f32 %v2911, %v2924
    %2926 = vdwg.mxu0
    %2927 = vmatpush.bf16.msra.mxu0 %v2054
    %2928 = vmatpush.bf16.msra.mxu0 %v2046
    %2929 = vmatpush.bf16.msra.mxu0 %v2038
    %2930 = vmatpush.bf16.msra.mxu0 %v2030
    %2931 = vmatpush.bf16.msra.mxu0 %v2022
    %2932 = vmatpush.bf16.msra.mxu0 %v2014
    %2933 = vmatpush.bf16.msra.mxu0 %v2006
    %2934 = vmatpush.bf16.msra.mxu0 %v1998
    %2935 = vmatmul.bf16.gmra.mxu0 %v617
    %v2936 = vpop.f32.mrf.mxu0
    %v2937 = vadd.f32 %v2923, %v2936
    %v2938 = vpop.f32.mrf.mxu0
    %v2939 = vadd.f32 %v2925, %v2938
    %2940 = vdwg.mxu0
    %2941 = vmatpush.bf16.msra.mxu0 %v2118
    %2942 = vmatpush.bf16.msra.mxu0 %v2110
    %2943 = vmatpush.bf16.msra.mxu0 %v2102
    %2944 = vmatpush.bf16.msra.mxu0 %v2094
    %2945 = vmatpush.bf16.msra.mxu0 %v2086
    %2946 = vmatpush.bf16.msra.mxu0 %v2078
    %2947 = vmatpush.bf16.msra.mxu0 %v2070
    %2948 = vmatpush.bf16.msra.mxu0 %v2062
    %2949 = vmatmul.bf16.gmra.mxu0 %v618
    %v2950 = vpop.f32.mrf.mxu0
    %v2951 = vadd.f32 %v2937, %v2950
    %v2952 = vpop.f32.mrf.mxu0
    %v2953 = vadd.f32 %v2939, %v2952
    %2954 = vdwg.mxu0
    %2955 = vmatpush.bf16.msra.mxu0 %v2182
    %2956 = vmatpush.bf16.msra.mxu0 %v2174
    %2957 = vmatpush.bf16.msra.mxu0 %v2166
    %2958 = vmatpush.bf16.msra.mxu0 %v2158
    %2959 = vmatpush.bf16.msra.mxu0 %v2150
    %2960 = vmatpush.bf16.msra.mxu0 %v2142
    %2961 = vmatpush.bf16.msra.mxu0 %v2134
    %2962 = vmatpush.bf16.msra.mxu0 %v2126
    %2963 = vmatmul.bf16.gmra.mxu0 %v619
    %v2964 = vpop.f32.mrf.mxu0
    %v2965 = vadd.f32 %v2951, %v2964
    %v2966 = vpop.f32.mrf.mxu0
    %v2967 = vadd.f32 %v2953, %v2966
    %2968 = vdwg.mxu0
    %2969 = vmatpush.bf16.msra.mxu0 0
    %2970 = vmatpush.bf16.msra.mxu0 0
    %2971 = vmatpush.bf16.msra.mxu0 0
    %2972 = vmatpush.bf16.msra.mxu0 0
    %2973 = vmatpush.bf16.msra.mxu0 0
    %2974 = vmatpush.bf16.msra.mxu0 0
    %2975 = vmatpush.bf16.msra.mxu0 0
    %2976 = vmatpush.bf16.msra.mxu0 %v2190
    %2977 = vmatmul.bf16.gmra.mxu0 %v2589
    %v2978 = vpop.f32.mrf.mxu0
    %v2979 = vadd.f32 %v2965, %v2978
    %v2980 = vpop.f32.mrf.mxu0
    %v2981 = vadd.f32 %v2967, %v2980
    %2982 = vdwg.mxu0
    %2983 = vmatpush.bf16.msra.mxu0 %v1863
    %2984 = vmatpush.bf16.msra.mxu0 %v1855
    %2985 = vmatpush.bf16.msra.mxu0 %v1847
    %2986 = vmatpush.bf16.msra.mxu0 %v1839
    %2987 = vmatpush.bf16.msra.mxu0 %v1831
    %2988 = vmatpush.bf16.msra.mxu0 %v1823
    %2989 = vmatpush.bf16.msra.mxu0 %v1815
    %2990 = vmatpush.bf16.msra.mxu0 %v1807
    %2991 = vmatmul.bf16.gmra.mxu0 %v614
    %v2992 = vpop.f32.mrf.mxu0
    %v2993 = vadd.f32 %v580, %v2992
    %v2994 = vpop.f32.mrf.mxu0
    %v2995 = vadd.f32 %v580, %v2994
    %2996 = vdwg.mxu0
    %2997 = vmatpush.bf16.msra.mxu0 %v1927
    %2998 = vmatpush.bf16.msra.mxu0 %v1919
    %2999 = vmatpush.bf16.msra.mxu0 %v1911
    %3000 = vmatpush.bf16.msra.mxu0 %v1903
    %3001 = vmatpush.bf16.msra.mxu0 %v1895
    %3002 = vmatpush.bf16.msra.mxu0 %v1887
    %3003 = vmatpush.bf16.msra.mxu0 %v1879
    %3004 = vmatpush.bf16.msra.mxu0 %v1871
    %3005 = vmatmul.bf16.gmra.mxu0 %v615
    %v3006 = vpop.f32.mrf.mxu0
    %v3007 = vadd.f32 %v2993, %v3006
    %v3008 = vpop.f32.mrf.mxu0
    %v3009 = vadd.f32 %v2995, %v3008
    %3010 = vdwg.mxu0
    %3011 = vmatpush.bf16.msra.mxu0 %v1991
    %3012 = vmatpush.bf16.msra.mxu0 %v1983
    %3013 = vmatpush.bf16.msra.mxu0 %v1975
    %3014 = vmatpush.bf16.msra.mxu0 %v1967
    %3015 = vmatpush.bf16.msra.mxu0 %v1959
    %3016 = vmatpush.bf16.msra.mxu0 %v1951
    %3017 = vmatpush.bf16.msra.mxu0 %v1943
    %3018 = vmatpush.bf16.msra.mxu0 %v1935
    %3019 = vmatmul.bf16.gmra.mxu0 %v616
    %v3020 = vpop.f32.mrf.mxu0
    %v3021 = vadd.f32 %v3007, %v3020
    %v3022 = vpop.f32.mrf.mxu0
    %v3023 = vadd.f32 %v3009, %v3022
    %3024 = vdwg.mxu0
    %3025 = vmatpush.bf16.msra.mxu0 %v2055
    %3026 = vmatpush.bf16.msra.mxu0 %v2047
    %3027 = vmatpush.bf16.msra.mxu0 %v2039
    %3028 = vmatpush.bf16.msra.mxu0 %v2031
    %3029 = vmatpush.bf16.msra.mxu0 %v2023
    %3030 = vmatpush.bf16.msra.mxu0 %v2015
    %3031 = vmatpush.bf16.msra.mxu0 %v2007
    %3032 = vmatpush.bf16.msra.mxu0 %v1999
    %3033 = vmatmul.bf16.gmra.mxu0 %v617
    %v3034 = vpop.f32.mrf.mxu0
    %v3035 = vadd.f32 %v3021, %v3034
    %v3036 = vpop.f32.mrf.mxu0
    %v3037 = vadd.f32 %v3023, %v3036
    %3038 = vdwg.mxu0
    %3039 = vmatpush.bf16.msra.mxu0 %v2119
    %3040 = vmatpush.bf16.msra.mxu0 %v2111
    %3041 = vmatpush.bf16.msra.mxu0 %v2103
    %3042 = vmatpush.bf16.msra.mxu0 %v2095
    %3043 = vmatpush.bf16.msra.mxu0 %v2087
    %3044 = vmatpush.bf16.msra.mxu0 %v2079
    %3045 = vmatpush.bf16.msra.mxu0 %v2071
    %3046 = vmatpush.bf16.msra.mxu0 %v2063
    %3047 = vmatmul.bf16.gmra.mxu0 %v618
    %v3048 = vpop.f32.mrf.mxu0
    %v3049 = vadd.f32 %v3035, %v3048
    %v3050 = vpop.f32.mrf.mxu0
    %v3051 = vadd.f32 %v3037, %v3050
    %3052 = vdwg.mxu0
    %3053 = vmatpush.bf16.msra.mxu0 %v2183
    %3054 = vmatpush.bf16.msra.mxu0 %v2175
    %3055 = vmatpush.bf16.msra.mxu0 %v2167
    %3056 = vmatpush.bf16.msra.mxu0 %v2159
    %3057 = vmatpush.bf16.msra.mxu0 %v2151
    %3058 = vmatpush.bf16.msra.mxu0 %v2143
    %3059 = vmatpush.bf16.msra.mxu0 %v2135
    %3060 = vmatpush.bf16.msra.mxu0 %v2127
    %3061 = vmatmul.bf16.gmra.mxu0 %v619
    %v3062 = vpop.f32.mrf.mxu0
    %v3063 = vadd.f32 %v3049, %v3062
    %v3064 = vpop.f32.mrf.mxu0
    %v3065 = vadd.f32 %v3051, %v3064
    %3066 = vdwg.mxu0
    %3067 = vmatpush.bf16.msra.mxu0 0
    %3068 = vmatpush.bf16.msra.mxu0 0
    %3069 = vmatpush.bf16.msra.mxu0 0
    %3070 = vmatpush.bf16.msra.mxu0 0
    %3071 = vmatpush.bf16.msra.mxu0 0
    %3072 = vmatpush.bf16.msra.mxu0 0
    %3073 = vmatpush.bf16.msra.mxu0 0
    %3074 = vmatpush.bf16.msra.mxu0 %v2191
    %3075 = vmatmul.bf16.gmra.mxu0 %v2589
    %v3076 = vpop.f32.mrf.mxu0
    %v3077 = vadd.f32 %v3063, %v3076
    %v3078 = vpop.f32.mrf.mxu0
    %v3079 = vadd.f32 %v3065, %v3078
    %3080 = vdwg.mxu0
    %3081 = vmatpush.bf16.msra.mxu0 %v1864
    %3082 = vmatpush.bf16.msra.mxu0 %v1856
    %3083 = vmatpush.bf16.msra.mxu0 %v1848
    %3084 = vmatpush.bf16.msra.mxu0 %v1840
    %3085 = vmatpush.bf16.msra.mxu0 %v1832
    %3086 = vmatpush.bf16.msra.mxu0 %v1824
    %3087 = vmatpush.bf16.msra.mxu0 %v1816
    %3088 = vmatpush.bf16.msra.mxu0 %v1808
    %3089 = vmatmul.bf16.gmra.mxu0 %v614
    %v3090 = vpop.f32.mrf.mxu0
    %v3091 = vadd.f32 %v581, %v3090
    %v3092 = vpop.f32.mrf.mxu0
    %v3093 = vadd.f32 %v581, %v3092
    %3094 = vdwg.mxu0
    %3095 = vmatpush.bf16.msra.mxu0 %v1928
    %3096 = vmatpush.bf16.msra.mxu0 %v1920
    %3097 = vmatpush.bf16.msra.mxu0 %v1912
    %3098 = vmatpush.bf16.msra.mxu0 %v1904
    %3099 = vmatpush.bf16.msra.mxu0 %v1896
    %3100 = vmatpush.bf16.msra.mxu0 %v1888
    %3101 = vmatpush.bf16.msra.mxu0 %v1880
    %3102 = vmatpush.bf16.msra.mxu0 %v1872
    %3103 = vmatmul.bf16.gmra.mxu0 %v615
    %v3104 = vpop.f32.mrf.mxu0
    %v3105 = vadd.f32 %v3091, %v3104
    %v3106 = vpop.f32.mrf.mxu0
    %v3107 = vadd.f32 %v3093, %v3106
    %3108 = vdwg.mxu0
    %3109 = vmatpush.bf16.msra.mxu0 %v1992
    %3110 = vmatpush.bf16.msra.mxu0 %v1984
    %3111 = vmatpush.bf16.msra.mxu0 %v1976
    %3112 = vmatpush.bf16.msra.mxu0 %v1968
    %3113 = vmatpush.bf16.msra.mxu0 %v1960
    %3114 = vmatpush.bf16.msra.mxu0 %v1952
    %3115 = vmatpush.bf16.msra.mxu0 %v1944
    %3116 = vmatpush.bf16.msra.mxu0 %v1936
    %3117 = vmatmul.bf16.gmra.mxu0 %v616
    %v3118 = vpop.f32.mrf.mxu0
    %v3119 = vadd.f32 %v3105, %v3118
    %v3120 = vpop.f32.mrf.mxu0
    %v3121 = vadd.f32 %v3107, %v3120
    %3122 = vdwg.mxu0
    %3123 = vmatpush.bf16.msra.mxu0 %v2056
    %3124 = vmatpush.bf16.msra.mxu0 %v2048
    %3125 = vmatpush.bf16.msra.mxu0 %v2040
    %3126 = vmatpush.bf16.msra.mxu0 %v2032
    %3127 = vmatpush.bf16.msra.mxu0 %v2024
    %3128 = vmatpush.bf16.msra.mxu0 %v2016
    %3129 = vmatpush.bf16.msra.mxu0 %v2008
    %3130 = vmatpush.bf16.msra.mxu0 %v2000
    %3131 = vmatmul.bf16.gmra.mxu0 %v617
    %v3132 = vpop.f32.mrf.mxu0
    %v3133 = vadd.f32 %v3119, %v3132
    %v3134 = vpop.f32.mrf.mxu0
    %v3135 = vadd.f32 %v3121, %v3134
    %3136 = vdwg.mxu0
    %3137 = vmatpush.bf16.msra.mxu0 %v2120
    %3138 = vmatpush.bf16.msra.mxu0 %v2112
    %3139 = vmatpush.bf16.msra.mxu0 %v2104
    %3140 = vmatpush.bf16.msra.mxu0 %v2096
    %3141 = vmatpush.bf16.msra.mxu0 %v2088
    %3142 = vmatpush.bf16.msra.mxu0 %v2080
    %3143 = vmatpush.bf16.msra.mxu0 %v2072
    %3144 = vmatpush.bf16.msra.mxu0 %v2064
    %3145 = vmatmul.bf16.gmra.mxu0 %v618
    %v3146 = vpop.f32.mrf.mxu0
    %v3147 = vadd.f32 %v3133, %v3146
    %v3148 = vpop.f32.mrf.mxu0
    %v3149 = vadd.f32 %v3135, %v3148
    %3150 = vdwg.mxu0
    %3151 = vmatpush.bf16.msra.mxu0 %v2184
    %3152 = vmatpush.bf16.msra.mxu0 %v2176
    %3153 = vmatpush.bf16.msra.mxu0 %v2168
    %3154 = vmatpush.bf16.msra.mxu0 %v2160
    %3155 = vmatpush.bf16.msra.mxu0 %v2152
    %3156 = vmatpush.bf16.msra.mxu0 %v2144
    %3157 = vmatpush.bf16.msra.mxu0 %v2136
    %3158 = vmatpush.bf16.msra.mxu0 %v2128
    %3159 = vmatmul.bf16.gmra.mxu0 %v619
    %v3160 = vpop.f32.mrf.mxu0
    %v3161 = vadd.f32 %v3147, %v3160
    %v3162 = vpop.f32.mrf.mxu0
    %v3163 = vadd.f32 %v3149, %v3162
    %3164 = vdwg.mxu0
    %3165 = vmatpush.bf16.msra.mxu0 0
    %3166 = vmatpush.bf16.msra.mxu0 0
    %3167 = vmatpush.bf16.msra.mxu0 0
    %3168 = vmatpush.bf16.msra.mxu0 0
    %3169 = vmatpush.bf16.msra.mxu0 0
    %3170 = vmatpush.bf16.msra.mxu0 0
    %3171 = vmatpush.bf16.msra.mxu0 0
    %3172 = vmatpush.bf16.msra.mxu0 %v2192
    %3173 = vmatmul.bf16.gmra.mxu0 %v2589
    %v3174 = vpop.f32.mrf.mxu0
    %v3175 = vadd.f32 %v3161, %v3174
    %v3176 = vpop.f32.mrf.mxu0
    %v3177 = vadd.f32 %v3163, %v3176
    %3178 = vdwg.mxu0
    %3179 = vmatpush.bf16.msra.mxu0 %v1865
    %3180 = vmatpush.bf16.msra.mxu0 %v1857
    %3181 = vmatpush.bf16.msra.mxu0 %v1849
    %3182 = vmatpush.bf16.msra.mxu0 %v1841
    %3183 = vmatpush.bf16.msra.mxu0 %v1833
    %3184 = vmatpush.bf16.msra.mxu0 %v1825
    %3185 = vmatpush.bf16.msra.mxu0 %v1817
    %3186 = vmatpush.bf16.msra.mxu0 %v1809
    %3187 = vmatmul.bf16.gmra.mxu0 %v614
    %v3188 = vpop.f32.mrf.mxu0
    %v3189 = vadd.f32 %v582, %v3188
    %v3190 = vpop.f32.mrf.mxu0
    %v3191 = vadd.f32 %v582, %v3190
    %3192 = vdwg.mxu0
    %3193 = vmatpush.bf16.msra.mxu0 %v1929
    %3194 = vmatpush.bf16.msra.mxu0 %v1921
    %3195 = vmatpush.bf16.msra.mxu0 %v1913
    %3196 = vmatpush.bf16.msra.mxu0 %v1905
    %3197 = vmatpush.bf16.msra.mxu0 %v1897
    %3198 = vmatpush.bf16.msra.mxu0 %v1889
    %3199 = vmatpush.bf16.msra.mxu0 %v1881
    %3200 = vmatpush.bf16.msra.mxu0 %v1873
    %3201 = vmatmul.bf16.gmra.mxu0 %v615
    %v3202 = vpop.f32.mrf.mxu0
    %v3203 = vadd.f32 %v3189, %v3202
    %v3204 = vpop.f32.mrf.mxu0
    %v3205 = vadd.f32 %v3191, %v3204
    %3206 = vdwg.mxu0
    %3207 = vmatpush.bf16.msra.mxu0 %v1993
    %3208 = vmatpush.bf16.msra.mxu0 %v1985
    %3209 = vmatpush.bf16.msra.mxu0 %v1977
    %3210 = vmatpush.bf16.msra.mxu0 %v1969
    %3211 = vmatpush.bf16.msra.mxu0 %v1961
    %3212 = vmatpush.bf16.msra.mxu0 %v1953
    %3213 = vmatpush.bf16.msra.mxu0 %v1945
    %3214 = vmatpush.bf16.msra.mxu0 %v1937
    %3215 = vmatmul.bf16.gmra.mxu0 %v616
    %v3216 = vpop.f32.mrf.mxu0
    %v3217 = vadd.f32 %v3203, %v3216
    %v3218 = vpop.f32.mrf.mxu0
    %v3219 = vadd.f32 %v3205, %v3218
    %3220 = vdwg.mxu0
    %3221 = vmatpush.bf16.msra.mxu0 %v2057
    %3222 = vmatpush.bf16.msra.mxu0 %v2049
    %3223 = vmatpush.bf16.msra.mxu0 %v2041
    %3224 = vmatpush.bf16.msra.mxu0 %v2033
    %3225 = vmatpush.bf16.msra.mxu0 %v2025
    %3226 = vmatpush.bf16.msra.mxu0 %v2017
    %3227 = vmatpush.bf16.msra.mxu0 %v2009
    %3228 = vmatpush.bf16.msra.mxu0 %v2001
    %3229 = vmatmul.bf16.gmra.mxu0 %v617
    %v3230 = vpop.f32.mrf.mxu0
    %v3231 = vadd.f32 %v3217, %v3230
    %v3232 = vpop.f32.mrf.mxu0
    %v3233 = vadd.f32 %v3219, %v3232
    %3234 = vdwg.mxu0
    %3235 = vmatpush.bf16.msra.mxu0 %v2121
    %3236 = vmatpush.bf16.msra.mxu0 %v2113
    %3237 = vmatpush.bf16.msra.mxu0 %v2105
    %3238 = vmatpush.bf16.msra.mxu0 %v2097
    %3239 = vmatpush.bf16.msra.mxu0 %v2089
    %3240 = vmatpush.bf16.msra.mxu0 %v2081
    %3241 = vmatpush.bf16.msra.mxu0 %v2073
    %3242 = vmatpush.bf16.msra.mxu0 %v2065
    %3243 = vmatmul.bf16.gmra.mxu0 %v618
    %v3244 = vpop.f32.mrf.mxu0
    %v3245 = vadd.f32 %v3231, %v3244
    %v3246 = vpop.f32.mrf.mxu0
    %v3247 = vadd.f32 %v3233, %v3246
    %3248 = vdwg.mxu0
    %3249 = vmatpush.bf16.msra.mxu0 %v2185
    %3250 = vmatpush.bf16.msra.mxu0 %v2177
    %3251 = vmatpush.bf16.msra.mxu0 %v2169
    %3252 = vmatpush.bf16.msra.mxu0 %v2161
    %3253 = vmatpush.bf16.msra.mxu0 %v2153
    %3254 = vmatpush.bf16.msra.mxu0 %v2145
    %3255 = vmatpush.bf16.msra.mxu0 %v2137
    %3256 = vmatpush.bf16.msra.mxu0 %v2129
    %3257 = vmatmul.bf16.gmra.mxu0 %v619
    %v3258 = vpop.f32.mrf.mxu0
    %v3259 = vadd.f32 %v3245, %v3258
    %v3260 = vpop.f32.mrf.mxu0
    %v3261 = vadd.f32 %v3247, %v3260
    %3262 = vdwg.mxu0
    %3263 = vmatpush.bf16.msra.mxu0 0
    %3264 = vmatpush.bf16.msra.mxu0 0
    %3265 = vmatpush.bf16.msra.mxu0 0
    %3266 = vmatpush.bf16.msra.mxu0 0
    %3267 = vmatpush.bf16.msra.mxu0 0
    %3268 = vmatpush.bf16.msra.mxu0 0
    %3269 = vmatpush.bf16.msra.mxu0 0
    %3270 = vmatpush.bf16.msra.mxu0 %v2193
    %3271 = vmatmul.bf16.gmra.mxu0 %v2589
    %v3272 = vpop.f32.mrf.mxu0
    %v3273 = vadd.f32 %v3259, %v3272
    %v3274 = vpop.f32.mrf.mxu0
    %v3275 = vadd.f32 %v3261, %v3274
    %3276 = vdwg.mxu0
    %3277 = vmatpush.bf16.msra.mxu0 %v1866
    %3278 = vmatpush.bf16.msra.mxu0 %v1858
    %3279 = vmatpush.bf16.msra.mxu0 %v1850
    %3280 = vmatpush.bf16.msra.mxu0 %v1842
    %3281 = vmatpush.bf16.msra.mxu0 %v1834
    %3282 = vmatpush.bf16.msra.mxu0 %v1826
    %3283 = vmatpush.bf16.msra.mxu0 %v1818
    %3284 = vmatpush.bf16.msra.mxu0 %v1810
    %3285 = vmatmul.bf16.gmra.mxu0 %v614
    %v3286 = vpop.f32.mrf.mxu0
    %v3287 = vadd.f32 %v583, %v3286
    %v3288 = vpop.f32.mrf.mxu0
    %v3289 = vadd.f32 %v583, %v3288
    %3290 = vdwg.mxu0
    %3291 = vmatpush.bf16.msra.mxu0 %v1930
    %3292 = vmatpush.bf16.msra.mxu0 %v1922
    %3293 = vmatpush.bf16.msra.mxu0 %v1914
    %3294 = vmatpush.bf16.msra.mxu0 %v1906
    %3295 = vmatpush.bf16.msra.mxu0 %v1898
    %3296 = vmatpush.bf16.msra.mxu0 %v1890
    %3297 = vmatpush.bf16.msra.mxu0 %v1882
    %3298 = vmatpush.bf16.msra.mxu0 %v1874
    %3299 = vmatmul.bf16.gmra.mxu0 %v615
    %v3300 = vpop.f32.mrf.mxu0
    %v3301 = vadd.f32 %v3287, %v3300
    %v3302 = vpop.f32.mrf.mxu0
    %v3303 = vadd.f32 %v3289, %v3302
    %3304 = vdwg.mxu0
    %3305 = vmatpush.bf16.msra.mxu0 %v1994
    %3306 = vmatpush.bf16.msra.mxu0 %v1986
    %3307 = vmatpush.bf16.msra.mxu0 %v1978
    %3308 = vmatpush.bf16.msra.mxu0 %v1970
    %3309 = vmatpush.bf16.msra.mxu0 %v1962
    %3310 = vmatpush.bf16.msra.mxu0 %v1954
    %3311 = vmatpush.bf16.msra.mxu0 %v1946
    %3312 = vmatpush.bf16.msra.mxu0 %v1938
    %3313 = vmatmul.bf16.gmra.mxu0 %v616
    %v3314 = vpop.f32.mrf.mxu0
    %v3315 = vadd.f32 %v3301, %v3314
    %v3316 = vpop.f32.mrf.mxu0
    %v3317 = vadd.f32 %v3303, %v3316
    %3318 = vdwg.mxu0
    %3319 = vmatpush.bf16.msra.mxu0 %v2058
    %3320 = vmatpush.bf16.msra.mxu0 %v2050
    %3321 = vmatpush.bf16.msra.mxu0 %v2042
    %3322 = vmatpush.bf16.msra.mxu0 %v2034
    %3323 = vmatpush.bf16.msra.mxu0 %v2026
    %3324 = vmatpush.bf16.msra.mxu0 %v2018
    %3325 = vmatpush.bf16.msra.mxu0 %v2010
    %3326 = vmatpush.bf16.msra.mxu0 %v2002
    %3327 = vmatmul.bf16.gmra.mxu0 %v617
    %v3328 = vpop.f32.mrf.mxu0
    %v3329 = vadd.f32 %v3315, %v3328
    %v3330 = vpop.f32.mrf.mxu0
    %v3331 = vadd.f32 %v3317, %v3330
    %3332 = vdwg.mxu0
    %3333 = vmatpush.bf16.msra.mxu0 %v2122
    %3334 = vmatpush.bf16.msra.mxu0 %v2114
    %3335 = vmatpush.bf16.msra.mxu0 %v2106
    %3336 = vmatpush.bf16.msra.mxu0 %v2098
    %3337 = vmatpush.bf16.msra.mxu0 %v2090
    %3338 = vmatpush.bf16.msra.mxu0 %v2082
    %3339 = vmatpush.bf16.msra.mxu0 %v2074
    %3340 = vmatpush.bf16.msra.mxu0 %v2066
    %3341 = vmatmul.bf16.gmra.mxu0 %v618
    %v3342 = vpop.f32.mrf.mxu0
    %v3343 = vadd.f32 %v3329, %v3342
    %v3344 = vpop.f32.mrf.mxu0
    %v3345 = vadd.f32 %v3331, %v3344
    %3346 = vdwg.mxu0
    %3347 = vmatpush.bf16.msra.mxu0 %v2186
    %3348 = vmatpush.bf16.msra.mxu0 %v2178
    %3349 = vmatpush.bf16.msra.mxu0 %v2170
    %3350 = vmatpush.bf16.msra.mxu0 %v2162
    %3351 = vmatpush.bf16.msra.mxu0 %v2154
    %3352 = vmatpush.bf16.msra.mxu0 %v2146
    %3353 = vmatpush.bf16.msra.mxu0 %v2138
    %3354 = vmatpush.bf16.msra.mxu0 %v2130
    %3355 = vmatmul.bf16.gmra.mxu0 %v619
    %v3356 = vpop.f32.mrf.mxu0
    %v3357 = vadd.f32 %v3343, %v3356
    %v3358 = vpop.f32.mrf.mxu0
    %v3359 = vadd.f32 %v3345, %v3358
    %3360 = vdwg.mxu0
    %3361 = vmatpush.bf16.msra.mxu0 0
    %3362 = vmatpush.bf16.msra.mxu0 0
    %3363 = vmatpush.bf16.msra.mxu0 0
    %3364 = vmatpush.bf16.msra.mxu0 0
    %3365 = vmatpush.bf16.msra.mxu0 0
    %3366 = vmatpush.bf16.msra.mxu0 0
    %3367 = vmatpush.bf16.msra.mxu0 0
    %3368 = vmatpush.bf16.msra.mxu0 %v2194
    %3369 = vmatmul.bf16.gmra.mxu0 %v2589
    %v3370 = vpop.f32.mrf.mxu0
    %v3371 = vadd.f32 %v3357, %v3370
    %v3372 = vpop.f32.mrf.mxu0
    %v3373 = vadd.f32 %v3359, %v3372
    %3374 = vdwg.mxu0
    %v3375 = vpack.c.bf16 %v2783, %v2685
    %v3376 = vpack.c.bf16 %v2979, %v2881
    %v3377 = vpack.c.bf16 %v3175, %v3077
    %v3378 = vpack.c.bf16 %v3371, %v3273
    %v3379 = vpack.c.bf16 %v2785, %v2687
    %v3380 = vpack.c.bf16 %v2981, %v2883
    %v3381 = vpack.c.bf16 %v3177, %v3079
    %v3382 = vpack.c.bf16 %v3373, %v3275
    %v3383 = vunpack.c.l.bf16 %v3375
    %v3384 = vunpack.c.h.bf16 %v3375
    %v3385 = vunpack.c.l.bf16 %v3376
    %v3386 = vunpack.c.h.bf16 %v3376
    %v3387 = vunpack.c.l.bf16 %v3377
    %v3388 = vunpack.c.h.bf16 %v3377
    %v3389 = vunpack.c.l.bf16 %v3378
    %v3390 = vunpack.c.h.bf16 %v3378
    %v3391 = vunpack.c.l.bf16 %v3379
    %v3392 = vunpack.c.h.bf16 %v3379
    %v3393 = vunpack.c.l.bf16 %v3380
    %v3394 = vunpack.c.h.bf16 %v3380
    %v3395 = vunpack.c.l.bf16 %v3381
    %v3396 = vunpack.c.h.bf16 %v3381
    %v3397 = vunpack.c.l.bf16 %v3382
    %v3398 = vunpack.c.h.bf16 %v3382
    %v3399 = vmul.f32 %v3383, 0.20019531
    %v3400 = vmul.f32 %v3384, 0.20019531
    %v3401 = vmul.f32 %v3385, 0.20019531
    %v3402 = vmul.f32 %v3386, 0.20019531
    %v3403 = vmul.f32 %v3387, 0.20019531
    %v3404 = vmul.f32 %v3388, 0.20019531
    %v3405 = vmul.f32 %v3389, 0.20019531
    %v3406 = vmul.f32 %v3390, 0.20019531
    %v3407 = vmul.f32 %v3391, 0.20019531
    %v3408 = vmul.f32 %v3392, 0.20019531
    %v3409 = vmul.f32 %v3393, 0.20019531
    %v3410 = vmul.f32 %v3394, 0.20019531
    %v3411 = vmul.f32 %v3395, 0.20019531
    %v3412 = vmul.f32 %v3396, 0.20019531
    %v3413 = vmul.f32 %v3397, 0.20019531
    %v3414 = vmul.f32 %v3398, 0.20019531
    %v3415 = vpack.c.bf16 %v3400, %v3399
    %v3416 = vpack.c.bf16 %v3402, %v3401
    %v3417 = vpack.c.bf16 %v3404, %v3403
    %v3418 = vpack.c.bf16 %v3406, %v3405
    %v3419 = vpack.c.bf16 %v3408, %v3407
    %v3420 = vpack.c.bf16 %v3410, %v3409
    %v3421 = vpack.c.bf16 %v3412, %v3411
    %v3422 = vpack.c.bf16 %v3414, %v3413
    %v3423 = vunpack.c.l.bf16 %v3415
    %v3424 = vunpack.c.h.bf16 %v3415
    %v3425 = vunpack.c.l.bf16 %v3416
    %v3426 = vunpack.c.h.bf16 %v3416
    %v3427 = vunpack.c.l.bf16 %v3417
    %v3428 = vunpack.c.h.bf16 %v3417
    %v3429 = vunpack.c.l.bf16 %v3418
    %v3430 = vunpack.c.h.bf16 %v3418
    %v3431 = vunpack.c.l.bf16 %v3419
    %v3432 = vunpack.c.h.bf16 %v3419
    %v3433 = vunpack.c.l.bf16 %v3420
    %v3434 = vunpack.c.h.bf16 %v3420
    %v3435 = vunpack.c.l.bf16 %v3421
    %v3436 = vunpack.c.h.bf16 %v3421
    %v3437 = vunpack.c.l.bf16 %v3422
    %v3438 = vunpack.c.h.bf16 %v3422
    %v3439 = vmax.f32 %v3383, %v3423
    %v3440 = vmax.f32 %v3384, %v3424
    %v3441 = vmax.f32 %v3385, %v3425
    %v3442 = vmax.f32 %v3386, %v3426
    %v3443 = vmax.f32 %v3387, %v3427
    %v3444 = vmax.f32 %v3388, %v3428
    %v3445 = vmax.f32 %v3389, %v3429
    %v3446 = vmax.f32 %v3390, %v3430
    %v3447 = vmax.f32 %v3391, %v3431
    %v3448 = vmax.f32 %v3392, %v3432
    %v3449 = vmax.f32 %v3393, %v3433
    %v3450 = vmax.f32 %v3394, %v3434
    %v3451 = vmax.f32 %v3395, %v3435
    %v3452 = vmax.f32 %v3396, %v3436
    %v3453 = vmax.f32 %v3397, %v3437
    %v3454 = vmax.f32 %v3398, %v3438
    %v3455 = vpack.c.bf16 %v3440, %v3439
    %v3456 = vpack.c.bf16 %v3442, %v3441
    %v3457 = vpack.c.bf16 %v3444, %v3443
    %v3458 = vpack.c.bf16 %v3446, %v3445
    %v3459 = vpack.c.bf16 %v3448, %v3447
    %v3460 = vpack.c.bf16 %v3450, %v3449
    %v3461 = vpack.c.bf16 %v3452, %v3451
    %v3462 = vpack.c.bf16 %v3454, %v3453
    %s3463 = sadd.s32 %s173, 1013904242
    %v3464 = vlaneseq
    %v3465 = vshrl.u32 %v3464, 7
    %v3466 = vadd.s32 %v3465, 8
    %v3467 = vstv %s3463
    %v3468 = vadd.s32 %v3465, %v3467
    %v3469 = vadd.s32 %v3466, %v3467
    %v3470 = vlaneseq
    %v3471 = vand.u32 %v3470, 127
    %v3472 = vadd.s32 %v3471, 128
    %v3473 = vadd.s32 %v3471, 256
    %v3474 = vadd.s32 %v3471, 384
    %v3475 = vadd.s32 %v3471, 512
    %v3476 = vadd.s32 %v3471, 640
    %v3477 = vadd.s32 %v3471, 768
    %v3478 = vadd.s32 %v3471, 896
    %v3479 = vmul.u32 %v3468, 2654435761
    %v3480 = vmul.u32 %v3469, 2654435761
    %v3481 = vmul.u32 %v3471, 2246822519
    %v3482 = vmul.u32 %v3472, 2246822519
    %v3483 = vmul.u32 %v3473, 2246822519
    %v3484 = vmul.u32 %v3474, 2246822519
    %v3485 = vmul.u32 %v3475, 2246822519
    %v3486 = vmul.u32 %v3476, 2246822519
    %v3487 = vmul.u32 %v3477, 2246822519
    %v3488 = vmul.u32 %v3478, 2246822519
    %v3489 = vxor.u32 %v3479, %v3481
    %v3490 = vxor.u32 %v3479, %v3482
    %v3491 = vxor.u32 %v3479, %v3483
    %v3492 = vxor.u32 %v3479, %v3484
    %v3493 = vxor.u32 %v3479, %v3485
    %v3494 = vxor.u32 %v3479, %v3486
    %v3495 = vxor.u32 %v3479, %v3487
    %v3496 = vxor.u32 %v3479, %v3488
    %v3497 = vxor.u32 %v3480, %v3481
    %v3498 = vxor.u32 %v3480, %v3482
    %v3499 = vxor.u32 %v3480, %v3483
    %v3500 = vxor.u32 %v3480, %v3484
    %v3501 = vxor.u32 %v3480, %v3485
    %v3502 = vxor.u32 %v3480, %v3486
    %v3503 = vxor.u32 %v3480, %v3487
    %v3504 = vxor.u32 %v3480, %v3488
    %v3505 = vshrl.u32 %v3489, 16
    %v3506 = vshrl.u32 %v3490, 16
    %v3507 = vshrl.u32 %v3491, 16
    %v3508 = vshrl.u32 %v3492, 16
    %v3509 = vshrl.u32 %v3493, 16
    %v3510 = vshrl.u32 %v3494, 16
    %v3511 = vshrl.u32 %v3495, 16
    %v3512 = vshrl.u32 %v3496, 16
    %v3513 = vshrl.u32 %v3497, 16
    %v3514 = vshrl.u32 %v3498, 16
    %v3515 = vshrl.u32 %v3499, 16
    %v3516 = vshrl.u32 %v3500, 16
    %v3517 = vshrl.u32 %v3501, 16
    %v3518 = vshrl.u32 %v3502, 16
    %v3519 = vshrl.u32 %v3503, 16
    %v3520 = vshrl.u32 %v3504, 16
    %v3521 = vxor.u32 %v3489, %v3505
    %v3522 = vxor.u32 %v3490, %v3506
    %v3523 = vxor.u32 %v3491, %v3507
    %v3524 = vxor.u32 %v3492, %v3508
    %v3525 = vxor.u32 %v3493, %v3509
    %v3526 = vxor.u32 %v3494, %v3510
    %v3527 = vxor.u32 %v3495, %v3511
    %v3528 = vxor.u32 %v3496, %v3512
    %v3529 = vxor.u32 %v3497, %v3513
    %v3530 = vxor.u32 %v3498, %v3514
    %v3531 = vxor.u32 %v3499, %v3515
    %v3532 = vxor.u32 %v3500, %v3516
    %v3533 = vxor.u32 %v3501, %v3517
    %v3534 = vxor.u32 %v3502, %v3518
    %v3535 = vxor.u32 %v3503, %v3519
    %v3536 = vxor.u32 %v3504, %v3520
    %v3537 = vmul.u32 %v3521, 2146121005
    %v3538 = vmul.u32 %v3522, 2146121005
    %v3539 = vmul.u32 %v3523, 2146121005
    %v3540 = vmul.u32 %v3524, 2146121005
    %v3541 = vmul.u32 %v3525, 2146121005
    %v3542 = vmul.u32 %v3526, 2146121005
    %v3543 = vmul.u32 %v3527, 2146121005
    %v3544 = vmul.u32 %v3528, 2146121005
    %v3545 = vmul.u32 %v3529, 2146121005
    %v3546 = vmul.u32 %v3530, 2146121005
    %v3547 = vmul.u32 %v3531, 2146121005
    %v3548 = vmul.u32 %v3532, 2146121005
    %v3549 = vmul.u32 %v3533, 2146121005
    %v3550 = vmul.u32 %v3534, 2146121005
    %v3551 = vmul.u32 %v3535, 2146121005
    %v3552 = vmul.u32 %v3536, 2146121005
    %v3553 = vshrl.u32 %v3537, 15
    %v3554 = vshrl.u32 %v3538, 15
    %v3555 = vshrl.u32 %v3539, 15
    %v3556 = vshrl.u32 %v3540, 15
    %v3557 = vshrl.u32 %v3541, 15
    %v3558 = vshrl.u32 %v3542, 15
    %v3559 = vshrl.u32 %v3543, 15
    %v3560 = vshrl.u32 %v3544, 15
    %v3561 = vshrl.u32 %v3545, 15
    %v3562 = vshrl.u32 %v3546, 15
    %v3563 = vshrl.u32 %v3547, 15
    %v3564 = vshrl.u32 %v3548, 15
    %v3565 = vshrl.u32 %v3549, 15
    %v3566 = vshrl.u32 %v3550, 15
    %v3567 = vshrl.u32 %v3551, 15
    %v3568 = vshrl.u32 %v3552, 15
    %v3569 = vxor.u32 %v3537, %v3553
    %v3570 = vxor.u32 %v3538, %v3554
    %v3571 = vxor.u32 %v3539, %v3555
    %v3572 = vxor.u32 %v3540, %v3556
    %v3573 = vxor.u32 %v3541, %v3557
    %v3574 = vxor.u32 %v3542, %v3558
    %v3575 = vxor.u32 %v3543, %v3559
    %v3576 = vxor.u32 %v3544, %v3560
    %v3577 = vxor.u32 %v3545, %v3561
    %v3578 = vxor.u32 %v3546, %v3562
    %v3579 = vxor.u32 %v3547, %v3563
    %v3580 = vxor.u32 %v3548, %v3564
    %v3581 = vxor.u32 %v3549, %v3565
    %v3582 = vxor.u32 %v3550, %v3566
    %v3583 = vxor.u32 %v3551, %v3567
    %v3584 = vxor.u32 %v3552, %v3568
    %v3585 = vmul.u32 %v3569, 2221713035
    %v3586 = vmul.u32 %v3570, 2221713035
    %v3587 = vmul.u32 %v3571, 2221713035
    %v3588 = vmul.u32 %v3572, 2221713035
    %v3589 = vmul.u32 %v3573, 2221713035
    %v3590 = vmul.u32 %v3574, 2221713035
    %v3591 = vmul.u32 %v3575, 2221713035
    %v3592 = vmul.u32 %v3576, 2221713035
    %v3593 = vmul.u32 %v3577, 2221713035
    %v3594 = vmul.u32 %v3578, 2221713035
    %v3595 = vmul.u32 %v3579, 2221713035
    %v3596 = vmul.u32 %v3580, 2221713035
    %v3597 = vmul.u32 %v3581, 2221713035
    %v3598 = vmul.u32 %v3582, 2221713035
    %v3599 = vmul.u32 %v3583, 2221713035
    %v3600 = vmul.u32 %v3584, 2221713035
    %v3601 = vshrl.u32 %v3585, 16
    %v3602 = vshrl.u32 %v3586, 16
    %v3603 = vshrl.u32 %v3587, 16
    %v3604 = vshrl.u32 %v3588, 16
    %v3605 = vshrl.u32 %v3589, 16
    %v3606 = vshrl.u32 %v3590, 16
    %v3607 = vshrl.u32 %v3591, 16
    %v3608 = vshrl.u32 %v3592, 16
    %v3609 = vshrl.u32 %v3593, 16
    %v3610 = vshrl.u32 %v3594, 16
    %v3611 = vshrl.u32 %v3595, 16
    %v3612 = vshrl.u32 %v3596, 16
    %v3613 = vshrl.u32 %v3597, 16
    %v3614 = vshrl.u32 %v3598, 16
    %v3615 = vshrl.u32 %v3599, 16
    %v3616 = vshrl.u32 %v3600, 16
    %v3617 = vxor.u32 %v3585, %v3601
    %v3618 = vxor.u32 %v3586, %v3602
    %v3619 = vxor.u32 %v3587, %v3603
    %v3620 = vxor.u32 %v3588, %v3604
    %v3621 = vxor.u32 %v3589, %v3605
    %v3622 = vxor.u32 %v3590, %v3606
    %v3623 = vxor.u32 %v3591, %v3607
    %v3624 = vxor.u32 %v3592, %v3608
    %v3625 = vxor.u32 %v3593, %v3609
    %v3626 = vxor.u32 %v3594, %v3610
    %v3627 = vxor.u32 %v3595, %v3611
    %v3628 = vxor.u32 %v3596, %v3612
    %v3629 = vxor.u32 %v3597, %v3613
    %v3630 = vxor.u32 %v3598, %v3614
    %v3631 = vxor.u32 %v3599, %v3615
    %v3632 = vxor.u32 %v3600, %v3616
    %v3633 = vshrl.u32 %v3617, 8
    %v3634 = vshrl.u32 %v3618, 8
    %v3635 = vshrl.u32 %v3619, 8
    %v3636 = vshrl.u32 %v3620, 8
    %v3637 = vshrl.u32 %v3621, 8
    %v3638 = vshrl.u32 %v3622, 8
    %v3639 = vshrl.u32 %v3623, 8
    %v3640 = vshrl.u32 %v3624, 8
    %v3641 = vshrl.u32 %v3625, 8
    %v3642 = vshrl.u32 %v3626, 8
    %v3643 = vshrl.u32 %v3627, 8
    %v3644 = vshrl.u32 %v3628, 8
    %v3645 = vshrl.u32 %v3629, 8
    %v3646 = vshrl.u32 %v3630, 8
    %v3647 = vshrl.u32 %v3631, 8
    %v3648 = vshrl.u32 %v3632, 8
    %vm3649 = vcmp.ge.s32.totalorder %v3633, 5033165
    %vm3650 = vcmp.ge.s32.totalorder %v3634, 5033165
    %vm3651 = vcmp.ge.s32.totalorder %v3635, 5033165
    %vm3652 = vcmp.ge.s32.totalorder %v3636, 5033165
    %vm3653 = vcmp.ge.s32.totalorder %v3637, 5033165
    %vm3654 = vcmp.ge.s32.totalorder %v3638, 5033165
    %vm3655 = vcmp.ge.s32.totalorder %v3639, 5033165
    %vm3656 = vcmp.ge.s32.totalorder %v3640, 5033165
    %vm3657 = vcmp.ge.s32.totalorder %v3641, 5033165
    %vm3658 = vcmp.ge.s32.totalorder %v3642, 5033165
    %vm3659 = vcmp.ge.s32.totalorder %v3643, 5033165
    %vm3660 = vcmp.ge.s32.totalorder %v3644, 5033165
    %vm3661 = vcmp.ge.s32.totalorder %v3645, 5033165
    %vm3662 = vcmp.ge.s32.totalorder %v3646, 5033165
    %vm3663 = vcmp.ge.s32.totalorder %v3647, 5033165
    %vm3664 = vcmp.ge.s32.totalorder %v3648, 5033165
    %v3665 = vunpack.c.l.bf16 %v3455
    %v3666 = vunpack.c.h.bf16 %v3455
    %v3667 = vunpack.c.l.bf16 %v3456
    %v3668 = vunpack.c.h.bf16 %v3456
    %v3669 = vunpack.c.l.bf16 %v3457
    %v3670 = vunpack.c.h.bf16 %v3457
    %v3671 = vunpack.c.l.bf16 %v3458
    %v3672 = vunpack.c.h.bf16 %v3458
    %v3673 = vunpack.c.l.bf16 %v3459
    %v3674 = vunpack.c.h.bf16 %v3459
    %v3675 = vunpack.c.l.bf16 %v3460
    %v3676 = vunpack.c.h.bf16 %v3460
    %v3677 = vunpack.c.l.bf16 %v3461
    %v3678 = vunpack.c.h.bf16 %v3461
    %v3679 = vunpack.c.l.bf16 %v3462
    %v3680 = vunpack.c.h.bf16 %v3462
    %v3681 = vmul.f32 %v3665, 1.4296875
    %v3682 = vmul.f32 %v3666, 1.4296875
    %v3683 = vmul.f32 %v3667, 1.4296875
    %v3684 = vmul.f32 %v3668, 1.4296875
    %v3685 = vmul.f32 %v3669, 1.4296875
    %v3686 = vmul.f32 %v3670, 1.4296875
    %v3687 = vmul.f32 %v3671, 1.4296875
    %v3688 = vmul.f32 %v3672, 1.4296875
    %v3689 = vmul.f32 %v3673, 1.4296875
    %v3690 = vmul.f32 %v3674, 1.4296875
    %v3691 = vmul.f32 %v3675, 1.4296875
    %v3692 = vmul.f32 %v3676, 1.4296875
    %v3693 = vmul.f32 %v3677, 1.4296875
    %v3694 = vmul.f32 %v3678, 1.4296875
    %v3695 = vmul.f32 %v3679, 1.4296875
    %v3696 = vmul.f32 %v3680, 1.4296875
    %v3697 = vpack.c.bf16 %v3682, %v3681
    %v3698 = vpack.c.bf16 %v3684, %v3683
    %v3699 = vpack.c.bf16 %v3686, %v3685
    %v3700 = vpack.c.bf16 %v3688, %v3687
    %v3701 = vpack.c.bf16 %v3690, %v3689
    %v3702 = vpack.c.bf16 %v3692, %v3691
    %v3703 = vpack.c.bf16 %v3694, %v3693
    %v3704 = vpack.c.bf16 %v3696, %v3695
    %vm3705 = vmpackc.low %vm3650, %vm3649
    %vm3706 = vmpackc.low %vm3652, %vm3651
    %vm3707 = vmpackc.low %vm3654, %vm3653
    %vm3708 = vmpackc.low %vm3656, %vm3655
    %vm3709 = vmpackc.low %vm3658, %vm3657
    %vm3710 = vmpackc.low %vm3660, %vm3659
    %vm3711 = vmpackc.low %vm3662, %vm3661
    %vm3712 = vmpackc.low %vm3664, %vm3663
    %v3713 = vsel %vm3705, %v3697, 0
    %v3714 = vsel %vm3706, %v3698, 0
    %v3715 = vsel %vm3707, %v3699, 0
    %v3716 = vsel %vm3708, %v3700, 0
    %v3717 = vsel %vm3709, %v3701, 0
    %v3718 = vsel %vm3710, %v3702, 0
    %v3719 = vsel %vm3711, %v3703, 0
    %v3720 = vsel %vm3712, %v3704, 0
    %v3721 = vld [vmem:[#allocation9] sm:$0xff]
    %v3722 = vld [vmem:[#allocation9 + $0x8] sm:$0xff]
    %v3723 = vld [vmem:[#allocation9 + $0x10] sm:$0xff]
    %v3724 = vld [vmem:[#allocation9 + $0x18] sm:$0xff]
    %v3725 = vld [vmem:[#allocation9 + $0x20] sm:$0xff]
    %v3726 = vld [vmem:[#allocation9 + $0x28] sm:$0xff]
    %v3727 = vld [vmem:[#allocation9 + $0x30] sm:$0xff]
    %v3728 = vld [vmem:[#allocation9 + $0x38] sm:$0xff]
    %v3729 = vld [vmem:[#allocation9 + $0x40] sm:$0xff]
    %v3730 = vld [vmem:[#allocation9 + $0x48] sm:$0xff]
    %v3731 = vld [vmem:[#allocation9 + $0x50] sm:$0xff]
    %v3732 = vld [vmem:[#allocation9 + $0x58] sm:$0xff]
    %v3733 = vld [vmem:[#allocation9 + $0x60] sm:$0xff]
    %v3734 = vld [vmem:[#allocation9 + $0x68] sm:$0xff]
    %v3735 = vld [vmem:[#allocation9 + $0x70] sm:$0xff]
    %v3736 = vld [vmem:[#allocation9 + $0x78] sm:$0xff]
    %v3737 = vld [vmem:[#allocation9 + $0x80] sm:$0xff]
    %v3738 = vld [vmem:[#allocation9 + $0x88] sm:$0xff]
    %v3739 = vld [vmem:[#allocation9 + $0x90] sm:$0xff]
    %v3740 = vld [vmem:[#allocation9 + $0x98] sm:$0xff]
    %v3741 = vld [vmem:[#allocation9 + $0xa0] sm:$0xff]
    %v3742 = vld [vmem:[#allocation9 + $0xa8] sm:$0xff]
    %v3743 = vld [vmem:[#allocation9 + $0xb0] sm:$0xff]
    %v3744 = vld [vmem:[#allocation9 + $0xb8] sm:$0xff]
    %v3745 = vld [vmem:[#allocation9 + $0xc0] sm:$0xff]
    %v3746 = vld [vmem:[#allocation9 + $0xc8] sm:$0xff]
    %v3747 = vld [vmem:[#allocation9 + $0xd0] sm:$0xff]
    %v3748 = vld [vmem:[#allocation9 + $0xd8] sm:$0xff]
    %v3749 = vld [vmem:[#allocation9 + $0xe0] sm:$0xff]
    %v3750 = vld [vmem:[#allocation9 + $0xe8] sm:$0xff]
    %v3751 = vld [vmem:[#allocation9 + $0xf0] sm:$0xff]
    %v3752 = vld [vmem:[#allocation9 + $0xf8] sm:$0xff]
    %v3753 = vld [vmem:[#allocation9 + $0x100] sm:$0xff]
    %v3754 = vld [vmem:[#allocation9 + $0x108] sm:$0xff]
    %v3755 = vld [vmem:[#allocation9 + $0x110] sm:$0xff]
    %v3756 = vld [vmem:[#allocation9 + $0x118] sm:$0xff]
    %v3757 = vld [vmem:[#allocation9 + $0x120] sm:$0xff]
    %v3758 = vld [vmem:[#allocation9 + $0x128] sm:$0xff]
    %v3759 = vld [vmem:[#allocation9 + $0x130] sm:$0xff]
    %v3760 = vld [vmem:[#allocation9 + $0x138] sm:$0xff]
    %v3761 = vld [vmem:[#allocation9 + $0x140] sm:$0xff]
    %v3762 = vld [vmem:[#allocation9 + $0x148] sm:$0xff]
    %v3763 = vld [vmem:[#allocation9 + $0x150] sm:$0xff]
    %v3764 = vld [vmem:[#allocation9 + $0x158] sm:$0xff]
    %v3765 = vld [vmem:[#allocation9 + $0x160] sm:$0xff]
    %v3766 = vld [vmem:[#allocation9 + $0x168] sm:$0xff]
    %v3767 = vld [vmem:[#allocation9 + $0x170] sm:$0xff]
    %v3768 = vld [vmem:[#allocation9 + $0x178] sm:$0xff]
    %v3769 = vld [vmem:[#allocation9 + $0x180] sm:$0xff]
    %v3770 = vld [vmem:[#allocation9 + $0x188] sm:$0xff]
    %v3771 = vld [vmem:[#allocation9 + $0x190] sm:$0xff]
    %v3772 = vld [vmem:[#allocation9 + $0x198] sm:$0xff]
    %v3773 = vld [vmem:[#allocation9 + $0x1a0] sm:$0xff]
    %v3774 = vld [vmem:[#allocation9 + $0x1a8] sm:$0xff]
    %v3775 = vld [vmem:[#allocation9 + $0x1b0] sm:$0xff]
    %v3776 = vld [vmem:[#allocation9 + $0x1b8] sm:$0xff]
    %v3777 = vld [vmem:[#allocation9 + $0x1c0] sm:$0xff]
    %v3778 = vld [vmem:[#allocation9 + $0x1c8] sm:$0xff]
    %v3779 = vld [vmem:[#allocation9 + $0x1d0] sm:$0xff]
    %v3780 = vld [vmem:[#allocation9 + $0x1d8] sm:$0xff]
    %v3781 = vld [vmem:[#allocation9 + $0x1e0] sm:$0xff]
    %v3782 = vld [vmem:[#allocation9 + $0x1e8] sm:$0xff]
    %v3783 = vld [vmem:[#allocation9 + $0x1f0] sm:$0xff]
    %v3784 = vld [vmem:[#allocation9 + $0x1f8] sm:$0xff]
    %v3785 = vld [vmem:[#allocation9 + $0x200] sm:$0xff]
    %v3786 = vld [vmem:[#allocation9 + $0x208] sm:$0xff]
    %v3787 = vld [vmem:[#allocation9 + $0x210] sm:$0xff]
    %v3788 = vld [vmem:[#allocation9 + $0x218] sm:$0xff]
    %v3789 = vld [vmem:[#allocation9 + $0x220] sm:$0xff]
    %v3790 = vld [vmem:[#allocation9 + $0x228] sm:$0xff]
    %v3791 = vld [vmem:[#allocation9 + $0x230] sm:$0xff]
    %v3792 = vld [vmem:[#allocation9 + $0x238] sm:$0xff]
    %v3793 = vld [vmem:[#allocation9 + $0x240] sm:$0xff]
    %v3794 = vld [vmem:[#allocation9 + $0x248] sm:$0xff]
    %v3795 = vld [vmem:[#allocation9 + $0x250] sm:$0xff]
    %v3796 = vld [vmem:[#allocation9 + $0x258] sm:$0xff]
    %v3797 = vld [vmem:[#allocation9 + $0x260] sm:$0xff]
    %v3798 = vld [vmem:[#allocation9 + $0x268] sm:$0xff]
    %v3799 = vld [vmem:[#allocation9 + $0x270] sm:$0xff]
    %v3800 = vld [vmem:[#allocation9 + $0x278] sm:$0xff]
    %v3801 = vld [vmem:[#allocation9 + $0x280] sm:$0xff]
    %v3802 = vld [vmem:[#allocation9 + $0x288] sm:$0xff]
    %v3803 = vld [vmem:[#allocation9 + $0x290] sm:$0xff]
    %v3804 = vld [vmem:[#allocation9 + $0x298] sm:$0xff]
    %v3805 = vld [vmem:[#allocation9 + $0x2a0] sm:$0xff]
    %v3806 = vld [vmem:[#allocation9 + $0x2a8] sm:$0xff]
    %v3807 = vld [vmem:[#allocation9 + $0x2b0] sm:$0xff]
    %v3808 = vld [vmem:[#allocation9 + $0x2b8] sm:$0xff]
    %v3809 = vld [vmem:[#allocation9 + $0x2c0] sm:$0xff]
    %v3810 = vld [vmem:[#allocation9 + $0x2c8] sm:$0xff]
    %v3811 = vld [vmem:[#allocation9 + $0x2d0] sm:$0xff]
    %v3812 = vld [vmem:[#allocation9 + $0x2d8] sm:$0xff]
    %v3813 = vld [vmem:[#allocation9 + $0x2e0] sm:$0xff]
    %v3814 = vld [vmem:[#allocation9 + $0x2e8] sm:$0xff]
    %v3815 = vld [vmem:[#allocation9 + $0x2f0] sm:$0xff]
    %v3816 = vld [vmem:[#allocation9 + $0x2f8] sm:$0xff]
    %v3817 = vld [vmem:[#allocation9 + $0x300] sm:$0xff]
    %v3818 = vld [vmem:[#allocation9 + $0x308] sm:$0xff]
    %v3819 = vld [vmem:[#allocation9 + $0x310] sm:$0xff]
    %v3820 = vld [vmem:[#allocation9 + $0x318] sm:$0xff]
    %v3821 = vld [vmem:[#allocation9 + $0x320] sm:$0xff]
    %v3822 = vld [vmem:[#allocation9 + $0x328] sm:$0xff]
    %v3823 = vld [vmem:[#allocation9 + $0x330] sm:$0xff]
    %v3824 = vld [vmem:[#allocation9 + $0x338] sm:$0xff]
    %v3825 = vld [vmem:[#allocation9 + $0x340] sm:$0xff]
    %v3826 = vld [vmem:[#allocation9 + $0x348] sm:$0xff]
    %v3827 = vld [vmem:[#allocation9 + $0x350] sm:$0xff]
    %v3828 = vld [vmem:[#allocation9 + $0x358] sm:$0xff]
    %v3829 = vld [vmem:[#allocation9 + $0x360] sm:$0xff]
    %v3830 = vld [vmem:[#allocation9 + $0x368] sm:$0xff]
    %v3831 = vld [vmem:[#allocation9 + $0x370] sm:$0xff]
    %v3832 = vld [vmem:[#allocation9 + $0x378] sm:$0xff]
    %v3833 = vld [vmem:[#allocation9 + $0x380] sm:$0xff]
    %v3834 = vld [vmem:[#allocation9 + $0x388] sm:$0xff]
    %v3835 = vld [vmem:[#allocation9 + $0x390] sm:$0xff]
    %v3836 = vld [vmem:[#allocation9 + $0x398] sm:$0xff]
    %v3837 = vld [vmem:[#allocation9 + $0x3a0] sm:$0xff]
    %v3838 = vld [vmem:[#allocation9 + $0x3a8] sm:$0xff]
    %v3839 = vld [vmem:[#allocation9 + $0x3b0] sm:$0xff]
    %v3840 = vld [vmem:[#allocation9 + $0x3b8] sm:$0xff]
    %v3841 = vld [vmem:[#allocation9 + $0x3c0] sm:$0xff]
    %v3842 = vld [vmem:[#allocation9 + $0x3c8] sm:$0xff]
    %v3843 = vld [vmem:[#allocation9 + $0x3d0] sm:$0xff]
    %v3844 = vld [vmem:[#allocation9 + $0x3d8] sm:$0xff]
    %v3845 = vld [vmem:[#allocation9 + $0x3e0] sm:$0xff]
    %v3846 = vld [vmem:[#allocation9 + $0x3e8] sm:$0xff]
    %v3847 = vld [vmem:[#allocation9 + $0x3f0] sm:$0xff]
    %v3848 = vld [vmem:[#allocation9 + $0x3f8] sm:$0xff]
    %v3849 = vld [vmem:[#allocation9 + $0x400] sm:$0xff]
    %v3850 = vld [vmem:[#allocation9 + $0x408] sm:$0xff]
    %v3851 = vld [vmem:[#allocation9 + $0x410] sm:$0xff]
    %v3852 = vld [vmem:[#allocation9 + $0x418] sm:$0xff]
    %v3853 = vld [vmem:[#allocation9 + $0x420] sm:$0xff]
    %v3854 = vld [vmem:[#allocation9 + $0x428] sm:$0xff]
    %v3855 = vld [vmem:[#allocation9 + $0x430] sm:$0xff]
    %v3856 = vld [vmem:[#allocation9 + $0x438] sm:$0xff]
    %v3857 = vld [vmem:[#allocation9 + $0x440] sm:$0xff]
    %v3858 = vld [vmem:[#allocation9 + $0x448] sm:$0xff]
    %v3859 = vld [vmem:[#allocation9 + $0x450] sm:$0xff]
    %v3860 = vld [vmem:[#allocation9 + $0x458] sm:$0xff]
    %v3861 = vld [vmem:[#allocation9 + $0x460] sm:$0xff]
    %v3862 = vld [vmem:[#allocation9 + $0x468] sm:$0xff]
    %v3863 = vld [vmem:[#allocation9 + $0x470] sm:$0xff]
    %v3864 = vld [vmem:[#allocation9 + $0x478] sm:$0xff]
    %v3865 = vld [vmem:[#allocation9 + $0x480] sm:$0xff]
    %v3866 = vld [vmem:[#allocation9 + $0x488] sm:$0xff]
    %v3867 = vld [vmem:[#allocation9 + $0x490] sm:$0xff]
    %v3868 = vld [vmem:[#allocation9 + $0x498] sm:$0xff]
    %v3869 = vld [vmem:[#allocation9 + $0x4a0] sm:$0xff]
    %v3870 = vld [vmem:[#allocation9 + $0x4a8] sm:$0xff]
    %v3871 = vld [vmem:[#allocation9 + $0x4b0] sm:$0xff]
    %v3872 = vld [vmem:[#allocation9 + $0x4b8] sm:$0xff]
    %v3873 = vld [vmem:[#allocation9 + $0x4c0] sm:$0xff]
    %v3874 = vld [vmem:[#allocation9 + $0x4c8] sm:$0xff]
    %v3875 = vld [vmem:[#allocation9 + $0x4d0] sm:$0xff]
    %v3876 = vld [vmem:[#allocation9 + $0x4d8] sm:$0xff]
    %v3877 = vld [vmem:[#allocation9 + $0x4e0] sm:$0xff]
    %v3878 = vld [vmem:[#allocation9 + $0x4e8] sm:$0xff]
    %v3879 = vld [vmem:[#allocation9 + $0x4f0] sm:$0xff]
    %v3880 = vld [vmem:[#allocation9 + $0x4f8] sm:$0xff]
    %v3881 = vld [vmem:[#allocation9 + $0x500] sm:$0xff]
    %v3882 = vld [vmem:[#allocation9 + $0x508] sm:$0xff]
    %v3883 = vld [vmem:[#allocation9 + $0x510] sm:$0xff]
    %v3884 = vld [vmem:[#allocation9 + $0x518] sm:$0xff]
    %v3885 = vld [vmem:[#allocation9 + $0x520] sm:$0xff]
    %v3886 = vld [vmem:[#allocation9 + $0x528] sm:$0xff]
    %v3887 = vld [vmem:[#allocation9 + $0x530] sm:$0xff]
    %v3888 = vld [vmem:[#allocation9 + $0x538] sm:$0xff]
    %v3889 = vld [vmem:[#allocation9 + $0x540] sm:$0xff]
    %v3890 = vld [vmem:[#allocation9 + $0x548] sm:$0xff]
    %v3891 = vld [vmem:[#allocation9 + $0x550] sm:$0xff]
    %v3892 = vld [vmem:[#allocation9 + $0x558] sm:$0xff]
    %v3893 = vld [vmem:[#allocation9 + $0x560] sm:$0xff]
    %v3894 = vld [vmem:[#allocation9 + $0x568] sm:$0xff]
    %v3895 = vld [vmem:[#allocation9 + $0x570] sm:$0xff]
    %v3896 = vld [vmem:[#allocation9 + $0x578] sm:$0xff]
    %v3897 = vld [vmem:[#allocation9 + $0x580] sm:$0xff]
    %v3898 = vld [vmem:[#allocation9 + $0x588] sm:$0xff]
    %v3899 = vld [vmem:[#allocation9 + $0x590] sm:$0xff]
    %v3900 = vld [vmem:[#allocation9 + $0x598] sm:$0xff]
    %v3901 = vld [vmem:[#allocation9 + $0x5a0] sm:$0xff]
    %v3902 = vld [vmem:[#allocation9 + $0x5a8] sm:$0xff]
    %v3903 = vld [vmem:[#allocation9 + $0x5b0] sm:$0xff]
    %v3904 = vld [vmem:[#allocation9 + $0x5b8] sm:$0xff]
    %v3905 = vld [vmem:[#allocation9 + $0x5c0] sm:$0xff]
    %v3906 = vld [vmem:[#allocation9 + $0x5c8] sm:$0xff]
    %v3907 = vld [vmem:[#allocation9 + $0x5d0] sm:$0xff]
    %v3908 = vld [vmem:[#allocation9 + $0x5d8] sm:$0xff]
    %v3909 = vld [vmem:[#allocation9 + $0x5e0] sm:$0xff]
    %v3910 = vld [vmem:[#allocation9 + $0x5e8] sm:$0xff]
    %v3911 = vld [vmem:[#allocation9 + $0x5f0] sm:$0xff]
    %v3912 = vld [vmem:[#allocation9 + $0x5f8] sm:$0xff]
    %v3913 = vld [vmem:[#allocation9 + $0x600] sm:$0xff]
    %v3914 = vld [vmem:[#allocation9 + $0x608] sm:$0xff]
    %v3915 = vld [vmem:[#allocation9 + $0x610] sm:$0xff]
    %v3916 = vld [vmem:[#allocation9 + $0x618] sm:$0xff]
    %v3917 = vld [vmem:[#allocation9 + $0x620] sm:$0xff]
    %v3918 = vld [vmem:[#allocation9 + $0x628] sm:$0xff]
    %v3919 = vld [vmem:[#allocation9 + $0x630] sm:$0xff]
    %v3920 = vld [vmem:[#allocation9 + $0x638] sm:$0xff]
    %v3921 = vld [vmem:[#allocation9 + $0x640] sm:$0xff]
    %v3922 = vld [vmem:[#allocation9 + $0x648] sm:$0xff]
    %v3923 = vld [vmem:[#allocation9 + $0x650] sm:$0xff]
    %v3924 = vld [vmem:[#allocation9 + $0x658] sm:$0xff]
    %v3925 = vld [vmem:[#allocation9 + $0x660] sm:$0xff]
    %v3926 = vld [vmem:[#allocation9 + $0x668] sm:$0xff]
    %v3927 = vld [vmem:[#allocation9 + $0x670] sm:$0xff]
    %v3928 = vld [vmem:[#allocation9 + $0x678] sm:$0xff]
    %v3929 = vld [vmem:[#allocation9 + $0x680] sm:$0xff]
    %v3930 = vld [vmem:[#allocation9 + $0x688] sm:$0xff]
    %v3931 = vld [vmem:[#allocation9 + $0x690] sm:$0xff]
    %v3932 = vld [vmem:[#allocation9 + $0x698] sm:$0xff]
    %v3933 = vld [vmem:[#allocation9 + $0x6a0] sm:$0xff]
    %v3934 = vld [vmem:[#allocation9 + $0x6a8] sm:$0xff]
    %v3935 = vld [vmem:[#allocation9 + $0x6b0] sm:$0xff]
    %v3936 = vld [vmem:[#allocation9 + $0x6b8] sm:$0xff]
    %v3937 = vld [vmem:[#allocation9 + $0x6c0] sm:$0xff]
    %v3938 = vld [vmem:[#allocation9 + $0x6c8] sm:$0xff]
    %v3939 = vld [vmem:[#allocation9 + $0x6d0] sm:$0xff]
    %v3940 = vld [vmem:[#allocation9 + $0x6d8] sm:$0xff]
    %v3941 = vld [vmem:[#allocation9 + $0x6e0] sm:$0xff]
    %v3942 = vld [vmem:[#allocation9 + $0x6e8] sm:$0xff]
    %v3943 = vld [vmem:[#allocation9 + $0x6f0] sm:$0xff]
    %v3944 = vld [vmem:[#allocation9 + $0x6f8] sm:$0xff]
    %v3945 = vld [vmem:[#allocation9 + $0x700] sm:$0xff]
    %v3946 = vld [vmem:[#allocation9 + $0x708] sm:$0xff]
    %v3947 = vld [vmem:[#allocation9 + $0x710] sm:$0xff]
    %v3948 = vld [vmem:[#allocation9 + $0x718] sm:$0xff]
    %v3949 = vld [vmem:[#allocation9 + $0x720] sm:$0xff]
    %v3950 = vld [vmem:[#allocation9 + $0x728] sm:$0xff]
    %v3951 = vld [vmem:[#allocation9 + $0x730] sm:$0xff]
    %v3952 = vld [vmem:[#allocation9 + $0x738] sm:$0xff]
    %v3953 = vld [vmem:[#allocation9 + $0x740] sm:$0xff]
    %v3954 = vld [vmem:[#allocation9 + $0x748] sm:$0xff]
    %v3955 = vld [vmem:[#allocation9 + $0x750] sm:$0xff]
    %v3956 = vld [vmem:[#allocation9 + $0x758] sm:$0xff]
    %v3957 = vld [vmem:[#allocation9 + $0x760] sm:$0xff]
    %v3958 = vld [vmem:[#allocation9 + $0x768] sm:$0xff]
    %v3959 = vld [vmem:[#allocation9 + $0x770] sm:$0xff]
    %v3960 = vld [vmem:[#allocation9 + $0x778] sm:$0xff]
    %v3961 = vld [vmem:[#allocation9 + $0x780] sm:$0xff]
    %v3962 = vld [vmem:[#allocation9 + $0x788] sm:$0xff]
    %v3963 = vld [vmem:[#allocation9 + $0x790] sm:$0xff]
    %v3964 = vld [vmem:[#allocation9 + $0x798] sm:$0xff]
    %v3965 = vld [vmem:[#allocation9 + $0x7a0] sm:$0xff]
    %v3966 = vld [vmem:[#allocation9 + $0x7a8] sm:$0xff]
    %v3967 = vld [vmem:[#allocation9 + $0x7b0] sm:$0xff]
    %v3968 = vld [vmem:[#allocation9 + $0x7b8] sm:$0xff]
    %v3969 = vld [vmem:[#allocation9 + $0x7c0] sm:$0xff]
    %v3970 = vld [vmem:[#allocation9 + $0x7c8] sm:$0xff]
    %v3971 = vld [vmem:[#allocation9 + $0x7d0] sm:$0xff]
    %v3972 = vld [vmem:[#allocation9 + $0x7d8] sm:$0xff]
    %v3973 = vld [vmem:[#allocation9 + $0x7e0] sm:$0xff]
    %v3974 = vld [vmem:[#allocation9 + $0x7e8] sm:$0xff]
    %v3975 = vld [vmem:[#allocation9 + $0x7f0] sm:$0xff]
    %v3976 = vld [vmem:[#allocation9 + $0x7f8] sm:$0xff]
    %v3977 = vld [vmem:[#allocation11] sm:$0xf]
    %v3979 = vperm.slane %v3977, 0
    %v3980 = vperm.slane %v3977, 1
    %v3981 = vperm.slane %v3977, 2
    %v3982 = vperm.slane %v3977, 3
    %v3995 = vunpack.c.l.b16 %v3713
    %v3996 = vunpack.c.h.b16 %v3713
    %v3997 = vunpack.c.l.b16 %v3714
    %v3998 = vunpack.c.h.b16 %v3714
    %v3999 = vunpack.c.l.b16 %v3715
    %v4000 = vunpack.c.h.b16 %v3715
    %v4001 = vunpack.c.l.b16 %v3716
    %v4002 = vunpack.c.h.b16 %v3716
    %v4003 = vunpack.c.l.b16 %v3717
    %v4004 = vunpack.c.h.b16 %v3717
    %v4005 = vunpack.c.l.b16 %v3718
    %v4006 = vunpack.c.h.b16 %v3718
    %v4007 = vunpack.c.l.b16 %v3719
    %v4008 = vunpack.c.h.b16 %v3719
    %v4009 = vunpack.c.l.b16 %v3720
    %v4010 = vunpack.c.h.b16 %v3720
    %v4011 = vpack.c.b16 %v4003, %v3995
    %v4012 = vpack.c.b16 %v4004, %v3996
    %v4013 = vpack.c.b16 %v4005, %v3997
    %v4014 = vpack.c.b16 %v4006, %v3998
    %v4015 = vpack.c.b16 %v4007, %v3999
    %v4016 = vpack.c.b16 %v4008, %v4000
    %v4017 = vpack.c.b16 %v4009, %v4001
    %v4018 = vpack.c.b16 %v4010, %v4002
    %v4283 = vunpack.c.l.b16 %v3721
    %v4284 = vunpack.c.h.b16 %v3721
    %v4285 = vunpack.c.l.b16 %v3722
    %v4286 = vunpack.c.h.b16 %v3722
    %v4287 = vunpack.c.l.b16 %v3723
    %v4288 = vunpack.c.h.b16 %v3723
    %v4289 = vunpack.c.l.b16 %v3724
    %v4290 = vunpack.c.h.b16 %v3724
    %v4291 = vunpack.c.l.b16 %v3725
    %v4292 = vunpack.c.h.b16 %v3725
    %v4293 = vunpack.c.l.b16 %v3726
    %v4294 = vunpack.c.h.b16 %v3726
    %v4295 = vunpack.c.l.b16 %v3727
    %v4296 = vunpack.c.h.b16 %v3727
    %v4297 = vunpack.c.l.b16 %v3728
    %v4298 = vunpack.c.h.b16 %v3728
    %v4299 = vunpack.c.l.b16 %v3729
    %v4300 = vunpack.c.h.b16 %v3729
    %v4301 = vunpack.c.l.b16 %v3730
    %v4302 = vunpack.c.h.b16 %v3730
    %v4303 = vunpack.c.l.b16 %v3731
    %v4304 = vunpack.c.h.b16 %v3731
    %v4305 = vunpack.c.l.b16 %v3732
    %v4306 = vunpack.c.h.b16 %v3732
    %v4307 = vunpack.c.l.b16 %v3733
    %v4308 = vunpack.c.h.b16 %v3733
    %v4309 = vunpack.c.l.b16 %v3734
    %v4310 = vunpack.c.h.b16 %v3734
    %v4311 = vunpack.c.l.b16 %v3735
    %v4312 = vunpack.c.h.b16 %v3735
    %v4313 = vunpack.c.l.b16 %v3736
    %v4314 = vunpack.c.h.b16 %v3736
    %v4315 = vunpack.c.l.b16 %v3737
    %v4316 = vunpack.c.h.b16 %v3737
    %v4317 = vunpack.c.l.b16 %v3738
    %v4318 = vunpack.c.h.b16 %v3738
    %v4319 = vunpack.c.l.b16 %v3739
    %v4320 = vunpack.c.h.b16 %v3739
    %v4321 = vunpack.c.l.b16 %v3740
    %v4322 = vunpack.c.h.b16 %v3740
    %v4323 = vunpack.c.l.b16 %v3741
    %v4324 = vunpack.c.h.b16 %v3741
    %v4325 = vunpack.c.l.b16 %v3742
    %v4326 = vunpack.c.h.b16 %v3742
    %v4327 = vunpack.c.l.b16 %v3743
    %v4328 = vunpack.c.h.b16 %v3743
    %v4329 = vunpack.c.l.b16 %v3744
    %v4330 = vunpack.c.h.b16 %v3744
    %v4331 = vunpack.c.l.b16 %v3745
    %v4332 = vunpack.c.h.b16 %v3745
    %v4333 = vunpack.c.l.b16 %v3746
    %v4334 = vunpack.c.h.b16 %v3746
    %v4335 = vunpack.c.l.b16 %v3747
    %v4336 = vunpack.c.h.b16 %v3747
    %v4337 = vunpack.c.l.b16 %v3748
    %v4338 = vunpack.c.h.b16 %v3748
    %v4339 = vunpack.c.l.b16 %v3749
    %v4340 = vunpack.c.h.b16 %v3749
    %v4341 = vunpack.c.l.b16 %v3750
    %v4342 = vunpack.c.h.b16 %v3750
    %v4343 = vunpack.c.l.b16 %v3751
    %v4344 = vunpack.c.h.b16 %v3751
    %v4345 = vunpack.c.l.b16 %v3752
    %v4346 = vunpack.c.h.b16 %v3752
    %v4347 = vunpack.c.l.b16 %v3753
    %v4348 = vunpack.c.h.b16 %v3753
    %v4349 = vunpack.c.l.b16 %v3754
    %v4350 = vunpack.c.h.b16 %v3754
    %v4351 = vunpack.c.l.b16 %v3755
    %v4352 = vunpack.c.h.b16 %v3755
    %v4353 = vunpack.c.l.b16 %v3756
    %v4354 = vunpack.c.h.b16 %v3756
    %v4355 = vunpack.c.l.b16 %v3757
    %v4356 = vunpack.c.h.b16 %v3757
    %v4357 = vunpack.c.l.b16 %v3758
    %v4358 = vunpack.c.h.b16 %v3758
    %v4359 = vunpack.c.l.b16 %v3759
    %v4360 = vunpack.c.h.b16 %v3759
    %v4361 = vunpack.c.l.b16 %v3760
    %v4362 = vunpack.c.h.b16 %v3760
    %v4363 = vunpack.c.l.b16 %v3761
    %v4364 = vunpack.c.h.b16 %v3761
    %v4365 = vunpack.c.l.b16 %v3762
    %v4366 = vunpack.c.h.b16 %v3762
    %v4367 = vunpack.c.l.b16 %v3763
    %v4368 = vunpack.c.h.b16 %v3763
    %v4369 = vunpack.c.l.b16 %v3764
    %v4370 = vunpack.c.h.b16 %v3764
    %v4371 = vunpack.c.l.b16 %v3765
    %v4372 = vunpack.c.h.b16 %v3765
    %v4373 = vunpack.c.l.b16 %v3766
    %v4374 = vunpack.c.h.b16 %v3766
    %v4375 = vunpack.c.l.b16 %v3767
    %v4376 = vunpack.c.h.b16 %v3767
    %v4377 = vunpack.c.l.b16 %v3768
    %v4378 = vunpack.c.h.b16 %v3768
    %v4379 = vunpack.c.l.b16 %v3769
    %v4380 = vunpack.c.h.b16 %v3769
    %v4381 = vunpack.c.l.b16 %v3770
    %v4382 = vunpack.c.h.b16 %v3770
    %v4383 = vunpack.c.l.b16 %v3771
    %v4384 = vunpack.c.h.b16 %v3771
    %v4385 = vunpack.c.l.b16 %v3772
    %v4386 = vunpack.c.h.b16 %v3772
    %v4387 = vunpack.c.l.b16 %v3773
    %v4388 = vunpack.c.h.b16 %v3773
    %v4389 = vunpack.c.l.b16 %v3774
    %v4390 = vunpack.c.h.b16 %v3774
    %v4391 = vunpack.c.l.b16 %v3775
    %v4392 = vunpack.c.h.b16 %v3775
    %v4393 = vunpack.c.l.b16 %v3776
    %v4394 = vunpack.c.h.b16 %v3776
    %v4395 = vunpack.c.l.b16 %v3777
    %v4396 = vunpack.c.h.b16 %v3777
    %v4397 = vunpack.c.l.b16 %v3778
    %v4398 = vunpack.c.h.b16 %v3778
    %v4399 = vunpack.c.l.b16 %v3779
    %v4400 = vunpack.c.h.b16 %v3779
    %v4401 = vunpack.c.l.b16 %v3780
    %v4402 = vunpack.c.h.b16 %v3780
    %v4403 = vunpack.c.l.b16 %v3781
    %v4404 = vunpack.c.h.b16 %v3781
    %v4405 = vunpack.c.l.b16 %v3782
    %v4406 = vunpack.c.h.b16 %v3782
    %v4407 = vunpack.c.l.b16 %v3783
    %v4408 = vunpack.c.h.b16 %v3783
    %v4409 = vunpack.c.l.b16 %v3784
    %v4410 = vunpack.c.h.b16 %v3784
    %v4411 = vunpack.c.l.b16 %v3785
    %v4412 = vunpack.c.h.b16 %v3785
    %v4413 = vunpack.c.l.b16 %v3786
    %v4414 = vunpack.c.h.b16 %v3786
    %v4415 = vunpack.c.l.b16 %v3787
    %v4416 = vunpack.c.h.b16 %v3787
    %v4417 = vunpack.c.l.b16 %v3788
    %v4418 = vunpack.c.h.b16 %v3788
    %v4419 = vunpack.c.l.b16 %v3789
    %v4420 = vunpack.c.h.b16 %v3789
    %v4421 = vunpack.c.l.b16 %v3790
    %v4422 = vunpack.c.h.b16 %v3790
    %v4423 = vunpack.c.l.b16 %v3791
    %v4424 = vunpack.c.h.b16 %v3791
    %v4425 = vunpack.c.l.b16 %v3792
    %v4426 = vunpack.c.h.b16 %v3792
    %v4427 = vunpack.c.l.b16 %v3793
    %v4428 = vunpack.c.h.b16 %v3793
    %v4429 = vunpack.c.l.b16 %v3794
    %v4430 = vunpack.c.h.b16 %v3794
    %v4431 = vunpack.c.l.b16 %v3795
    %v4432 = vunpack.c.h.b16 %v3795
    %v4433 = vunpack.c.l.b16 %v3796
    %v4434 = vunpack.c.h.b16 %v3796
    %v4435 = vunpack.c.l.b16 %v3797
    %v4436 = vunpack.c.h.b16 %v3797
    %v4437 = vunpack.c.l.b16 %v3798
    %v4438 = vunpack.c.h.b16 %v3798
    %v4439 = vunpack.c.l.b16 %v3799
    %v4440 = vunpack.c.h.b16 %v3799
    %v4441 = vunpack.c.l.b16 %v3800
    %v4442 = vunpack.c.h.b16 %v3800
    %v4443 = vunpack.c.l.b16 %v3801
    %v4444 = vunpack.c.h.b16 %v3801
    %v4445 = vunpack.c.l.b16 %v3802
    %v4446 = vunpack.c.h.b16 %v3802
    %v4447 = vunpack.c.l.b16 %v3803
    %v4448 = vunpack.c.h.b16 %v3803
    %v4449 = vunpack.c.l.b16 %v3804
    %v4450 = vunpack.c.h.b16 %v3804
    %v4451 = vunpack.c.l.b16 %v3805
    %v4452 = vunpack.c.h.b16 %v3805
    %v4453 = vunpack.c.l.b16 %v3806
    %v4454 = vunpack.c.h.b16 %v3806
    %v4455 = vunpack.c.l.b16 %v3807
    %v4456 = vunpack.c.h.b16 %v3807
    %v4457 = vunpack.c.l.b16 %v3808
    %v4458 = vunpack.c.h.b16 %v3808
    %v4459 = vunpack.c.l.b16 %v3809
    %v4460 = vunpack.c.h.b16 %v3809
    %v4461 = vunpack.c.l.b16 %v3810
    %v4462 = vunpack.c.h.b16 %v3810
    %v4463 = vunpack.c.l.b16 %v3811
    %v4464 = vunpack.c.h.b16 %v3811
    %v4465 = vunpack.c.l.b16 %v3812
    %v4466 = vunpack.c.h.b16 %v3812
    %v4467 = vunpack.c.l.b16 %v3813
    %v4468 = vunpack.c.h.b16 %v3813
    %v4469 = vunpack.c.l.b16 %v3814
    %v4470 = vunpack.c.h.b16 %v3814
    %v4471 = vunpack.c.l.b16 %v3815
    %v4472 = vunpack.c.h.b16 %v3815
    %v4473 = vunpack.c.l.b16 %v3816
    %v4474 = vunpack.c.h.b16 %v3816
    %v4475 = vunpack.c.l.b16 %v3817
    %v4476 = vunpack.c.h.b16 %v3817
    %v4477 = vunpack.c.l.b16 %v3818
    %v4478 = vunpack.c.h.b16 %v3818
    %v4479 = vunpack.c.l.b16 %v3819
    %v4480 = vunpack.c.h.b16 %v3819
    %v4481 = vunpack.c.l.b16 %v3820
    %v4482 = vunpack.c.h.b16 %v3820
    %v4483 = vunpack.c.l.b16 %v3821
    %v4484 = vunpack.c.h.b16 %v3821
    %v4485 = vunpack.c.l.b16 %v3822
    %v4486 = vunpack.c.h.b16 %v3822
    %v4487 = vunpack.c.l.b16 %v3823
    %v4488 = vunpack.c.h.b16 %v3823
    %v4489 = vunpack.c.l.b16 %v3824
    %v4490 = vunpack.c.h.b16 %v3824
    %v4491 = vunpack.c.l.b16 %v3825
    %v4492 = vunpack.c.h.b16 %v3825
    %v4493 = vunpack.c.l.b16 %v3826
    %v4494 = vunpack.c.h.b16 %v3826
    %v4495 = vunpack.c.l.b16 %v3827
    %v4496 = vunpack.c.h.b16 %v3827
    %v4497 = vunpack.c.l.b16 %v3828
    %v4498 = vunpack.c.h.b16 %v3828
    %v4499 = vunpack.c.l.b16 %v3829
    %v4500 = vunpack.c.h.b16 %v3829
    %v4501 = vunpack.c.l.b16 %v3830
    %v4502 = vunpack.c.h.b16 %v3830
    %v4503 = vunpack.c.l.b16 %v3831
    %v4504 = vunpack.c.h.b16 %v3831
    %v4505 = vunpack.c.l.b16 %v3832
    %v4506 = vunpack.c.h.b16 %v3832
    %v4507 = vunpack.c.l.b16 %v3833
    %v4508 = vunpack.c.h.b16 %v3833
    %v4509 = vunpack.c.l.b16 %v3834
    %v4510 = vunpack.c.h.b16 %v3834
    %v4511 = vunpack.c.l.b16 %v3835
    %v4512 = vunpack.c.h.b16 %v3835
    %v4513 = vunpack.c.l.b16 %v3836
    %v4514 = vunpack.c.h.b16 %v3836
    %v4515 = vunpack.c.l.b16 %v3837
    %v4516 = vunpack.c.h.b16 %v3837
    %v4517 = vunpack.c.l.b16 %v3838
    %v4518 = vunpack.c.h.b16 %v3838
    %v4519 = vunpack.c.l.b16 %v3839
    %v4520 = vunpack.c.h.b16 %v3839
    %v4521 = vunpack.c.l.b16 %v3840
    %v4522 = vunpack.c.h.b16 %v3840
    %v4523 = vunpack.c.l.b16 %v3841
    %v4524 = vunpack.c.h.b16 %v3841
    %v4525 = vunpack.c.l.b16 %v3842
    %v4526 = vunpack.c.h.b16 %v3842
    %v4527 = vunpack.c.l.b16 %v3843
    %v4528 = vunpack.c.h.b16 %v3843
    %v4529 = vunpack.c.l.b16 %v3844
    %v4530 = vunpack.c.h.b16 %v3844
    %v4531 = vunpack.c.l.b16 %v3845
    %v4532 = vunpack.c.h.b16 %v3845
    %v4533 = vunpack.c.l.b16 %v3846
    %v4534 = vunpack.c.h.b16 %v3846
    %v4535 = vunpack.c.l.b16 %v3847
    %v4536 = vunpack.c.h.b16 %v3847
    %v4537 = vunpack.c.l.b16 %v3848
    %v4538 = vunpack.c.h.b16 %v3848
    %v4539 = vunpack.c.l.b16 %v3849
    %v4540 = vunpack.c.h.b16 %v3849
    %v4541 = vunpack.c.l.b16 %v3850
    %v4542 = vunpack.c.h.b16 %v3850
    %v4543 = vunpack.c.l.b16 %v3851
    %v4544 = vunpack.c.h.b16 %v3851
    %v4545 = vunpack.c.l.b16 %v3852
    %v4546 = vunpack.c.h.b16 %v3852
    %v4547 = vunpack.c.l.b16 %v3853
    %v4548 = vunpack.c.h.b16 %v3853
    %v4549 = vunpack.c.l.b16 %v3854
    %v4550 = vunpack.c.h.b16 %v3854
    %v4551 = vunpack.c.l.b16 %v3855
    %v4552 = vunpack.c.h.b16 %v3855
    %v4553 = vunpack.c.l.b16 %v3856
    %v4554 = vunpack.c.h.b16 %v3856
    %v4555 = vunpack.c.l.b16 %v3857
    %v4556 = vunpack.c.h.b16 %v3857
    %v4557 = vunpack.c.l.b16 %v3858
    %v4558 = vunpack.c.h.b16 %v3858
    %v4559 = vunpack.c.l.b16 %v3859
    %v4560 = vunpack.c.h.b16 %v3859
    %v4561 = vunpack.c.l.b16 %v3860
    %v4562 = vunpack.c.h.b16 %v3860
    %v4563 = vunpack.c.l.b16 %v3861
    %v4564 = vunpack.c.h.b16 %v3861
    %v4565 = vunpack.c.l.b16 %v3862
    %v4566 = vunpack.c.h.b16 %v3862
    %v4567 = vunpack.c.l.b16 %v3863
    %v4568 = vunpack.c.h.b16 %v3863
    %v4569 = vunpack.c.l.b16 %v3864
    %v4570 = vunpack.c.h.b16 %v3864
    %v4571 = vunpack.c.l.b16 %v3865
    %v4572 = vunpack.c.h.b16 %v3865
    %v4573 = vunpack.c.l.b16 %v3866
    %v4574 = vunpack.c.h.b16 %v3866
    %v4575 = vunpack.c.l.b16 %v3867
    %v4576 = vunpack.c.h.b16 %v3867
    %v4577 = vunpack.c.l.b16 %v3868
    %v4578 = vunpack.c.h.b16 %v3868
    %v4579 = vunpack.c.l.b16 %v3869
    %v4580 = vunpack.c.h.b16 %v3869
    %v4581 = vunpack.c.l.b16 %v3870
    %v4582 = vunpack.c.h.b16 %v3870
    %v4583 = vunpack.c.l.b16 %v3871
    %v4584 = vunpack.c.h.b16 %v3871
    %v4585 = vunpack.c.l.b16 %v3872
    %v4586 = vunpack.c.h.b16 %v3872
    %v4587 = vunpack.c.l.b16 %v3873
    %v4588 = vunpack.c.h.b16 %v3873
    %v4589 = vunpack.c.l.b16 %v3874
    %v4590 = vunpack.c.h.b16 %v3874
    %v4591 = vunpack.c.l.b16 %v3875
    %v4592 = vunpack.c.h.b16 %v3875
    %v4593 = vunpack.c.l.b16 %v3876
    %v4594 = vunpack.c.h.b16 %v3876
    %v4595 = vunpack.c.l.b16 %v3877
    %v4596 = vunpack.c.h.b16 %v3877
    %v4597 = vunpack.c.l.b16 %v3878
    %v4598 = vunpack.c.h.b16 %v3878
    %v4599 = vunpack.c.l.b16 %v3879
    %v4600 = vunpack.c.h.b16 %v3879
    %v4601 = vunpack.c.l.b16 %v3880
    %v4602 = vunpack.c.h.b16 %v3880
    %v4603 = vunpack.c.l.b16 %v3881
    %v4604 = vunpack.c.h.b16 %v3881
    %v4605 = vunpack.c.l.b16 %v3882
    %v4606 = vunpack.c.h.b16 %v3882
    %v4607 = vunpack.c.l.b16 %v3883
    %v4608 = vunpack.c.h.b16 %v3883
    %v4609 = vunpack.c.l.b16 %v3884
    %v4610 = vunpack.c.h.b16 %v3884
    %v4611 = vunpack.c.l.b16 %v3885
    %v4612 = vunpack.c.h.b16 %v3885
    %v4613 = vunpack.c.l.b16 %v3886
    %v4614 = vunpack.c.h.b16 %v3886
    %v4615 = vunpack.c.l.b16 %v3887
    %v4616 = vunpack.c.h.b16 %v3887
    %v4617 = vunpack.c.l.b16 %v3888
    %v4618 = vunpack.c.h.b16 %v3888
    %v4619 = vunpack.c.l.b16 %v3889
    %v4620 = vunpack.c.h.b16 %v3889
    %v4621 = vunpack.c.l.b16 %v3890
    %v4622 = vunpack.c.h.b16 %v3890
    %v4623 = vunpack.c.l.b16 %v3891
    %v4624 = vunpack.c.h.b16 %v3891
    %v4625 = vunpack.c.l.b16 %v3892
    %v4626 = vunpack.c.h.b16 %v3892
    %v4627 = vunpack.c.l.b16 %v3893
    %v4628 = vunpack.c.h.b16 %v3893
    %v4629 = vunpack.c.l.b16 %v3894
    %v4630 = vunpack.c.h.b16 %v3894
    %v4631 = vunpack.c.l.b16 %v3895
    %v4632 = vunpack.c.h.b16 %v3895
    %v4633 = vunpack.c.l.b16 %v3896
    %v4634 = vunpack.c.h.b16 %v3896
    %v4635 = vunpack.c.l.b16 %v3897
    %v4636 = vunpack.c.h.b16 %v3897
    %v4637 = vunpack.c.l.b16 %v3898
    %v4638 = vunpack.c.h.b16 %v3898
    %v4639 = vunpack.c.l.b16 %v3899
    %v4640 = vunpack.c.h.b16 %v3899
    %v4641 = vunpack.c.l.b16 %v3900
    %v4642 = vunpack.c.h.b16 %v3900
    %v4643 = vunpack.c.l.b16 %v3901
    %v4644 = vunpack.c.h.b16 %v3901
    %v4645 = vunpack.c.l.b16 %v3902
    %v4646 = vunpack.c.h.b16 %v3902
    %v4647 = vunpack.c.l.b16 %v3903
    %v4648 = vunpack.c.h.b16 %v3903
    %v4649 = vunpack.c.l.b16 %v3904
    %v4650 = vunpack.c.h.b16 %v3904
    %v4651 = vunpack.c.l.b16 %v3905
    %v4652 = vunpack.c.h.b16 %v3905
    %v4653 = vunpack.c.l.b16 %v3906
    %v4654 = vunpack.c.h.b16 %v3906
    %v4655 = vunpack.c.l.b16 %v3907
    %v4656 = vunpack.c.h.b16 %v3907
    %v4657 = vunpack.c.l.b16 %v3908
    %v4658 = vunpack.c.h.b16 %v3908
    %v4659 = vunpack.c.l.b16 %v3909
    %v4660 = vunpack.c.h.b16 %v3909
    %v4661 = vunpack.c.l.b16 %v3910
    %v4662 = vunpack.c.h.b16 %v3910
    %v4663 = vunpack.c.l.b16 %v3911
    %v4664 = vunpack.c.h.b16 %v3911
    %v4665 = vunpack.c.l.b16 %v3912
    %v4666 = vunpack.c.h.b16 %v3912
    %v4667 = vunpack.c.l.b16 %v3913
    %v4668 = vunpack.c.h.b16 %v3913
    %v4669 = vunpack.c.l.b16 %v3914
    %v4670 = vunpack.c.h.b16 %v3914
    %v4671 = vunpack.c.l.b16 %v3915
    %v4672 = vunpack.c.h.b16 %v3915
    %v4673 = vunpack.c.l.b16 %v3916
    %v4674 = vunpack.c.h.b16 %v3916
    %v4675 = vunpack.c.l.b16 %v3917
    %v4676 = vunpack.c.h.b16 %v3917
    %v4677 = vunpack.c.l.b16 %v3918
    %v4678 = vunpack.c.h.b16 %v3918
    %v4679 = vunpack.c.l.b16 %v3919
    %v4680 = vunpack.c.h.b16 %v3919
    %v4681 = vunpack.c.l.b16 %v3920
    %v4682 = vunpack.c.h.b16 %v3920
    %v4683 = vunpack.c.l.b16 %v3921
    %v4684 = vunpack.c.h.b16 %v3921
    %v4685 = vunpack.c.l.b16 %v3922
    %v4686 = vunpack.c.h.b16 %v3922
    %v4687 = vunpack.c.l.b16 %v3923
    %v4688 = vunpack.c.h.b16 %v3923
    %v4689 = vunpack.c.l.b16 %v3924
    %v4690 = vunpack.c.h.b16 %v3924
    %v4691 = vunpack.c.l.b16 %v3925
    %v4692 = vunpack.c.h.b16 %v3925
    %v4693 = vunpack.c.l.b16 %v3926
    %v4694 = vunpack.c.h.b16 %v3926
    %v4695 = vunpack.c.l.b16 %v3927
    %v4696 = vunpack.c.h.b16 %v3927
    %v4697 = vunpack.c.l.b16 %v3928
    %v4698 = vunpack.c.h.b16 %v3928
    %v4699 = vunpack.c.l.b16 %v3929
    %v4700 = vunpack.c.h.b16 %v3929
    %v4701 = vunpack.c.l.b16 %v3930
    %v4702 = vunpack.c.h.b16 %v3930
    %v4703 = vunpack.c.l.b16 %v3931
    %v4704 = vunpack.c.h.b16 %v3931
    %v4705 = vunpack.c.l.b16 %v3932
    %v4706 = vunpack.c.h.b16 %v3932
    %v4707 = vunpack.c.l.b16 %v3933
    %v4708 = vunpack.c.h.b16 %v3933
    %v4709 = vunpack.c.l.b16 %v3934
    %v4710 = vunpack.c.h.b16 %v3934
    %v4711 = vunpack.c.l.b16 %v3935
    %v4712 = vunpack.c.h.b16 %v3935
    %v4713 = vunpack.c.l.b16 %v3936
    %v4714 = vunpack.c.h.b16 %v3936
    %v4715 = vunpack.c.l.b16 %v3937
    %v4716 = vunpack.c.h.b16 %v3937
    %v4717 = vunpack.c.l.b16 %v3938
    %v4718 = vunpack.c.h.b16 %v3938
    %v4719 = vunpack.c.l.b16 %v3939
    %v4720 = vunpack.c.h.b16 %v3939
    %v4721 = vunpack.c.l.b16 %v3940
    %v4722 = vunpack.c.h.b16 %v3940
    %v4723 = vunpack.c.l.b16 %v3941
    %v4724 = vunpack.c.h.b16 %v3941
    %v4725 = vunpack.c.l.b16 %v3942
    %v4726 = vunpack.c.h.b16 %v3942
    %v4727 = vunpack.c.l.b16 %v3943
    %v4728 = vunpack.c.h.b16 %v3943
    %v4729 = vunpack.c.l.b16 %v3944
    %v4730 = vunpack.c.h.b16 %v3944
    %v4731 = vunpack.c.l.b16 %v3945
    %v4732 = vunpack.c.h.b16 %v3945
    %v4733 = vunpack.c.l.b16 %v3946
    %v4734 = vunpack.c.h.b16 %v3946
    %v4735 = vunpack.c.l.b16 %v3947
    %v4736 = vunpack.c.h.b16 %v3947
    %v4737 = vunpack.c.l.b16 %v3948
    %v4738 = vunpack.c.h.b16 %v3948
    %v4739 = vunpack.c.l.b16 %v3949
    %v4740 = vunpack.c.h.b16 %v3949
    %v4741 = vunpack.c.l.b16 %v3950
    %v4742 = vunpack.c.h.b16 %v3950
    %v4743 = vunpack.c.l.b16 %v3951
    %v4744 = vunpack.c.h.b16 %v3951
    %v4745 = vunpack.c.l.b16 %v3952
    %v4746 = vunpack.c.h.b16 %v3952
    %v4747 = vunpack.c.l.b16 %v3953
    %v4748 = vunpack.c.h.b16 %v3953
    %v4749 = vunpack.c.l.b16 %v3954
    %v4750 = vunpack.c.h.b16 %v3954
    %v4751 = vunpack.c.l.b16 %v3955
    %v4752 = vunpack.c.h.b16 %v3955
    %v4753 = vunpack.c.l.b16 %v3956
    %v4754 = vunpack.c.h.b16 %v3956
    %v4755 = vunpack.c.l.b16 %v3957
    %v4756 = vunpack.c.h.b16 %v3957
    %v4757 = vunpack.c.l.b16 %v3958
    %v4758 = vunpack.c.h.b16 %v3958
    %v4759 = vunpack.c.l.b16 %v3959
    %v4760 = vunpack.c.h.b16 %v3959
    %v4761 = vunpack.c.l.b16 %v3960
    %v4762 = vunpack.c.h.b16 %v3960
    %v4763 = vunpack.c.l.b16 %v3961
    %v4764 = vunpack.c.h.b16 %v3961
    %v4765 = vunpack.c.l.b16 %v3962
    %v4766 = vunpack.c.h.b16 %v3962
    %v4767 = vunpack.c.l.b16 %v3963
    %v4768 = vunpack.c.h.b16 %v3963
    %v4769 = vunpack.c.l.b16 %v3964
    %v4770 = vunpack.c.h.b16 %v3964
    %v4771 = vunpack.c.l.b16 %v3965
    %v4772 = vunpack.c.h.b16 %v3965
    %v4773 = vunpack.c.l.b16 %v3966
    %v4774 = vunpack.c.h.b16 %v3966
    %v4775 = vunpack.c.l.b16 %v3967
    %v4776 = vunpack.c.h.b16 %v3967
    %v4777 = vunpack.c.l.b16 %v3968
    %v4778 = vunpack.c.h.b16 %v3968
    %v4779 = vunpack.c.l.b16 %v3969
    %v4780 = vunpack.c.h.b16 %v3969
    %v4781 = vunpack.c.l.b16 %v3970
    %v4782 = vunpack.c.h.b16 %v3970
    %v4783 = vunpack.c.l.b16 %v3971
    %v4784 = vunpack.c.h.b16 %v3971
    %v4785 = vunpack.c.l.b16 %v3972
    %v4786 = vunpack.c.h.b16 %v3972
    %v4787 = vunpack.c.l.b16 %v3973
    %v4788 = vunpack.c.h.b16 %v3973
    %v4789 = vunpack.c.l.b16 %v3974
    %v4790 = vunpack.c.h.b16 %v3974
    %v4791 = vunpack.c.l.b16 %v3975
    %v4792 = vunpack.c.h.b16 %v3975
    %v4793 = vunpack.c.l.b16 %v3976
    %v4794 = vunpack.c.h.b16 %v3976
    %v4795 = vpack.c.b16 %v4287, %v4283
    %v4796 = vpack.c.b16 %v4288, %v4284
    %v4797 = vpack.c.b16 %v4289, %v4285
    %v4798 = vpack.c.b16 %v4290, %v4286
    %v4799 = vpack.c.b16 %v4295, %v4291
    %v4800 = vpack.c.b16 %v4296, %v4292
    %v4801 = vpack.c.b16 %v4297, %v4293
    %v4802 = vpack.c.b16 %v4298, %v4294
    %v4803 = vpack.c.b16 %v4303, %v4299
    %v4804 = vpack.c.b16 %v4304, %v4300
    %v4805 = vpack.c.b16 %v4305, %v4301
    %v4806 = vpack.c.b16 %v4306, %v4302
    %v4807 = vpack.c.b16 %v4311, %v4307
    %v4808 = vpack.c.b16 %v4312, %v4308
    %v4809 = vpack.c.b16 %v4313, %v4309
    %v4810 = vpack.c.b16 %v4314, %v4310
    %v4811 = vpack.c.b16 %v4319, %v4315
    %v4812 = vpack.c.b16 %v4320, %v4316
    %v4813 = vpack.c.b16 %v4321, %v4317
    %v4814 = vpack.c.b16 %v4322, %v4318
    %v4815 = vpack.c.b16 %v4327, %v4323
    %v4816 = vpack.c.b16 %v4328, %v4324
    %v4817 = vpack.c.b16 %v4329, %v4325
    %v4818 = vpack.c.b16 %v4330, %v4326
    %v4819 = vpack.c.b16 %v4335, %v4331
    %v4820 = vpack.c.b16 %v4336, %v4332
    %v4821 = vpack.c.b16 %v4337, %v4333
    %v4822 = vpack.c.b16 %v4338, %v4334
    %v4823 = vpack.c.b16 %v4343, %v4339
    %v4824 = vpack.c.b16 %v4344, %v4340
    %v4825 = vpack.c.b16 %v4345, %v4341
    %v4826 = vpack.c.b16 %v4346, %v4342
    %v4827 = vpack.c.b16 %v4351, %v4347
    %v4828 = vpack.c.b16 %v4352, %v4348
    %v4829 = vpack.c.b16 %v4353, %v4349
    %v4830 = vpack.c.b16 %v4354, %v4350
    %v4831 = vpack.c.b16 %v4359, %v4355
    %v4832 = vpack.c.b16 %v4360, %v4356
    %v4833 = vpack.c.b16 %v4361, %v4357
    %v4834 = vpack.c.b16 %v4362, %v4358
    %v4835 = vpack.c.b16 %v4367, %v4363
    %v4836 = vpack.c.b16 %v4368, %v4364
    %v4837 = vpack.c.b16 %v4369, %v4365
    %v4838 = vpack.c.b16 %v4370, %v4366
    %v4839 = vpack.c.b16 %v4375, %v4371
    %v4840 = vpack.c.b16 %v4376, %v4372
    %v4841 = vpack.c.b16 %v4377, %v4373
    %v4842 = vpack.c.b16 %v4378, %v4374
    %v4843 = vpack.c.b16 %v4383, %v4379
    %v4844 = vpack.c.b16 %v4384, %v4380
    %v4845 = vpack.c.b16 %v4385, %v4381
    %v4846 = vpack.c.b16 %v4386, %v4382
    %v4847 = vpack.c.b16 %v4391, %v4387
    %v4848 = vpack.c.b16 %v4392, %v4388
    %v4849 = vpack.c.b16 %v4393, %v4389
    %v4850 = vpack.c.b16 %v4394, %v4390
    %v4851 = vpack.c.b16 %v4399, %v4395
    %v4852 = vpack.c.b16 %v4400, %v4396
    %v4853 = vpack.c.b16 %v4401, %v4397
    %v4854 = vpack.c.b16 %v4402, %v4398
    %v4855 = vpack.c.b16 %v4407, %v4403
    %v4856 = vpack.c.b16 %v4408, %v4404
    %v4857 = vpack.c.b16 %v4409, %v4405
    %v4858 = vpack.c.b16 %v4410, %v4406
    %v4859 = vpack.c.b16 %v4415, %v4411
    %v4860 = vpack.c.b16 %v4416, %v4412
    %v4861 = vpack.c.b16 %v4417, %v4413
    %v4862 = vpack.c.b16 %v4418, %v4414
    %v4863 = vpack.c.b16 %v4423, %v4419
    %v4864 = vpack.c.b16 %v4424, %v4420
    %v4865 = vpack.c.b16 %v4425, %v4421
    %v4866 = vpack.c.b16 %v4426, %v4422
    %v4867 = vpack.c.b16 %v4431, %v4427
    %v4868 = vpack.c.b16 %v4432, %v4428
    %v4869 = vpack.c.b16 %v4433, %v4429
    %v4870 = vpack.c.b16 %v4434, %v4430
    %v4871 = vpack.c.b16 %v4439, %v4435
    %v4872 = vpack.c.b16 %v4440, %v4436
    %v4873 = vpack.c.b16 %v4441, %v4437
    %v4874 = vpack.c.b16 %v4442, %v4438
    %v4875 = vpack.c.b16 %v4447, %v4443
    %v4876 = vpack.c.b16 %v4448, %v4444
    %v4877 = vpack.c.b16 %v4449, %v4445
    %v4878 = vpack.c.b16 %v4450, %v4446
    %v4879 = vpack.c.b16 %v4455, %v4451
    %v4880 = vpack.c.b16 %v4456, %v4452
    %v4881 = vpack.c.b16 %v4457, %v4453
    %v4882 = vpack.c.b16 %v4458, %v4454
    %v4883 = vpack.c.b16 %v4463, %v4459
    %v4884 = vpack.c.b16 %v4464, %v4460
    %v4885 = vpack.c.b16 %v4465, %v4461
    %v4886 = vpack.c.b16 %v4466, %v4462
    %v4887 = vpack.c.b16 %v4471, %v4467
    %v4888 = vpack.c.b16 %v4472, %v4468
    %v4889 = vpack.c.b16 %v4473, %v4469
    %v4890 = vpack.c.b16 %v4474, %v4470
    %v4891 = vpack.c.b16 %v4479, %v4475
    %v4892 = vpack.c.b16 %v4480, %v4476
    %v4893 = vpack.c.b16 %v4481, %v4477
    %v4894 = vpack.c.b16 %v4482, %v4478
    %v4895 = vpack.c.b16 %v4487, %v4483
    %v4896 = vpack.c.b16 %v4488, %v4484
    %v4897 = vpack.c.b16 %v4489, %v4485
    %v4898 = vpack.c.b16 %v4490, %v4486
    %v4899 = vpack.c.b16 %v4495, %v4491
    %v4900 = vpack.c.b16 %v4496, %v4492
    %v4901 = vpack.c.b16 %v4497, %v4493
    %v4902 = vpack.c.b16 %v4498, %v4494
    %v4903 = vpack.c.b16 %v4503, %v4499
    %v4904 = vpack.c.b16 %v4504, %v4500
    %v4905 = vpack.c.b16 %v4505, %v4501
    %v4906 = vpack.c.b16 %v4506, %v4502
    %v4907 = vpack.c.b16 %v4511, %v4507
    %v4908 = vpack.c.b16 %v4512, %v4508
    %v4909 = vpack.c.b16 %v4513, %v4509
    %v4910 = vpack.c.b16 %v4514, %v4510
    %v4911 = vpack.c.b16 %v4519, %v4515
    %v4912 = vpack.c.b16 %v4520, %v4516
    %v4913 = vpack.c.b16 %v4521, %v4517
    %v4914 = vpack.c.b16 %v4522, %v4518
    %v4915 = vpack.c.b16 %v4527, %v4523
    %v4916 = vpack.c.b16 %v4528, %v4524
    %v4917 = vpack.c.b16 %v4529, %v4525
    %v4918 = vpack.c.b16 %v4530, %v4526
    %v4919 = vpack.c.b16 %v4535, %v4531
    %v4920 = vpack.c.b16 %v4536, %v4532
    %v4921 = vpack.c.b16 %v4537, %v4533
    %v4922 = vpack.c.b16 %v4538, %v4534
    %v4923 = vpack.c.b16 %v4543, %v4539
    %v4924 = vpack.c.b16 %v4544, %v4540
    %v4925 = vpack.c.b16 %v4545, %v4541
    %v4926 = vpack.c.b16 %v4546, %v4542
    %v4927 = vpack.c.b16 %v4551, %v4547
    %v4928 = vpack.c.b16 %v4552, %v4548
    %v4929 = vpack.c.b16 %v4553, %v4549
    %v4930 = vpack.c.b16 %v4554, %v4550
    %v4931 = vpack.c.b16 %v4559, %v4555
    %v4932 = vpack.c.b16 %v4560, %v4556
    %v4933 = vpack.c.b16 %v4561, %v4557
    %v4934 = vpack.c.b16 %v4562, %v4558
    %v4935 = vpack.c.b16 %v4567, %v4563
    %v4936 = vpack.c.b16 %v4568, %v4564
    %v4937 = vpack.c.b16 %v4569, %v4565
    %v4938 = vpack.c.b16 %v4570, %v4566
    %v4939 = vpack.c.b16 %v4575, %v4571
    %v4940 = vpack.c.b16 %v4576, %v4572
    %v4941 = vpack.c.b16 %v4577, %v4573
    %v4942 = vpack.c.b16 %v4578, %v4574
    %v4943 = vpack.c.b16 %v4583, %v4579
    %v4944 = vpack.c.b16 %v4584, %v4580
    %v4945 = vpack.c.b16 %v4585, %v4581
    %v4946 = vpack.c.b16 %v4586, %v4582
    %v4947 = vpack.c.b16 %v4591, %v4587
    %v4948 = vpack.c.b16 %v4592, %v4588
    %v4949 = vpack.c.b16 %v4593, %v4589
    %v4950 = vpack.c.b16 %v4594, %v4590
    %v4951 = vpack.c.b16 %v4599, %v4595
    %v4952 = vpack.c.b16 %v4600, %v4596
    %v4953 = vpack.c.b16 %v4601, %v4597
    %v4954 = vpack.c.b16 %v4602, %v4598
    %v4955 = vpack.c.b16 %v4607, %v4603
    %v4956 = vpack.c.b16 %v4608, %v4604
    %v4957 = vpack.c.b16 %v4609, %v4605
    %v4958 = vpack.c.b16 %v4610, %v4606
    %v4959 = vpack.c.b16 %v4615, %v4611
    %v4960 = vpack.c.b16 %v4616, %v4612
    %v4961 = vpack.c.b16 %v4617, %v4613
    %v4962 = vpack.c.b16 %v4618, %v4614
    %v4963 = vpack.c.b16 %v4623, %v4619
    %v4964 = vpack.c.b16 %v4624, %v4620
    %v4965 = vpack.c.b16 %v4625, %v4621
    %v4966 = vpack.c.b16 %v4626, %v4622
    %v4967 = vpack.c.b16 %v4631, %v4627
    %v4968 = vpack.c.b16 %v4632, %v4628
    %v4969 = vpack.c.b16 %v4633, %v4629
    %v4970 = vpack.c.b16 %v4634, %v4630
    %v4971 = vpack.c.b16 %v4639, %v4635
    %v4972 = vpack.c.b16 %v4640, %v4636
    %v4973 = vpack.c.b16 %v4641, %v4637
    %v4974 = vpack.c.b16 %v4642, %v4638
    %v4975 = vpack.c.b16 %v4647, %v4643
    %v4976 = vpack.c.b16 %v4648, %v4644
    %v4977 = vpack.c.b16 %v4649, %v4645
    %v4978 = vpack.c.b16 %v4650, %v4646
    %v4979 = vpack.c.b16 %v4655, %v4651
    %v4980 = vpack.c.b16 %v4656, %v4652
    %v4981 = vpack.c.b16 %v4657, %v4653
    %v4982 = vpack.c.b16 %v4658, %v4654
    %v4983 = vpack.c.b16 %v4663, %v4659
    %v4984 = vpack.c.b16 %v4664, %v4660
    %v4985 = vpack.c.b16 %v4665, %v4661
    %v4986 = vpack.c.b16 %v4666, %v4662
    %v4987 = vpack.c.b16 %v4671, %v4667
    %v4988 = vpack.c.b16 %v4672, %v4668
    %v4989 = vpack.c.b16 %v4673, %v4669
    %v4990 = vpack.c.b16 %v4674, %v4670
    %v4991 = vpack.c.b16 %v4679, %v4675
    %v4992 = vpack.c.b16 %v4680, %v4676
    %v4993 = vpack.c.b16 %v4681, %v4677
    %v4994 = vpack.c.b16 %v4682, %v4678
    %v4995 = vpack.c.b16 %v4687, %v4683
    %v4996 = vpack.c.b16 %v4688, %v4684
    %v4997 = vpack.c.b16 %v4689, %v4685
    %v4998 = vpack.c.b16 %v4690, %v4686
    %v4999 = vpack.c.b16 %v4695, %v4691
    %v5000 = vpack.c.b16 %v4696, %v4692
    %v5001 = vpack.c.b16 %v4697, %v4693
    %v5002 = vpack.c.b16 %v4698, %v4694
    %v5003 = vpack.c.b16 %v4703, %v4699
    %v5004 = vpack.c.b16 %v4704, %v4700
    %v5005 = vpack.c.b16 %v4705, %v4701
    %v5006 = vpack.c.b16 %v4706, %v4702
    %v5007 = vpack.c.b16 %v4711, %v4707
    %v5008 = vpack.c.b16 %v4712, %v4708
    %v5009 = vpack.c.b16 %v4713, %v4709
    %v5010 = vpack.c.b16 %v4714, %v4710
    %v5011 = vpack.c.b16 %v4719, %v4715
    %v5012 = vpack.c.b16 %v4720, %v4716
    %v5013 = vpack.c.b16 %v4721, %v4717
    %v5014 = vpack.c.b16 %v4722, %v4718
    %v5015 = vpack.c.b16 %v4727, %v4723
    %v5016 = vpack.c.b16 %v4728, %v4724
    %v5017 = vpack.c.b16 %v4729, %v4725
    %v5018 = vpack.c.b16 %v4730, %v4726
    %v5019 = vpack.c.b16 %v4735, %v4731
    %v5020 = vpack.c.b16 %v4736, %v4732
    %v5021 = vpack.c.b16 %v4737, %v4733
    %v5022 = vpack.c.b16 %v4738, %v4734
    %v5023 = vpack.c.b16 %v4743, %v4739
    %v5024 = vpack.c.b16 %v4744, %v4740
    %v5025 = vpack.c.b16 %v4745, %v4741
    %v5026 = vpack.c.b16 %v4746, %v4742
    %v5027 = vpack.c.b16 %v4751, %v4747
    %v5028 = vpack.c.b16 %v4752, %v4748
    %v5029 = vpack.c.b16 %v4753, %v4749
    %v5030 = vpack.c.b16 %v4754, %v4750
    %v5031 = vpack.c.b16 %v4759, %v4755
    %v5032 = vpack.c.b16 %v4760, %v4756
    %v5033 = vpack.c.b16 %v4761, %v4757
    %v5034 = vpack.c.b16 %v4762, %v4758
    %v5035 = vpack.c.b16 %v4767, %v4763
    %v5036 = vpack.c.b16 %v4768, %v4764
    %v5037 = vpack.c.b16 %v4769, %v4765
    %v5038 = vpack.c.b16 %v4770, %v4766
    %v5039 = vpack.c.b16 %v4775, %v4771
    %v5040 = vpack.c.b16 %v4776, %v4772
    %v5041 = vpack.c.b16 %v4777, %v4773
    %v5042 = vpack.c.b16 %v4778, %v4774
    %v5043 = vpack.c.b16 %v4783, %v4779
    %v5044 = vpack.c.b16 %v4784, %v4780
    %v5045 = vpack.c.b16 %v4785, %v4781
    %v5046 = vpack.c.b16 %v4786, %v4782
    %v5047 = vpack.c.b16 %v4791, %v4787
    %v5048 = vpack.c.b16 %v4792, %v4788
    %v5049 = vpack.c.b16 %v4793, %v4789
    %v5050 = vpack.c.b16 %v4794, %v4790
    %5307 = vmatpush.bf16.msra.mxu0 %v4823
    %5308 = vmatpush.bf16.msra.mxu0 %v4819
    %5309 = vmatpush.bf16.msra.mxu0 %v4815
    %5310 = vmatpush.bf16.msra.mxu0 %v4811
    %5311 = vmatpush.bf16.msra.mxu0 %v4807
    %5312 = vmatpush.bf16.msra.mxu0 %v4803
    %5313 = vmatpush.bf16.msra.mxu0 %v4799
    %5314 = vmatpush.bf16.msra.mxu0 %v4795
    %5315 = vmatmul.bf16.gmra.mxu0 %v4011
    %v5316 = vpop.f32.mrf.mxu0
    %v5317 = vadd.f32 %v3979, %v5316
    %v5318 = vpop.f32.mrf.mxu0
    %v5319 = vadd.f32 %v3979, %v5318
    %5320 = vdwg.mxu0
    %5321 = vmatpush.bf16.msra.mxu0 %v4855
    %5322 = vmatpush.bf16.msra.mxu0 %v4851
    %5323 = vmatpush.bf16.msra.mxu0 %v4847
    %5324 = vmatpush.bf16.msra.mxu0 %v4843
    %5325 = vmatpush.bf16.msra.mxu0 %v4839
    %5326 = vmatpush.bf16.msra.mxu0 %v4835
    %5327 = vmatpush.bf16.msra.mxu0 %v4831
    %5328 = vmatpush.bf16.msra.mxu0 %v4827
    %5329 = vmatmul.bf16.gmra.mxu0 %v4012
    %v5330 = vpop.f32.mrf.mxu0
    %v5331 = vadd.f32 %v5317, %v5330
    %v5332 = vpop.f32.mrf.mxu0
    %v5333 = vadd.f32 %v5319, %v5332
    %5334 = vdwg.mxu0
    %5335 = vmatpush.bf16.msra.mxu0 %v4887
    %5336 = vmatpush.bf16.msra.mxu0 %v4883
    %5337 = vmatpush.bf16.msra.mxu0 %v4879
    %5338 = vmatpush.bf16.msra.mxu0 %v4875
    %5339 = vmatpush.bf16.msra.mxu0 %v4871
    %5340 = vmatpush.bf16.msra.mxu0 %v4867
    %5341 = vmatpush.bf16.msra.mxu0 %v4863
    %5342 = vmatpush.bf16.msra.mxu0 %v4859
    %5343 = vmatmul.bf16.gmra.mxu0 %v4013
    %v5344 = vpop.f32.mrf.mxu0
    %v5345 = vadd.f32 %v5331, %v5344
    %v5346 = vpop.f32.mrf.mxu0
    %v5347 = vadd.f32 %v5333, %v5346
    %5348 = vdwg.mxu0
    %5349 = vmatpush.bf16.msra.mxu0 %v4919
    %5350 = vmatpush.bf16.msra.mxu0 %v4915
    %5351 = vmatpush.bf16.msra.mxu0 %v4911
    %5352 = vmatpush.bf16.msra.mxu0 %v4907
    %5353 = vmatpush.bf16.msra.mxu0 %v4903
    %5354 = vmatpush.bf16.msra.mxu0 %v4899
    %5355 = vmatpush.bf16.msra.mxu0 %v4895
    %5356 = vmatpush.bf16.msra.mxu0 %v4891
    %5357 = vmatmul.bf16.gmra.mxu0 %v4014
    %v5358 = vpop.f32.mrf.mxu0
    %v5359 = vadd.f32 %v5345, %v5358
    %v5360 = vpop.f32.mrf.mxu0
    %v5361 = vadd.f32 %v5347, %v5360
    %5362 = vdwg.mxu0
    %5363 = vmatpush.bf16.msra.mxu0 %v4951
    %5364 = vmatpush.bf16.msra.mxu0 %v4947
    %5365 = vmatpush.bf16.msra.mxu0 %v4943
    %5366 = vmatpush.bf16.msra.mxu0 %v4939
    %5367 = vmatpush.bf16.msra.mxu0 %v4935
    %5368 = vmatpush.bf16.msra.mxu0 %v4931
    %5369 = vmatpush.bf16.msra.mxu0 %v4927
    %5370 = vmatpush.bf16.msra.mxu0 %v4923
    %5371 = vmatmul.bf16.gmra.mxu0 %v4015
    %v5372 = vpop.f32.mrf.mxu0
    %v5373 = vadd.f32 %v5359, %v5372
    %v5374 = vpop.f32.mrf.mxu0
    %v5375 = vadd.f32 %v5361, %v5374
    %5376 = vdwg.mxu0
    %5377 = vmatpush.bf16.msra.mxu0 %v4983
    %5378 = vmatpush.bf16.msra.mxu0 %v4979
    %5379 = vmatpush.bf16.msra.mxu0 %v4975
    %5380 = vmatpush.bf16.msra.mxu0 %v4971
    %5381 = vmatpush.bf16.msra.mxu0 %v4967
    %5382 = vmatpush.bf16.msra.mxu0 %v4963
    %5383 = vmatpush.bf16.msra.mxu0 %v4959
    %5384 = vmatpush.bf16.msra.mxu0 %v4955
    %5385 = vmatmul.bf16.gmra.mxu0 %v4016
    %v5386 = vpop.f32.mrf.mxu0
    %v5387 = vadd.f32 %v5373, %v5386
    %v5388 = vpop.f32.mrf.mxu0
    %v5389 = vadd.f32 %v5375, %v5388
    %5390 = vdwg.mxu0
    %5391 = vmatpush.bf16.msra.mxu0 %v5015
    %5392 = vmatpush.bf16.msra.mxu0 %v5011
    %5393 = vmatpush.bf16.msra.mxu0 %v5007
    %5394 = vmatpush.bf16.msra.mxu0 %v5003
    %5395 = vmatpush.bf16.msra.mxu0 %v4999
    %5396 = vmatpush.bf16.msra.mxu0 %v4995
    %5397 = vmatpush.bf16.msra.mxu0 %v4991
    %5398 = vmatpush.bf16.msra.mxu0 %v4987
    %5399 = vmatmul.bf16.gmra.mxu0 %v4017
    %v5400 = vpop.f32.mrf.mxu0
    %v5401 = vadd.f32 %v5387, %v5400
    %v5402 = vpop.f32.mrf.mxu0
    %v5403 = vadd.f32 %v5389, %v5402
    %5404 = vdwg.mxu0
    %5405 = vmatpush.bf16.msra.mxu0 %v5047
    %5406 = vmatpush.bf16.msra.mxu0 %v5043
    %5407 = vmatpush.bf16.msra.mxu0 %v5039
    %5408 = vmatpush.bf16.msra.mxu0 %v5035
    %5409 = vmatpush.bf16.msra.mxu0 %v5031
    %5410 = vmatpush.bf16.msra.mxu0 %v5027
    %5411 = vmatpush.bf16.msra.mxu0 %v5023
    %5412 = vmatpush.bf16.msra.mxu0 %v5019
    %5413 = vmatmul.bf16.gmra.mxu0 %v4018
    %v5414 = vpop.f32.mrf.mxu0
    %v5415 = vadd.f32 %v5401, %v5414
    %v5416 = vpop.f32.mrf.mxu0
    %v5417 = vadd.f32 %v5403, %v5416
    %5418 = vdwg.mxu0
    %5419 = vmatpush.bf16.msra.mxu0 %v4824
    %5420 = vmatpush.bf16.msra.mxu0 %v4820
    %5421 = vmatpush.bf16.msra.mxu0 %v4816
    %5422 = vmatpush.bf16.msra.mxu0 %v4812
    %5423 = vmatpush.bf16.msra.mxu0 %v4808
    %5424 = vmatpush.bf16.msra.mxu0 %v4804
    %5425 = vmatpush.bf16.msra.mxu0 %v4800
    %5426 = vmatpush.bf16.msra.mxu0 %v4796
    %5427 = vmatmul.bf16.gmra.mxu0 %v4011
    %v5428 = vpop.f32.mrf.mxu0
    %v5429 = vadd.f32 %v3980, %v5428
    %v5430 = vpop.f32.mrf.mxu0
    %v5431 = vadd.f32 %v3980, %v5430
    %5432 = vdwg.mxu0
    %5433 = vmatpush.bf16.msra.mxu0 %v4856
    %5434 = vmatpush.bf16.msra.mxu0 %v4852
    %5435 = vmatpush.bf16.msra.mxu0 %v4848
    %5436 = vmatpush.bf16.msra.mxu0 %v4844
    %5437 = vmatpush.bf16.msra.mxu0 %v4840
    %5438 = vmatpush.bf16.msra.mxu0 %v4836
    %5439 = vmatpush.bf16.msra.mxu0 %v4832
    %5440 = vmatpush.bf16.msra.mxu0 %v4828
    %5441 = vmatmul.bf16.gmra.mxu0 %v4012
    %v5442 = vpop.f32.mrf.mxu0
    %v5443 = vadd.f32 %v5429, %v5442
    %v5444 = vpop.f32.mrf.mxu0
    %v5445 = vadd.f32 %v5431, %v5444
    %5446 = vdwg.mxu0
    %5447 = vmatpush.bf16.msra.mxu0 %v4888
    %5448 = vmatpush.bf16.msra.mxu0 %v4884
    %5449 = vmatpush.bf16.msra.mxu0 %v4880
    %5450 = vmatpush.bf16.msra.mxu0 %v4876
    %5451 = vmatpush.bf16.msra.mxu0 %v4872
    %5452 = vmatpush.bf16.msra.mxu0 %v4868
    %5453 = vmatpush.bf16.msra.mxu0 %v4864
    %5454 = vmatpush.bf16.msra.mxu0 %v4860
    %5455 = vmatmul.bf16.gmra.mxu0 %v4013
    %v5456 = vpop.f32.mrf.mxu0
    %v5457 = vadd.f32 %v5443, %v5456
    %v5458 = vpop.f32.mrf.mxu0
    %v5459 = vadd.f32 %v5445, %v5458
    %5460 = vdwg.mxu0
    %5461 = vmatpush.bf16.msra.mxu0 %v4920
    %5462 = vmatpush.bf16.msra.mxu0 %v4916
    %5463 = vmatpush.bf16.msra.mxu0 %v4912
    %5464 = vmatpush.bf16.msra.mxu0 %v4908
    %5465 = vmatpush.bf16.msra.mxu0 %v4904
    %5466 = vmatpush.bf16.msra.mxu0 %v4900
    %5467 = vmatpush.bf16.msra.mxu0 %v4896
    %5468 = vmatpush.bf16.msra.mxu0 %v4892
    %5469 = vmatmul.bf16.gmra.mxu0 %v4014
    %v5470 = vpop.f32.mrf.mxu0
    %v5471 = vadd.f32 %v5457, %v5470
    %v5472 = vpop.f32.mrf.mxu0
    %v5473 = vadd.f32 %v5459, %v5472
    %5474 = vdwg.mxu0
    %5475 = vmatpush.bf16.msra.mxu0 %v4952
    %5476 = vmatpush.bf16.msra.mxu0 %v4948
    %5477 = vmatpush.bf16.msra.mxu0 %v4944
    %5478 = vmatpush.bf16.msra.mxu0 %v4940
    %5479 = vmatpush.bf16.msra.mxu0 %v4936
    %5480 = vmatpush.bf16.msra.mxu0 %v4932
    %5481 = vmatpush.bf16.msra.mxu0 %v4928
    %5482 = vmatpush.bf16.msra.mxu0 %v4924
    %5483 = vmatmul.bf16.gmra.mxu0 %v4015
    %v5484 = vpop.f32.mrf.mxu0
    %v5485 = vadd.f32 %v5471, %v5484
    %v5486 = vpop.f32.mrf.mxu0
    %v5487 = vadd.f32 %v5473, %v5486
    %5488 = vdwg.mxu0
    %5489 = vmatpush.bf16.msra.mxu0 %v4984
    %5490 = vmatpush.bf16.msra.mxu0 %v4980
    %5491 = vmatpush.bf16.msra.mxu0 %v4976
    %5492 = vmatpush.bf16.msra.mxu0 %v4972
    %5493 = vmatpush.bf16.msra.mxu0 %v4968
    %5494 = vmatpush.bf16.msra.mxu0 %v4964
    %5495 = vmatpush.bf16.msra.mxu0 %v4960
    %5496 = vmatpush.bf16.msra.mxu0 %v4956
    %5497 = vmatmul.bf16.gmra.mxu0 %v4016
    %v5498 = vpop.f32.mrf.mxu0
    %v5499 = vadd.f32 %v5485, %v5498
    %v5500 = vpop.f32.mrf.mxu0
    %v5501 = vadd.f32 %v5487, %v5500
    %5502 = vdwg.mxu0
    %5503 = vmatpush.bf16.msra.mxu0 %v5016
    %5504 = vmatpush.bf16.msra.mxu0 %v5012
    %5505 = vmatpush.bf16.msra.mxu0 %v5008
    %5506 = vmatpush.bf16.msra.mxu0 %v5004
    %5507 = vmatpush.bf16.msra.mxu0 %v5000
    %5508 = vmatpush.bf16.msra.mxu0 %v4996
    %5509 = vmatpush.bf16.msra.mxu0 %v4992
    %5510 = vmatpush.bf16.msra.mxu0 %v4988
    %5511 = vmatmul.bf16.gmra.mxu0 %v4017
    %v5512 = vpop.f32.mrf.mxu0
    %v5513 = vadd.f32 %v5499, %v5512
    %v5514 = vpop.f32.mrf.mxu0
    %v5515 = vadd.f32 %v5501, %v5514
    %5516 = vdwg.mxu0
    %5517 = vmatpush.bf16.msra.mxu0 %v5048
    %5518 = vmatpush.bf16.msra.mxu0 %v5044
    %5519 = vmatpush.bf16.msra.mxu0 %v5040
    %5520 = vmatpush.bf16.msra.mxu0 %v5036
    %5521 = vmatpush.bf16.msra.mxu0 %v5032
    %5522 = vmatpush.bf16.msra.mxu0 %v5028
    %5523 = vmatpush.bf16.msra.mxu0 %v5024
    %5524 = vmatpush.bf16.msra.mxu0 %v5020
    %5525 = vmatmul.bf16.gmra.mxu0 %v4018
    %v5526 = vpop.f32.mrf.mxu0
    %v5527 = vadd.f32 %v5513, %v5526
    %v5528 = vpop.f32.mrf.mxu0
    %v5529 = vadd.f32 %v5515, %v5528
    %5530 = vdwg.mxu0
    %5531 = vmatpush.bf16.msra.mxu0 %v4825
    %5532 = vmatpush.bf16.msra.mxu0 %v4821
    %5533 = vmatpush.bf16.msra.mxu0 %v4817
    %5534 = vmatpush.bf16.msra.mxu0 %v4813
    %5535 = vmatpush.bf16.msra.mxu0 %v4809
    %5536 = vmatpush.bf16.msra.mxu0 %v4805
    %5537 = vmatpush.bf16.msra.mxu0 %v4801
    %5538 = vmatpush.bf16.msra.mxu0 %v4797
    %5539 = vmatmul.bf16.gmra.mxu0 %v4011
    %v5540 = vpop.f32.mrf.mxu0
    %v5541 = vadd.f32 %v3981, %v5540
    %v5542 = vpop.f32.mrf.mxu0
    %v5543 = vadd.f32 %v3981, %v5542
    %5544 = vdwg.mxu0
    %5545 = vmatpush.bf16.msra.mxu0 %v4857
    %5546 = vmatpush.bf16.msra.mxu0 %v4853
    %5547 = vmatpush.bf16.msra.mxu0 %v4849
    %5548 = vmatpush.bf16.msra.mxu0 %v4845
    %5549 = vmatpush.bf16.msra.mxu0 %v4841
    %5550 = vmatpush.bf16.msra.mxu0 %v4837
    %5551 = vmatpush.bf16.msra.mxu0 %v4833
    %5552 = vmatpush.bf16.msra.mxu0 %v4829
    %5553 = vmatmul.bf16.gmra.mxu0 %v4012
    %v5554 = vpop.f32.mrf.mxu0
    %v5555 = vadd.f32 %v5541, %v5554
    %v5556 = vpop.f32.mrf.mxu0
    %v5557 = vadd.f32 %v5543, %v5556
    %5558 = vdwg.mxu0
    %5559 = vmatpush.bf16.msra.mxu0 %v4889
    %5560 = vmatpush.bf16.msra.mxu0 %v4885
    %5561 = vmatpush.bf16.msra.mxu0 %v4881
    %5562 = vmatpush.bf16.msra.mxu0 %v4877
    %5563 = vmatpush.bf16.msra.mxu0 %v4873
    %5564 = vmatpush.bf16.msra.mxu0 %v4869
    %5565 = vmatpush.bf16.msra.mxu0 %v4865
    %5566 = vmatpush.bf16.msra.mxu0 %v4861
    %5567 = vmatmul.bf16.gmra.mxu0 %v4013
    %v5568 = vpop.f32.mrf.mxu0
    %v5569 = vadd.f32 %v5555, %v5568
    %v5570 = vpop.f32.mrf.mxu0
    %v5571 = vadd.f32 %v5557, %v5570
    %5572 = vdwg.mxu0
    %5573 = vmatpush.bf16.msra.mxu0 %v4921
    %5574 = vmatpush.bf16.msra.mxu0 %v4917
    %5575 = vmatpush.bf16.msra.mxu0 %v4913
    %5576 = vmatpush.bf16.msra.mxu0 %v4909
    %5577 = vmatpush.bf16.msra.mxu0 %v4905
    %5578 = vmatpush.bf16.msra.mxu0 %v4901
    %5579 = vmatpush.bf16.msra.mxu0 %v4897
    %5580 = vmatpush.bf16.msra.mxu0 %v4893
    %5581 = vmatmul.bf16.gmra.mxu0 %v4014
    %v5582 = vpop.f32.mrf.mxu0
    %v5583 = vadd.f32 %v5569, %v5582
    %v5584 = vpop.f32.mrf.mxu0
    %v5585 = vadd.f32 %v5571, %v5584
    %5586 = vdwg.mxu0
    %5587 = vmatpush.bf16.msra.mxu0 %v4953
    %5588 = vmatpush.bf16.msra.mxu0 %v4949
    %5589 = vmatpush.bf16.msra.mxu0 %v4945
    %5590 = vmatpush.bf16.msra.mxu0 %v4941
    %5591 = vmatpush.bf16.msra.mxu0 %v4937
    %5592 = vmatpush.bf16.msra.mxu0 %v4933
    %5593 = vmatpush.bf16.msra.mxu0 %v4929
    %5594 = vmatpush.bf16.msra.mxu0 %v4925
    %5595 = vmatmul.bf16.gmra.mxu0 %v4015
    %v5596 = vpop.f32.mrf.mxu0
    %v5597 = vadd.f32 %v5583, %v5596
    %v5598 = vpop.f32.mrf.mxu0
    %v5599 = vadd.f32 %v5585, %v5598
    %5600 = vdwg.mxu0
    %5601 = vmatpush.bf16.msra.mxu0 %v4985
    %5602 = vmatpush.bf16.msra.mxu0 %v4981
    %5603 = vmatpush.bf16.msra.mxu0 %v4977
    %5604 = vmatpush.bf16.msra.mxu0 %v4973
    %5605 = vmatpush.bf16.msra.mxu0 %v4969
    %5606 = vmatpush.bf16.msra.mxu0 %v4965
    %5607 = vmatpush.bf16.msra.mxu0 %v4961
    %5608 = vmatpush.bf16.msra.mxu0 %v4957
    %5609 = vmatmul.bf16.gmra.mxu0 %v4016
    %v5610 = vpop.f32.mrf.mxu0
    %v5611 = vadd.f32 %v5597, %v5610
    %v5612 = vpop.f32.mrf.mxu0
    %v5613 = vadd.f32 %v5599, %v5612
    %5614 = vdwg.mxu0
    %5615 = vmatpush.bf16.msra.mxu0 %v5017
    %5616 = vmatpush.bf16.msra.mxu0 %v5013
    %5617 = vmatpush.bf16.msra.mxu0 %v5009
    %5618 = vmatpush.bf16.msra.mxu0 %v5005
    %5619 = vmatpush.bf16.msra.mxu0 %v5001
    %5620 = vmatpush.bf16.msra.mxu0 %v4997
    %5621 = vmatpush.bf16.msra.mxu0 %v4993
    %5622 = vmatpush.bf16.msra.mxu0 %v4989
    %5623 = vmatmul.bf16.gmra.mxu0 %v4017
    %v5624 = vpop.f32.mrf.mxu0
    %v5625 = vadd.f32 %v5611, %v5624
    %v5626 = vpop.f32.mrf.mxu0
    %v5627 = vadd.f32 %v5613, %v5626
    %5628 = vdwg.mxu0
    %5629 = vmatpush.bf16.msra.mxu0 %v5049
    %5630 = vmatpush.bf16.msra.mxu0 %v5045
    %5631 = vmatpush.bf16.msra.mxu0 %v5041
    %5632 = vmatpush.bf16.msra.mxu0 %v5037
    %5633 = vmatpush.bf16.msra.mxu0 %v5033
    %5634 = vmatpush.bf16.msra.mxu0 %v5029
    %5635 = vmatpush.bf16.msra.mxu0 %v5025
    %5636 = vmatpush.bf16.msra.mxu0 %v5021
    %5637 = vmatmul.bf16.gmra.mxu0 %v4018
    %v5638 = vpop.f32.mrf.mxu0
    %v5639 = vadd.f32 %v5625, %v5638
    %v5640 = vpop.f32.mrf.mxu0
    %v5641 = vadd.f32 %v5627, %v5640
    %5642 = vdwg.mxu0
    %5643 = vmatpush.bf16.msra.mxu0 %v4826
    %5644 = vmatpush.bf16.msra.mxu0 %v4822
    %5645 = vmatpush.bf16.msra.mxu0 %v4818
    %5646 = vmatpush.bf16.msra.mxu0 %v4814
    %5647 = vmatpush.bf16.msra.mxu0 %v4810
    %5648 = vmatpush.bf16.msra.mxu0 %v4806
    %5649 = vmatpush.bf16.msra.mxu0 %v4802
    %5650 = vmatpush.bf16.msra.mxu0 %v4798
    %5651 = vmatmul.bf16.gmra.mxu0 %v4011
    %v5652 = vpop.f32.mrf.mxu0
    %v5653 = vadd.f32 %v3982, %v5652
    %v5654 = vpop.f32.mrf.mxu0
    %v5655 = vadd.f32 %v3982, %v5654
    %5656 = vdwg.mxu0
    %5657 = vmatpush.bf16.msra.mxu0 %v4858
    %5658 = vmatpush.bf16.msra.mxu0 %v4854
    %5659 = vmatpush.bf16.msra.mxu0 %v4850
    %5660 = vmatpush.bf16.msra.mxu0 %v4846
    %5661 = vmatpush.bf16.msra.mxu0 %v4842
    %5662 = vmatpush.bf16.msra.mxu0 %v4838
    %5663 = vmatpush.bf16.msra.mxu0 %v4834
    %5664 = vmatpush.bf16.msra.mxu0 %v4830
    %5665 = vmatmul.bf16.gmra.mxu0 %v4012
    %v5666 = vpop.f32.mrf.mxu0
    %v5667 = vadd.f32 %v5653, %v5666
    %v5668 = vpop.f32.mrf.mxu0
    %v5669 = vadd.f32 %v5655, %v5668
    %5670 = vdwg.mxu0
    %5671 = vmatpush.bf16.msra.mxu0 %v4890
    %5672 = vmatpush.bf16.msra.mxu0 %v4886
    %5673 = vmatpush.bf16.msra.mxu0 %v4882
    %5674 = vmatpush.bf16.msra.mxu0 %v4878
    %5675 = vmatpush.bf16.msra.mxu0 %v4874
    %5676 = vmatpush.bf16.msra.mxu0 %v4870
    %5677 = vmatpush.bf16.msra.mxu0 %v4866
    %5678 = vmatpush.bf16.msra.mxu0 %v4862
    %5679 = vmatmul.bf16.gmra.mxu0 %v4013
    %v5680 = vpop.f32.mrf.mxu0
    %v5681 = vadd.f32 %v5667, %v5680
    %v5682 = vpop.f32.mrf.mxu0
    %v5683 = vadd.f32 %v5669, %v5682
    %5684 = vdwg.mxu0
    %5685 = vmatpush.bf16.msra.mxu0 %v4922
    %5686 = vmatpush.bf16.msra.mxu0 %v4918
    %5687 = vmatpush.bf16.msra.mxu0 %v4914
    %5688 = vmatpush.bf16.msra.mxu0 %v4910
    %5689 = vmatpush.bf16.msra.mxu0 %v4906
    %5690 = vmatpush.bf16.msra.mxu0 %v4902
    %5691 = vmatpush.bf16.msra.mxu0 %v4898
    %5692 = vmatpush.bf16.msra.mxu0 %v4894
    %5693 = vmatmul.bf16.gmra.mxu0 %v4014
    %v5694 = vpop.f32.mrf.mxu0
    %v5695 = vadd.f32 %v5681, %v5694
    %v5696 = vpop.f32.mrf.mxu0
    %v5697 = vadd.f32 %v5683, %v5696
    %5698 = vdwg.mxu0
    %5699 = vmatpush.bf16.msra.mxu0 %v4954
    %5700 = vmatpush.bf16.msra.mxu0 %v4950
    %5701 = vmatpush.bf16.msra.mxu0 %v4946
    %5702 = vmatpush.bf16.msra.mxu0 %v4942
    %5703 = vmatpush.bf16.msra.mxu0 %v4938
    %5704 = vmatpush.bf16.msra.mxu0 %v4934
    %5705 = vmatpush.bf16.msra.mxu0 %v4930
    %5706 = vmatpush.bf16.msra.mxu0 %v4926
    %5707 = vmatmul.bf16.gmra.mxu0 %v4015
    %v5708 = vpop.f32.mrf.mxu0
    %v5709 = vadd.f32 %v5695, %v5708
    %v5710 = vpop.f32.mrf.mxu0
    %v5711 = vadd.f32 %v5697, %v5710
    %5712 = vdwg.mxu0
    %5713 = vmatpush.bf16.msra.mxu0 %v4986
    %5714 = vmatpush.bf16.msra.mxu0 %v4982
    %5715 = vmatpush.bf16.msra.mxu0 %v4978
    %5716 = vmatpush.bf16.msra.mxu0 %v4974
    %5717 = vmatpush.bf16.msra.mxu0 %v4970
    %5718 = vmatpush.bf16.msra.mxu0 %v4966
    %5719 = vmatpush.bf16.msra.mxu0 %v4962
    %5720 = vmatpush.bf16.msra.mxu0 %v4958
    %5721 = vmatmul.bf16.gmra.mxu0 %v4016
    %v5722 = vpop.f32.mrf.mxu0
    %v5723 = vadd.f32 %v5709, %v5722
    %v5724 = vpop.f32.mrf.mxu0
    %v5725 = vadd.f32 %v5711, %v5724
    %5726 = vdwg.mxu0
    %5727 = vmatpush.bf16.msra.mxu0 %v5018
    %5728 = vmatpush.bf16.msra.mxu0 %v5014
    %5729 = vmatpush.bf16.msra.mxu0 %v5010
    %5730 = vmatpush.bf16.msra.mxu0 %v5006
    %5731 = vmatpush.bf16.msra.mxu0 %v5002
    %5732 = vmatpush.bf16.msra.mxu0 %v4998
    %5733 = vmatpush.bf16.msra.mxu0 %v4994
    %5734 = vmatpush.bf16.msra.mxu0 %v4990
    %5735 = vmatmul.bf16.gmra.mxu0 %v4017
    %v5736 = vpop.f32.mrf.mxu0
    %v5737 = vadd.f32 %v5723, %v5736
    %v5738 = vpop.f32.mrf.mxu0
    %v5739 = vadd.f32 %v5725, %v5738
    %5740 = vdwg.mxu0
    %5741 = vmatpush.bf16.msra.mxu0 %v5050
    %5742 = vmatpush.bf16.msra.mxu0 %v5046
    %5743 = vmatpush.bf16.msra.mxu0 %v5042
    %5744 = vmatpush.bf16.msra.mxu0 %v5038
    %5745 = vmatpush.bf16.msra.mxu0 %v5034
    %5746 = vmatpush.bf16.msra.mxu0 %v5030
    %5747 = vmatpush.bf16.msra.mxu0 %v5026
    %5748 = vmatpush.bf16.msra.mxu0 %v5022
    %5749 = vmatmul.bf16.gmra.mxu0 %v4018
    %v5750 = vpop.f32.mrf.mxu0
    %v5751 = vadd.f32 %v5737, %v5750
    %v5752 = vpop.f32.mrf.mxu0
    %v5753 = vadd.f32 %v5739, %v5752
    %5754 = vdwg.mxu0
    %v5755 = vpack.c.bf16 %v5527, %v5415
    %v5756 = vpack.c.bf16 %v5751, %v5639
    %v5757 = vpack.c.bf16 %v5529, %v5417
    %v5758 = vpack.c.bf16 %v5753, %v5641
    %v5759 = vunpack.c.l.bf16 %v5755
    %v5760 = vunpack.c.h.bf16 %v5755
    %v5761 = vunpack.c.l.bf16 %v5756
    %v5762 = vunpack.c.h.bf16 %v5756
    %v5763 = vunpack.c.l.bf16 %v5757
    %v5764 = vunpack.c.h.bf16 %v5757
    %v5765 = vunpack.c.l.bf16 %v5758
    %v5766 = vunpack.c.h.bf16 %v5758
    %v5767 = vmul.f32 %v5759, 0.20019531
    %v5768 = vmul.f32 %v5760, 0.20019531
    %v5769 = vmul.f32 %v5761, 0.20019531
    %v5770 = vmul.f32 %v5762, 0.20019531
    %v5771 = vmul.f32 %v5763, 0.20019531
    %v5772 = vmul.f32 %v5764, 0.20019531
    %v5773 = vmul.f32 %v5765, 0.20019531
    %v5774 = vmul.f32 %v5766, 0.20019531
    %v5775 = vpack.c.bf16 %v5768, %v5767
    %v5776 = vpack.c.bf16 %v5770, %v5769
    %v5777 = vpack.c.bf16 %v5772, %v5771
    %v5778 = vpack.c.bf16 %v5774, %v5773
    %v5779 = vunpack.c.l.bf16 %v5775
    %v5780 = vunpack.c.h.bf16 %v5775
    %v5781 = vunpack.c.l.bf16 %v5776
    %v5782 = vunpack.c.h.bf16 %v5776
    %v5783 = vunpack.c.l.bf16 %v5777
    %v5784 = vunpack.c.h.bf16 %v5777
    %v5785 = vunpack.c.l.bf16 %v5778
    %v5786 = vunpack.c.h.bf16 %v5778
    %v5787 = vmax.f32 %v5759, %v5779
    %v5788 = vmax.f32 %v5760, %v5780
    %v5789 = vmax.f32 %v5761, %v5781
    %v5790 = vmax.f32 %v5762, %v5782
    %v5791 = vmax.f32 %v5763, %v5783
    %v5792 = vmax.f32 %v5764, %v5784
    %v5793 = vmax.f32 %v5765, %v5785
    %v5794 = vmax.f32 %v5766, %v5786
    %v5795 = vpack.c.bf16 %v5788, %v5787
    %v5796 = vpack.c.bf16 %v5790, %v5789
    %v5797 = vpack.c.bf16 %v5792, %v5791
    %v5798 = vpack.c.bf16 %v5794, %v5793
    %s5799 = sadd.s32 %s173, 2027808484
    %v5800 = vstv %s5799
    %v5801 = vadd.s32 %v3465, %v5800
    %v5802 = vadd.s32 %v3466, %v5800
    %v5803 = vmul.u32 %v5801, 2654435761
    %v5804 = vmul.u32 %v5802, 2654435761
    %v5805 = vxor.u32 %v5803, %v3481
    %v5806 = vxor.u32 %v5803, %v3482
    %v5807 = vxor.u32 %v5803, %v3483
    %v5808 = vxor.u32 %v5803, %v3484
    %v5809 = vxor.u32 %v5804, %v3481
    %v5810 = vxor.u32 %v5804, %v3482
    %v5811 = vxor.u32 %v5804, %v3483
    %v5812 = vxor.u32 %v5804, %v3484
    %v5813 = vshrl.u32 %v5805, 16
    %v5814 = vshrl.u32 %v5806, 16
    %v5815 = vshrl.u32 %v5807, 16
    %v5816 = vshrl.u32 %v5808, 16
    %v5817 = vshrl.u32 %v5809, 16
    %v5818 = vshrl.u32 %v5810, 16
    %v5819 = vshrl.u32 %v5811, 16
    %v5820 = vshrl.u32 %v5812, 16
    %v5821 = vxor.u32 %v5805, %v5813
    %v5822 = vxor.u32 %v5806, %v5814
    %v5823 = vxor.u32 %v5807, %v5815
    %v5824 = vxor.u32 %v5808, %v5816
    %v5825 = vxor.u32 %v5809, %v5817
    %v5826 = vxor.u32 %v5810, %v5818
    %v5827 = vxor.u32 %v5811, %v5819
    %v5828 = vxor.u32 %v5812, %v5820
    %v5829 = vmul.u32 %v5821, 2146121005
    %v5830 = vmul.u32 %v5822, 2146121005
    %v5831 = vmul.u32 %v5823, 2146121005
    %v5832 = vmul.u32 %v5824, 2146121005
    %v5833 = vmul.u32 %v5825, 2146121005
    %v5834 = vmul.u32 %v5826, 2146121005
    %v5835 = vmul.u32 %v5827, 2146121005
    %v5836 = vmul.u32 %v5828, 2146121005
    %v5837 = vshrl.u32 %v5829, 15
    %v5838 = vshrl.u32 %v5830, 15
    %v5839 = vshrl.u32 %v5831, 15
    %v5840 = vshrl.u32 %v5832, 15
    %v5841 = vshrl.u32 %v5833, 15
    %v5842 = vshrl.u32 %v5834, 15
    %v5843 = vshrl.u32 %v5835, 15
    %v5844 = vshrl.u32 %v5836, 15
    %v5845 = vxor.u32 %v5829, %v5837
    %v5846 = vxor.u32 %v5830, %v5838
    %v5847 = vxor.u32 %v5831, %v5839
    %v5848 = vxor.u32 %v5832, %v5840
    %v5849 = vxor.u32 %v5833, %v5841
    %v5850 = vxor.u32 %v5834, %v5842
    %v5851 = vxor.u32 %v5835, %v5843
    %v5852 = vxor.u32 %v5836, %v5844
    %v5853 = vmul.u32 %v5845, 2221713035
    %v5854 = vmul.u32 %v5846, 2221713035
    %v5855 = vmul.u32 %v5847, 2221713035
    %v5856 = vmul.u32 %v5848, 2221713035
    %v5857 = vmul.u32 %v5849, 2221713035
    %v5858 = vmul.u32 %v5850, 2221713035
    %v5859 = vmul.u32 %v5851, 2221713035
    %v5860 = vmul.u32 %v5852, 2221713035
    %v5861 = vshrl.u32 %v5853, 16
    %v5862 = vshrl.u32 %v5854, 16
    %v5863 = vshrl.u32 %v5855, 16
    %v5864 = vshrl.u32 %v5856, 16
    %v5865 = vshrl.u32 %v5857, 16
    %v5866 = vshrl.u32 %v5858, 16
    %v5867 = vshrl.u32 %v5859, 16
    %v5868 = vshrl.u32 %v5860, 16
    %v5869 = vxor.u32 %v5853, %v5861
    %v5870 = vxor.u32 %v5854, %v5862
    %v5871 = vxor.u32 %v5855, %v5863
    %v5872 = vxor.u32 %v5856, %v5864
    %v5873 = vxor.u32 %v5857, %v5865
    %v5874 = vxor.u32 %v5858, %v5866
    %v5875 = vxor.u32 %v5859, %v5867
    %v5876 = vxor.u32 %v5860, %v5868
    %v5877 = vshrl.u32 %v5869, 8
    %v5878 = vshrl.u32 %v5870, 8
    %v5879 = vshrl.u32 %v5871, 8
    %v5880 = vshrl.u32 %v5872, 8
    %v5881 = vshrl.u32 %v5873, 8
    %v5882 = vshrl.u32 %v5874, 8
    %v5883 = vshrl.u32 %v5875, 8
    %v5884 = vshrl.u32 %v5876, 8
    %vm5885 = vcmp.ge.s32.totalorder %v5877, 5033165
    %vm5886 = vcmp.ge.s32.totalorder %v5878, 5033165
    %vm5887 = vcmp.ge.s32.totalorder %v5879, 5033165
    %vm5888 = vcmp.ge.s32.totalorder %v5880, 5033165
    %vm5889 = vcmp.ge.s32.totalorder %v5881, 5033165
    %vm5890 = vcmp.ge.s32.totalorder %v5882, 5033165
    %vm5891 = vcmp.ge.s32.totalorder %v5883, 5033165
    %vm5892 = vcmp.ge.s32.totalorder %v5884, 5033165
    %v5893 = vunpack.c.l.bf16 %v5795
    %v5894 = vunpack.c.h.bf16 %v5795
    %v5895 = vunpack.c.l.bf16 %v5796
    %v5896 = vunpack.c.h.bf16 %v5796
    %v5897 = vunpack.c.l.bf16 %v5797
    %v5898 = vunpack.c.h.bf16 %v5797
    %v5899 = vunpack.c.l.bf16 %v5798
    %v5900 = vunpack.c.h.bf16 %v5798
    %v5901 = vmul.f32 %v5893, 1.4296875
    %v5902 = vmul.f32 %v5894, 1.4296875
    %v5903 = vmul.f32 %v5895, 1.4296875
    %v5904 = vmul.f32 %v5896, 1.4296875
    %v5905 = vmul.f32 %v5897, 1.4296875
    %v5906 = vmul.f32 %v5898, 1.4296875
    %v5907 = vmul.f32 %v5899, 1.4296875
    %v5908 = vmul.f32 %v5900, 1.4296875
    %v5909 = vpack.c.bf16 %v5902, %v5901
    %v5910 = vpack.c.bf16 %v5904, %v5903
    %v5911 = vpack.c.bf16 %v5906, %v5905
    %v5912 = vpack.c.bf16 %v5908, %v5907
    %vm5913 = vmpackc.low %vm5886, %vm5885
    %vm5914 = vmpackc.low %vm5888, %vm5887
    %vm5915 = vmpackc.low %vm5890, %vm5889
    %vm5916 = vmpackc.low %vm5892, %vm5891
    %v5917 = vsel %vm5913, %v5909, 0
    %v5918 = vsel %vm5914, %v5910, 0
    %v5919 = vsel %vm5915, %v5911, 0
    %v5920 = vsel %vm5916, %v5912, 0
    %v5921 = vld [vmem:[#allocation12] sm:$0xff]
    %v5922 = vld [vmem:[#allocation12 + $0x8] sm:$0xff]
    %v5923 = vld [vmem:[#allocation12 + $0x10] sm:$0xff]
    %v5924 = vld [vmem:[#allocation12 + $0x18] sm:$0xff]
    %v5925 = vld [vmem:[#allocation12 + $0x20] sm:$0xff]
    %v5926 = vld [vmem:[#allocation12 + $0x28] sm:$0xff]
    %v5927 = vld [vmem:[#allocation12 + $0x30] sm:$0xff]
    %v5928 = vld [vmem:[#allocation12 + $0x38] sm:$0xff]
    %v5929 = vld [vmem:[#allocation12 + $0x40] sm:$0xff]
    %v5930 = vld [vmem:[#allocation12 + $0x48] sm:$0xff]
    %v5931 = vld [vmem:[#allocation12 + $0x50] sm:$0xff]
    %v5932 = vld [vmem:[#allocation12 + $0x58] sm:$0xff]
    %v5933 = vld [vmem:[#allocation12 + $0x60] sm:$0xff]
    %v5934 = vld [vmem:[#allocation12 + $0x68] sm:$0xff]
    %v5935 = vld [vmem:[#allocation12 + $0x70] sm:$0xff]
    %v5936 = vld [vmem:[#allocation12 + $0x78] sm:$0xff]
    %v5937 = vld [vmem:[#allocation12 + $0x80] sm:$0xff]
    %v5938 = vld [vmem:[#allocation12 + $0x88] sm:$0xff]
    %v5939 = vld [vmem:[#allocation12 + $0x90] sm:$0xff]
    %v5940 = vld [vmem:[#allocation12 + $0x98] sm:$0xff]
    %v5941 = vld [vmem:[#allocation12 + $0xa0] sm:$0xff]
    %v5942 = vld [vmem:[#allocation12 + $0xa8] sm:$0xff]
    %v5943 = vld [vmem:[#allocation12 + $0xb0] sm:$0xff]
    %v5944 = vld [vmem:[#allocation12 + $0xb8] sm:$0xff]
    %v5945 = vld [vmem:[#allocation12 + $0xc0] sm:$0xff]
    %v5946 = vld [vmem:[#allocation12 + $0xc8] sm:$0xff]
    %v5947 = vld [vmem:[#allocation12 + $0xd0] sm:$0xff]
    %v5948 = vld [vmem:[#allocation12 + $0xd8] sm:$0xff]
    %v5949 = vld [vmem:[#allocation12 + $0xe0] sm:$0xff]
    %v5950 = vld [vmem:[#allocation12 + $0xe8] sm:$0xff]
    %v5951 = vld [vmem:[#allocation12 + $0xf0] sm:$0xff]
    %v5952 = vld [vmem:[#allocation12 + $0xf8] sm:$0xff]
    %v5953 = vld [vmem:[#allocation12 + $0x100] sm:$0xff]
    %v5954 = vld [vmem:[#allocation12 + $0x108] sm:$0xff]
    %v5955 = vld [vmem:[#allocation12 + $0x110] sm:$0xff]
    %v5956 = vld [vmem:[#allocation12 + $0x118] sm:$0xff]
    %v5957 = vld [vmem:[#allocation12 + $0x120] sm:$0xff]
    %v5958 = vld [vmem:[#allocation12 + $0x128] sm:$0xff]
    %v5959 = vld [vmem:[#allocation12 + $0x130] sm:$0xff]
    %v5960 = vld [vmem:[#allocation12 + $0x138] sm:$0xff]
    %v5961 = vld [vmem:[#allocation12 + $0x140] sm:$0xff]
    %v5962 = vld [vmem:[#allocation12 + $0x148] sm:$0xff]
    %v5963 = vld [vmem:[#allocation12 + $0x150] sm:$0xff]
    %v5964 = vld [vmem:[#allocation12 + $0x158] sm:$0xff]
    %v5965 = vld [vmem:[#allocation12 + $0x160] sm:$0xff]
    %v5966 = vld [vmem:[#allocation12 + $0x168] sm:$0xff]
    %v5967 = vld [vmem:[#allocation12 + $0x170] sm:$0xff]
    %v5968 = vld [vmem:[#allocation12 + $0x178] sm:$0xff]
    %v5969 = vld [vmem:[#allocation12 + $0x180] sm:$0xff]
    %v5970 = vld [vmem:[#allocation12 + $0x188] sm:$0xff]
    %v5971 = vld [vmem:[#allocation12 + $0x190] sm:$0xff]
    %v5972 = vld [vmem:[#allocation12 + $0x198] sm:$0xff]
    %v5973 = vld [vmem:[#allocation12 + $0x1a0] sm:$0xff]
    %v5974 = vld [vmem:[#allocation12 + $0x1a8] sm:$0xff]
    %v5975 = vld [vmem:[#allocation12 + $0x1b0] sm:$0xff]
    %v5976 = vld [vmem:[#allocation12 + $0x1b8] sm:$0xff]
    %v5977 = vld [vmem:[#allocation12 + $0x1c0] sm:$0xff]
    %v5978 = vld [vmem:[#allocation12 + $0x1c8] sm:$0xff]
    %v5979 = vld [vmem:[#allocation12 + $0x1d0] sm:$0xff]
    %v5980 = vld [vmem:[#allocation12 + $0x1d8] sm:$0xff]
    %v5981 = vld [vmem:[#allocation12 + $0x1e0] sm:$0xff]
    %v5982 = vld [vmem:[#allocation12 + $0x1e8] sm:$0xff]
    %v5983 = vld [vmem:[#allocation12 + $0x1f0] sm:$0xff]
    %v5984 = vld [vmem:[#allocation12 + $0x1f8] sm:$0xff]
    %v5985 = vld [vmem:[#allocation14] sm:$0x3]
    %v5987 = vperm.slane %v5985, 0
    %v5988 = vperm.slane %v5985, 1
    %v5995 = vunpack.c.l.b16 %v5917
    %v5996 = vunpack.c.h.b16 %v5917
    %v5997 = vunpack.c.l.b16 %v5918
    %v5998 = vunpack.c.h.b16 %v5918
    %v5999 = vunpack.c.l.b16 %v5919
    %v6000 = vunpack.c.h.b16 %v5919
    %v6001 = vunpack.c.l.b16 %v5920
    %v6002 = vunpack.c.h.b16 %v5920
    %v6003 = vpack.c.b16 %v5999, %v5995
    %v6004 = vpack.c.b16 %v6000, %v5996
    %v6005 = vpack.c.b16 %v6001, %v5997
    %v6006 = vpack.c.b16 %v6002, %v5998
    %v6075 = vunpack.c.l.b16 %v5921
    %v6076 = vunpack.c.h.b16 %v5921
    %v6077 = vunpack.c.l.b16 %v5922
    %v6078 = vunpack.c.h.b16 %v5922
    %v6079 = vunpack.c.l.b16 %v5923
    %v6080 = vunpack.c.h.b16 %v5923
    %v6081 = vunpack.c.l.b16 %v5924
    %v6082 = vunpack.c.h.b16 %v5924
    %v6083 = vunpack.c.l.b16 %v5925
    %v6084 = vunpack.c.h.b16 %v5925
    %v6085 = vunpack.c.l.b16 %v5926
    %v6086 = vunpack.c.h.b16 %v5926
    %v6087 = vunpack.c.l.b16 %v5927
    %v6088 = vunpack.c.h.b16 %v5927
    %v6089 = vunpack.c.l.b16 %v5928
    %v6090 = vunpack.c.h.b16 %v5928
    %v6091 = vunpack.c.l.b16 %v5929
    %v6092 = vunpack.c.h.b16 %v5929
    %v6093 = vunpack.c.l.b16 %v5930
    %v6094 = vunpack.c.h.b16 %v5930
    %v6095 = vunpack.c.l.b16 %v5931
    %v6096 = vunpack.c.h.b16 %v5931
    %v6097 = vunpack.c.l.b16 %v5932
    %v6098 = vunpack.c.h.b16 %v5932
    %v6099 = vunpack.c.l.b16 %v5933
    %v6100 = vunpack.c.h.b16 %v5933
    %v6101 = vunpack.c.l.b16 %v5934
    %v6102 = vunpack.c.h.b16 %v5934
    %v6103 = vunpack.c.l.b16 %v5935
    %v6104 = vunpack.c.h.b16 %v5935
    %v6105 = vunpack.c.l.b16 %v5936
    %v6106 = vunpack.c.h.b16 %v5936
    %v6107 = vunpack.c.l.b16 %v5937
    %v6108 = vunpack.c.h.b16 %v5937
    %v6109 = vunpack.c.l.b16 %v5938
    %v6110 = vunpack.c.h.b16 %v5938
    %v6111 = vunpack.c.l.b16 %v5939
    %v6112 = vunpack.c.h.b16 %v5939
    %v6113 = vunpack.c.l.b16 %v5940
    %v6114 = vunpack.c.h.b16 %v5940
    %v6115 = vunpack.c.l.b16 %v5941
    %v6116 = vunpack.c.h.b16 %v5941
    %v6117 = vunpack.c.l.b16 %v5942
    %v6118 = vunpack.c.h.b16 %v5942
    %v6119 = vunpack.c.l.b16 %v5943
    %v6120 = vunpack.c.h.b16 %v5943
    %v6121 = vunpack.c.l.b16 %v5944
    %v6122 = vunpack.c.h.b16 %v5944
    %v6123 = vunpack.c.l.b16 %v5945
    %v6124 = vunpack.c.h.b16 %v5945
    %v6125 = vunpack.c.l.b16 %v5946
    %v6126 = vunpack.c.h.b16 %v5946
    %v6127 = vunpack.c.l.b16 %v5947
    %v6128 = vunpack.c.h.b16 %v5947
    %v6129 = vunpack.c.l.b16 %v5948
    %v6130 = vunpack.c.h.b16 %v5948
    %v6131 = vunpack.c.l.b16 %v5949
    %v6132 = vunpack.c.h.b16 %v5949
    %v6133 = vunpack.c.l.b16 %v5950
    %v6134 = vunpack.c.h.b16 %v5950
    %v6135 = vunpack.c.l.b16 %v5951
    %v6136 = vunpack.c.h.b16 %v5951
    %v6137 = vunpack.c.l.b16 %v5952
    %v6138 = vunpack.c.h.b16 %v5952
    %v6139 = vunpack.c.l.b16 %v5953
    %v6140 = vunpack.c.h.b16 %v5953
    %v6141 = vunpack.c.l.b16 %v5954
    %v6142 = vunpack.c.h.b16 %v5954
    %v6143 = vunpack.c.l.b16 %v5955
    %v6144 = vunpack.c.h.b16 %v5955
    %v6145 = vunpack.c.l.b16 %v5956
    %v6146 = vunpack.c.h.b16 %v5956
    %v6147 = vunpack.c.l.b16 %v5957
    %v6148 = vunpack.c.h.b16 %v5957
    %v6149 = vunpack.c.l.b16 %v5958
    %v6150 = vunpack.c.h.b16 %v5958
    %v6151 = vunpack.c.l.b16 %v5959
    %v6152 = vunpack.c.h.b16 %v5959
    %v6153 = vunpack.c.l.b16 %v5960
    %v6154 = vunpack.c.h.b16 %v5960
    %v6155 = vunpack.c.l.b16 %v5961
    %v6156 = vunpack.c.h.b16 %v5961
    %v6157 = vunpack.c.l.b16 %v5962
    %v6158 = vunpack.c.h.b16 %v5962
    %v6159 = vunpack.c.l.b16 %v5963
    %v6160 = vunpack.c.h.b16 %v5963
    %v6161 = vunpack.c.l.b16 %v5964
    %v6162 = vunpack.c.h.b16 %v5964
    %v6163 = vunpack.c.l.b16 %v5965
    %v6164 = vunpack.c.h.b16 %v5965
    %v6165 = vunpack.c.l.b16 %v5966
    %v6166 = vunpack.c.h.b16 %v5966
    %v6167 = vunpack.c.l.b16 %v5967
    %v6168 = vunpack.c.h.b16 %v5967
    %v6169 = vunpack.c.l.b16 %v5968
    %v6170 = vunpack.c.h.b16 %v5968
    %v6171 = vunpack.c.l.b16 %v5969
    %v6172 = vunpack.c.h.b16 %v5969
    %v6173 = vunpack.c.l.b16 %v5970
    %v6174 = vunpack.c.h.b16 %v5970
    %v6175 = vunpack.c.l.b16 %v5971
    %v6176 = vunpack.c.h.b16 %v5971
    %v6177 = vunpack.c.l.b16 %v5972
    %v6178 = vunpack.c.h.b16 %v5972
    %v6179 = vunpack.c.l.b16 %v5973
    %v6180 = vunpack.c.h.b16 %v5973
    %v6181 = vunpack.c.l.b16 %v5974
    %v6182 = vunpack.c.h.b16 %v5974
    %v6183 = vunpack.c.l.b16 %v5975
    %v6184 = vunpack.c.h.b16 %v5975
    %v6185 = vunpack.c.l.b16 %v5976
    %v6186 = vunpack.c.h.b16 %v5976
    %v6187 = vunpack.c.l.b16 %v5977
    %v6188 = vunpack.c.h.b16 %v5977
    %v6189 = vunpack.c.l.b16 %v5978
    %v6190 = vunpack.c.h.b16 %v5978
    %v6191 = vunpack.c.l.b16 %v5979
    %v6192 = vunpack.c.h.b16 %v5979
    %v6193 = vunpack.c.l.b16 %v5980
    %v6194 = vunpack.c.h.b16 %v5980
    %v6195 = vunpack.c.l.b16 %v5981
    %v6196 = vunpack.c.h.b16 %v5981
    %v6197 = vunpack.c.l.b16 %v5982
    %v6198 = vunpack.c.h.b16 %v5982
    %v6199 = vunpack.c.l.b16 %v5983
    %v6200 = vunpack.c.h.b16 %v5983
    %v6201 = vunpack.c.l.b16 %v5984
    %v6202 = vunpack.c.h.b16 %v5984
    %v6203 = vpack.c.b16 %v6077, %v6075
    %v6204 = vpack.c.b16 %v6078, %v6076
    %v6205 = vpack.c.b16 %v6081, %v6079
    %v6206 = vpack.c.b16 %v6082, %v6080
    %v6207 = vpack.c.b16 %v6085, %v6083
    %v6208 = vpack.c.b16 %v6086, %v6084
    %v6209 = vpack.c.b16 %v6089, %v6087
    %v6210 = vpack.c.b16 %v6090, %v6088
    %v6211 = vpack.c.b16 %v6093, %v6091
    %v6212 = vpack.c.b16 %v6094, %v6092
    %v6213 = vpack.c.b16 %v6097, %v6095
    %v6214 = vpack.c.b16 %v6098, %v6096
    %v6215 = vpack.c.b16 %v6101, %v6099
    %v6216 = vpack.c.b16 %v6102, %v6100
    %v6217 = vpack.c.b16 %v6105, %v6103
    %v6218 = vpack.c.b16 %v6106, %v6104
    %v6219 = vpack.c.b16 %v6109, %v6107
    %v6220 = vpack.c.b16 %v6110, %v6108
    %v6221 = vpack.c.b16 %v6113, %v6111
    %v6222 = vpack.c.b16 %v6114, %v6112
    %v6223 = vpack.c.b16 %v6117, %v6115
    %v6224 = vpack.c.b16 %v6118, %v6116
    %v6225 = vpack.c.b16 %v6121, %v6119
    %v6226 = vpack.c.b16 %v6122, %v6120
    %v6227 = vpack.c.b16 %v6125, %v6123
    %v6228 = vpack.c.b16 %v6126, %v6124
    %v6229 = vpack.c.b16 %v6129, %v6127
    %v6230 = vpack.c.b16 %v6130, %v6128
    %v6231 = vpack.c.b16 %v6133, %v6131
    %v6232 = vpack.c.b16 %v6134, %v6132
    %v6233 = vpack.c.b16 %v6137, %v6135
    %v6234 = vpack.c.b16 %v6138, %v6136
    %v6235 = vpack.c.b16 %v6141, %v6139
    %v6236 = vpack.c.b16 %v6142, %v6140
    %v6237 = vpack.c.b16 %v6145, %v6143
    %v6238 = vpack.c.b16 %v6146, %v6144
    %v6239 = vpack.c.b16 %v6149, %v6147
    %v6240 = vpack.c.b16 %v6150, %v6148
    %v6241 = vpack.c.b16 %v6153, %v6151
    %v6242 = vpack.c.b16 %v6154, %v6152
    %v6243 = vpack.c.b16 %v6157, %v6155
    %v6244 = vpack.c.b16 %v6158, %v6156
    %v6245 = vpack.c.b16 %v6161, %v6159
    %v6246 = vpack.c.b16 %v6162, %v6160
    %v6247 = vpack.c.b16 %v6165, %v6163
    %v6248 = vpack.c.b16 %v6166, %v6164
    %v6249 = vpack.c.b16 %v6169, %v6167
    %v6250 = vpack.c.b16 %v6170, %v6168
    %v6251 = vpack.c.b16 %v6173, %v6171
    %v6252 = vpack.c.b16 %v6174, %v6172
    %v6253 = vpack.c.b16 %v6177, %v6175
    %v6254 = vpack.c.b16 %v6178, %v6176
    %v6255 = vpack.c.b16 %v6181, %v6179
    %v6256 = vpack.c.b16 %v6182, %v6180
    %v6257 = vpack.c.b16 %v6185, %v6183
    %v6258 = vpack.c.b16 %v6186, %v6184
    %v6259 = vpack.c.b16 %v6189, %v6187
    %v6260 = vpack.c.b16 %v6190, %v6188
    %v6261 = vpack.c.b16 %v6193, %v6191
    %v6262 = vpack.c.b16 %v6194, %v6192
    %v6263 = vpack.c.b16 %v6197, %v6195
    %v6264 = vpack.c.b16 %v6198, %v6196
    %v6265 = vpack.c.b16 %v6201, %v6199
    %v6266 = vpack.c.b16 %v6202, %v6200
    %6331 = vmatpush.bf16.msra.mxu0 %v6217
    %6332 = vmatpush.bf16.msra.mxu0 %v6215
    %6333 = vmatpush.bf16.msra.mxu0 %v6213
    %6334 = vmatpush.bf16.msra.mxu0 %v6211
    %6335 = vmatpush.bf16.msra.mxu0 %v6209
    %6336 = vmatpush.bf16.msra.mxu0 %v6207
    %6337 = vmatpush.bf16.msra.mxu0 %v6205
    %6338 = vmatpush.bf16.msra.mxu0 %v6203
    %6339 = vmatmul.bf16.gmra.mxu0 %v6003
    %v6340 = vpop.f32.mrf.mxu0
    %v6341 = vadd.f32 %v5987, %v6340
    %v6342 = vpop.f32.mrf.mxu0
    %v6343 = vadd.f32 %v5987, %v6342
    %6344 = vdwg.mxu0
    %6345 = vmatpush.bf16.msra.mxu0 %v6233
    %6346 = vmatpush.bf16.msra.mxu0 %v6231
    %6347 = vmatpush.bf16.msra.mxu0 %v6229
    %6348 = vmatpush.bf16.msra.mxu0 %v6227
    %6349 = vmatpush.bf16.msra.mxu0 %v6225
    %6350 = vmatpush.bf16.msra.mxu0 %v6223
    %6351 = vmatpush.bf16.msra.mxu0 %v6221
    %6352 = vmatpush.bf16.msra.mxu0 %v6219
    %6353 = vmatmul.bf16.gmra.mxu0 %v6004
    %v6354 = vpop.f32.mrf.mxu0
    %v6355 = vadd.f32 %v6341, %v6354
    %v6356 = vpop.f32.mrf.mxu0
    %v6357 = vadd.f32 %v6343, %v6356
    %6358 = vdwg.mxu0
    %6359 = vmatpush.bf16.msra.mxu0 %v6249
    %6360 = vmatpush.bf16.msra.mxu0 %v6247
    %6361 = vmatpush.bf16.msra.mxu0 %v6245
    %6362 = vmatpush.bf16.msra.mxu0 %v6243
    %6363 = vmatpush.bf16.msra.mxu0 %v6241
    %6364 = vmatpush.bf16.msra.mxu0 %v6239
    %6365 = vmatpush.bf16.msra.mxu0 %v6237
    %6366 = vmatpush.bf16.msra.mxu0 %v6235
    %6367 = vmatmul.bf16.gmra.mxu0 %v6005
    %v6368 = vpop.f32.mrf.mxu0
    %v6369 = vadd.f32 %v6355, %v6368
    %v6370 = vpop.f32.mrf.mxu0
    %v6371 = vadd.f32 %v6357, %v6370
    %6372 = vdwg.mxu0
    %6373 = vmatpush.bf16.msra.mxu0 %v6265
    %6374 = vmatpush.bf16.msra.mxu0 %v6263
    %6375 = vmatpush.bf16.msra.mxu0 %v6261
    %6376 = vmatpush.bf16.msra.mxu0 %v6259
    %6377 = vmatpush.bf16.msra.mxu0 %v6257
    %6378 = vmatpush.bf16.msra.mxu0 %v6255
    %6379 = vmatpush.bf16.msra.mxu0 %v6253
    %6380 = vmatpush.bf16.msra.mxu0 %v6251
    %6381 = vmatmul.bf16.gmra.mxu0 %v6006
    %v6382 = vpop.f32.mrf.mxu0
    %v6383 = vadd.f32 %v6369, %v6382
    %v6384 = vpop.f32.mrf.mxu0
    %v6385 = vadd.f32 %v6371, %v6384
    %6386 = vdwg.mxu0
    %6387 = vmatpush.bf16.msra.mxu0 %v6218
    %6388 = vmatpush.bf16.msra.mxu0 %v6216
    %6389 = vmatpush.bf16.msra.mxu0 %v6214
    %6390 = vmatpush.bf16.msra.mxu0 %v6212
    %6391 = vmatpush.bf16.msra.mxu0 %v6210
    %6392 = vmatpush.bf16.msra.mxu0 %v6208
    %6393 = vmatpush.bf16.msra.mxu0 %v6206
    %6394 = vmatpush.bf16.msra.mxu0 %v6204
    %6395 = vmatmul.bf16.gmra.mxu0 %v6003
    %v6396 = vpop.f32.mrf.mxu0
    %v6397 = vadd.f32 %v5988, %v6396
    %v6398 = vpop.f32.mrf.mxu0
    %v6399 = vadd.f32 %v5988, %v6398
    %6400 = vdwg.mxu0
    %6401 = vmatpush.bf16.msra.mxu0 %v6234
    %6402 = vmatpush.bf16.msra.mxu0 %v6232
    %6403 = vmatpush.bf16.msra.mxu0 %v6230
    %6404 = vmatpush.bf16.msra.mxu0 %v6228
    %6405 = vmatpush.bf16.msra.mxu0 %v6226
    %6406 = vmatpush.bf16.msra.mxu0 %v6224
    %6407 = vmatpush.bf16.msra.mxu0 %v6222
    %6408 = vmatpush.bf16.msra.mxu0 %v6220
    %6409 = vmatmul.bf16.gmra.mxu0 %v6004
    %v6410 = vpop.f32.mrf.mxu0
    %v6411 = vadd.f32 %v6397, %v6410
    %v6412 = vpop.f32.mrf.mxu0
    %v6413 = vadd.f32 %v6399, %v6412
    %6414 = vdwg.mxu0
    %6415 = vmatpush.bf16.msra.mxu0 %v6250
    %6416 = vmatpush.bf16.msra.mxu0 %v6248
    %6417 = vmatpush.bf16.msra.mxu0 %v6246
    %6418 = vmatpush.bf16.msra.mxu0 %v6244
    %6419 = vmatpush.bf16.msra.mxu0 %v6242
    %6420 = vmatpush.bf16.msra.mxu0 %v6240
    %6421 = vmatpush.bf16.msra.mxu0 %v6238
    %6422 = vmatpush.bf16.msra.mxu0 %v6236
    %6423 = vmatmul.bf16.gmra.mxu0 %v6005
    %v6424 = vpop.f32.mrf.mxu0
    %v6425 = vadd.f32 %v6411, %v6424
    %v6426 = vpop.f32.mrf.mxu0
    %v6427 = vadd.f32 %v6413, %v6426
    %6428 = vdwg.mxu0
    %6429 = vmatpush.bf16.msra.mxu0 %v6266
    %6430 = vmatpush.bf16.msra.mxu0 %v6264
    %6431 = vmatpush.bf16.msra.mxu0 %v6262
    %6432 = vmatpush.bf16.msra.mxu0 %v6260
    %6433 = vmatpush.bf16.msra.mxu0 %v6258
    %6434 = vmatpush.bf16.msra.mxu0 %v6256
    %6435 = vmatpush.bf16.msra.mxu0 %v6254
    %6436 = vmatpush.bf16.msra.mxu0 %v6252
    %6437 = vmatmul.bf16.gmra.mxu0 %v6006
    %v6438 = vpop.f32.mrf.mxu0
    %v6439 = vadd.f32 %v6425, %v6438
    %v6440 = vpop.f32.mrf.mxu0
    %v6441 = vadd.f32 %v6427, %v6440
    %6442 = vdwg.mxu0
    %v6443 = vpack.c.bf16 %v6439, %v6383
    %v6444 = vpack.c.bf16 %v6441, %v6385
    %v6445 = vunpack.c.l.bf16 %v6443
    %v6446 = vunpack.c.h.bf16 %v6443
    %v6447 = vunpack.c.l.bf16 %v6444
    %v6448 = vunpack.c.h.bf16 %v6444
    %v6449 = vmul.f32 %v6445, 0.20019531
    %v6450 = vmul.f32 %v6446, 0.20019531
    %v6451 = vmul.f32 %v6447, 0.20019531
    %v6452 = vmul.f32 %v6448, 0.20019531
    %v6453 = vpack.c.bf16 %v6450, %v6449
    %v6454 = vpack.c.bf16 %v6452, %v6451
    %v6455 = vunpack.c.l.bf16 %v6453
    %v6456 = vunpack.c.h.bf16 %v6453
    %v6457 = vunpack.c.l.bf16 %v6454
    %v6458 = vunpack.c.h.bf16 %v6454
    %v6459 = vmax.f32 %v6445, %v6455
    %v6460 = vmax.f32 %v6446, %v6456
    %v6461 = vmax.f32 %v6447, %v6457
    %v6462 = vmax.f32 %v6448, %v6458
    %v6463 = vpack.c.bf16 %v6460, %v6459
    %v6464 = vpack.c.bf16 %v6462, %v6461
    %s6465 = sadd.s32 %s173, 3041712726
    %v6466 = vstv %s6465
    %v6467 = vadd.s32 %v3465, %v6466
    %v6468 = vadd.s32 %v3466, %v6466
    %v6469 = vmul.u32 %v6467, 2654435761
    %v6470 = vmul.u32 %v6468, 2654435761
    %v6471 = vxor.u32 %v6469, %v3481
    %v6472 = vxor.u32 %v6469, %v3482
    %v6473 = vxor.u32 %v6470, %v3481
    %v6474 = vxor.u32 %v6470, %v3482
    %v6475 = vshrl.u32 %v6471, 16
    %v6476 = vshrl.u32 %v6472, 16
    %v6477 = vshrl.u32 %v6473, 16
    %v6478 = vshrl.u32 %v6474, 16
    %v6479 = vxor.u32 %v6471, %v6475
    %v6480 = vxor.u32 %v6472, %v6476
    %v6481 = vxor.u32 %v6473, %v6477
    %v6482 = vxor.u32 %v6474, %v6478
    %v6483 = vmul.u32 %v6479, 2146121005
    %v6484 = vmul.u32 %v6480, 2146121005
    %v6485 = vmul.u32 %v6481, 2146121005
    %v6486 = vmul.u32 %v6482, 2146121005
    %v6487 = vshrl.u32 %v6483, 15
    %v6488 = vshrl.u32 %v6484, 15
    %v6489 = vshrl.u32 %v6485, 15
    %v6490 = vshrl.u32 %v6486, 15
    %v6491 = vxor.u32 %v6483, %v6487
    %v6492 = vxor.u32 %v6484, %v6488
    %v6493 = vxor.u32 %v6485, %v6489
    %v6494 = vxor.u32 %v6486, %v6490
    %v6495 = vmul.u32 %v6491, 2221713035
    %v6496 = vmul.u32 %v6492, 2221713035
    %v6497 = vmul.u32 %v6493, 2221713035
    %v6498 = vmul.u32 %v6494, 2221713035
    %v6499 = vshrl.u32 %v6495, 16
    %v6500 = vshrl.u32 %v6496, 16
    %v6501 = vshrl.u32 %v6497, 16
    %v6502 = vshrl.u32 %v6498, 16
    %v6503 = vxor.u32 %v6495, %v6499
    %v6504 = vxor.u32 %v6496, %v6500
    %v6505 = vxor.u32 %v6497, %v6501
    %v6506 = vxor.u32 %v6498, %v6502
    %v6507 = vshrl.u32 %v6503, 8
    %v6508 = vshrl.u32 %v6504, 8
    %v6509 = vshrl.u32 %v6505, 8
    %v6510 = vshrl.u32 %v6506, 8
    %vm6511 = vcmp.ge.s32.totalorder %v6507, 5033165
    %vm6512 = vcmp.ge.s32.totalorder %v6508, 5033165
    %vm6513 = vcmp.ge.s32.totalorder %v6509, 5033165
    %vm6514 = vcmp.ge.s32.totalorder %v6510, 5033165
    %v6515 = vunpack.c.l.bf16 %v6463
    %v6516 = vunpack.c.h.bf16 %v6463
    %v6517 = vunpack.c.l.bf16 %v6464
    %v6518 = vunpack.c.h.bf16 %v6464
    %v6519 = vmul.f32 %v6515, 1.4296875
    %v6520 = vmul.f32 %v6516, 1.4296875
    %v6521 = vmul.f32 %v6517, 1.4296875
    %v6522 = vmul.f32 %v6518, 1.4296875
    %v6523 = vpack.c.bf16 %v6520, %v6519
    %v6524 = vpack.c.bf16 %v6522, %v6521
    %vm6525 = vmpackc.low %vm6512, %vm6511
    %vm6526 = vmpackc.low %vm6514, %vm6513
    %v6527 = vsel %vm6525, %v6523, 0
    %v6528 = vsel %vm6526, %v6524, 0
    %v6529 = vld [vmem:[#allocation15] sm:$0xf]
    %v6530 = vld [vmem:[#allocation15 + $0x4] sm:$0xf]
    %v6531 = vld [vmem:[#allocation15 + $0x8] sm:$0xf]
    %v6532 = vld [vmem:[#allocation15 + $0xc] sm:$0xf]
    %v6533 = vld [vmem:[#allocation15 + $0x10] sm:$0xf]
    %v6534 = vld [vmem:[#allocation15 + $0x14] sm:$0xf]
    %v6535 = vld [vmem:[#allocation15 + $0x18] sm:$0xf]
    %v6536 = vld [vmem:[#allocation15 + $0x1c] sm:$0xf]
    %v6537 = vld [vmem:[#allocation15 + $0x20] sm:$0xf]
    %v6538 = vld [vmem:[#allocation15 + $0x24] sm:$0xf]
    %v6539 = vld [vmem:[#allocation15 + $0x28] sm:$0xf]
    %v6540 = vld [vmem:[#allocation15 + $0x2c] sm:$0xf]
    %v6541 = vld [vmem:[#allocation15 + $0x30] sm:$0xf]
    %v6542 = vld [vmem:[#allocation15 + $0x34] sm:$0xf]
    %v6543 = vld [vmem:[#allocation15 + $0x38] sm:$0xf]
    %v6544 = vld [vmem:[#allocation15 + $0x3c] sm:$0xf]
    %v6545 = vld [vmem:[#allocation15 + $0x40] sm:$0xf]
    %v6546 = vld [vmem:[#allocation15 + $0x44] sm:$0xf]
    %v6547 = vld [vmem:[#allocation15 + $0x48] sm:$0xf]
    %v6548 = vld [vmem:[#allocation15 + $0x4c] sm:$0xf]
    %v6549 = vld [vmem:[#allocation15 + $0x50] sm:$0xf]
    %v6550 = vld [vmem:[#allocation15 + $0x54] sm:$0xf]
    %v6551 = vld [vmem:[#allocation15 + $0x58] sm:$0xf]
    %v6552 = vld [vmem:[#allocation15 + $0x5c] sm:$0xf]
    %v6553 = vld [vmem:[#allocation15 + $0x60] sm:$0xf]
    %v6554 = vld [vmem:[#allocation15 + $0x64] sm:$0xf]
    %v6555 = vld [vmem:[#allocation15 + $0x68] sm:$0xf]
    %v6556 = vld [vmem:[#allocation15 + $0x6c] sm:$0xf]
    %v6557 = vld [vmem:[#allocation15 + $0x70] sm:$0xf]
    %v6558 = vld [vmem:[#allocation15 + $0x74] sm:$0xf]
    %v6559 = vld [vmem:[#allocation15 + $0x78] sm:$0xf]
    %v6560 = vld [vmem:[#allocation15 + $0x7c] sm:$0xf]
    %v6561 = vld [vmem:[#allocation17] sm:$0x1]
    %v6563 = vperm.slane %v6561, 0
    %v6567 = vunpack.c.l.b16 %v6527
    %v6568 = vunpack.c.h.b16 %v6527
    %v6569 = vunpack.c.l.b16 %v6528
    %v6570 = vunpack.c.h.b16 %v6528
    %v6571 = vpack.c.b16 %v6569, %v6567
    %v6572 = vpack.c.b16 %v6570, %v6568
    %v6607 = vunpack.c.l.b16 %v6529
    %v6608 = vunpack.c.l.b16 %v6530
    %v6609 = vunpack.c.l.b16 %v6531
    %v6610 = vunpack.c.l.b16 %v6532
    %v6611 = vunpack.c.l.b16 %v6533
    %v6612 = vunpack.c.l.b16 %v6534
    %v6613 = vunpack.c.l.b16 %v6535
    %v6614 = vunpack.c.l.b16 %v6536
    %v6615 = vunpack.c.l.b16 %v6537
    %v6616 = vunpack.c.l.b16 %v6538
    %v6617 = vunpack.c.l.b16 %v6539
    %v6618 = vunpack.c.l.b16 %v6540
    %v6619 = vunpack.c.l.b16 %v6541
    %v6620 = vunpack.c.l.b16 %v6542
    %v6621 = vunpack.c.l.b16 %v6543
    %v6622 = vunpack.c.l.b16 %v6544
    %v6623 = vunpack.c.l.b16 %v6545
    %v6624 = vunpack.c.l.b16 %v6546
    %v6625 = vunpack.c.l.b16 %v6547
    %v6626 = vunpack.c.l.b16 %v6548
    %v6627 = vunpack.c.l.b16 %v6549
    %v6628 = vunpack.c.l.b16 %v6550
    %v6629 = vunpack.c.l.b16 %v6551
    %v6630 = vunpack.c.l.b16 %v6552
    %v6631 = vunpack.c.l.b16 %v6553
    %v6632 = vunpack.c.l.b16 %v6554
    %v6633 = vunpack.c.l.b16 %v6555
    %v6634 = vunpack.c.l.b16 %v6556
    %v6635 = vunpack.c.l.b16 %v6557
    %v6636 = vunpack.c.l.b16 %v6558
    %v6637 = vunpack.c.l.b16 %v6559
    %v6638 = vunpack.c.l.b16 %v6560
    %v6639 = vpack.c.b16 %v6608, %v6607
    %v6640 = vpack.c.b16 %v6610, %v6609
    %v6641 = vpack.c.b16 %v6612, %v6611
    %v6642 = vpack.c.b16 %v6614, %v6613
    %v6643 = vpack.c.b16 %v6616, %v6615
    %v6644 = vpack.c.b16 %v6618, %v6617
    %v6645 = vpack.c.b16 %v6620, %v6619
    %v6646 = vpack.c.b16 %v6622, %v6621
    %v6647 = vpack.c.b16 %v6624, %v6623
    %v6648 = vpack.c.b16 %v6626, %v6625
    %v6649 = vpack.c.b16 %v6628, %v6627
    %v6650 = vpack.c.b16 %v6630, %v6629
    %v6651 = vpack.c.b16 %v6632, %v6631
    %v6652 = vpack.c.b16 %v6634, %v6633
    %v6653 = vpack.c.b16 %v6636, %v6635
    %v6654 = vpack.c.b16 %v6638, %v6637
    %6671 = vmatpush.bf16.msra.mxu0 %v6646
    %6672 = vmatpush.bf16.msra.mxu0 %v6645
    %6673 = vmatpush.bf16.msra.mxu0 %v6644
    %6674 = vmatpush.bf16.msra.mxu0 %v6643
    %6675 = vmatpush.bf16.msra.mxu0 %v6642
    %6676 = vmatpush.bf16.msra.mxu0 %v6641
    %6677 = vmatpush.bf16.msra.mxu0 %v6640
    %6678 = vmatpush.bf16.msra.mxu0 %v6639
    %6679 = vmatmul.bf16.gmra.mxu0 %v6571
    %v6680 = vpop.f32.mrf.mxu0
    %v6681 = vadd.f32 %v6563, %v6680
    %v6682 = vpop.f32.mrf.mxu0
    %v6683 = vadd.f32 %v6563, %v6682
    %6684 = vdwg.mxu0
    %6685 = vmatpush.bf16.msra.mxu0 %v6654
    %6686 = vmatpush.bf16.msra.mxu0 %v6653
    %6687 = vmatpush.bf16.msra.mxu0 %v6652
    %6688 = vmatpush.bf16.msra.mxu0 %v6651
    %6689 = vmatpush.bf16.msra.mxu0 %v6650
    %6690 = vmatpush.bf16.msra.mxu0 %v6649
    %6691 = vmatpush.bf16.msra.mxu0 %v6648
    %6692 = vmatpush.bf16.msra.mxu0 %v6647
    %6693 = vmatmul.bf16.gmra.mxu0 %v6572
    %v6694 = vpop.f32.mrf.mxu0
    %v6695 = vadd.f32 %v6681, %v6694
    %v6696 = vpop.f32.mrf.mxu0
    %v6697 = vadd.f32 %v6683, %v6696
    %6698 = vdwg.mxu0
    %v6699 = vpack.c.bf16 %v6695, %v6695
    %v6700 = vpack.c.bf16 %v6697, %v6697
    %6701 = vst [vmem:[#allocation18] sm:$0xf] %v6699
    %6702 = vst [vmem:[#allocation18 + $0x4] sm:$0xf] %v6700
    // Predicated region
    $region78: #{tpu_custom_call.1} parent=1 // pred_check
      _
    $region79: #{tpu_custom_call.1} parent=1 // pred_check_branch
      %6704 = sbr.rel (0) target = $region81
    $region80: #{tpu_custom_call.1} parent=1 // pred_region
      %6706 = vsyncadd [#allocation5], 0
      %s6707 = sshll.u32 [#allocation18], 4
      %s6708 = int_to_ptr.vmem [resolvable:$true] %s6707
      %s6709 = sshll.u32 %s10, 4
      %s6710 = int_to_ptr.hbm [resolvable:$true] %s6709
      %6715 = dma.vmem_to_hbm [thread:$0]  %s6708, 128, %s6710, [#allocation5], 64, 64, 4
    $region81: #{tpu_custom_call.1} parent=1 // pred_fallthru
      _
    // Predicated region
    $region82: #{tpu_custom_call.1} parent=1 // pred_check
      _
    $region83: #{tpu_custom_call.1} parent=1 // pred_check_branch
      %6717 = sbr.rel (0) target = $region85
    $region84: #{tpu_custom_call.1} parent=1 // pred_region
      %6719 = dma.done [#allocation5], 128
    $region85: #{tpu_custom_call.1} parent=1 // pred_fallthru
      _
    %6720 = vsyncpa [#allocation4], 1
    %6721 = vsyncpa [#allocation7], 1
    %6722 = vsyncpa [#allocation10], 1
    %6723 = vsyncpa [#allocation13], 1
    %6724 = vsyncpa [#allocation16], 1
    %6725 = vsyncpa [#allocation5], 1

</llo_original>
